<compile_context>
chip_gen: v7x
topology: tpu7x:2x2x1
jax: 0.10.0
libtpu: 0.0.40
codegen_flags: <defaults>
</compile_context>

<pallas_src>
import functools

import jax
import jax.numpy as jnp
from jax.experimental import pallas as pl
from jax.experimental.pallas import tpu as pltpu

_EPS = 1e-5
_SLOPE = 0.01
_ACT_DTYPE = jnp.bfloat16                 # intermediate-activation storage dtype
_VMEM_LIMIT = 64 * 1024 * 1024            # raised scoped-VMEM limit


def _lrelu(u):
    return jnp.where(u > 0, u, _SLOPE * u)


# ---------------------------------------------------------------------------
# Kernel 1: ConvGraphical (A folded into a dense (V*Cin, V*Cout) weight) fused
# with the residual 1x1 conv as one row-tiled GEMM.  Two lane-aligned outputs
# (z, res) plus per-block channel sum / sum-of-squares of z so the wrapper
# never re-reads z from HBM to compute BatchNorm statistics.
#   x_ref: (bm, V*Cin) bf16   w_ref: (V*Cin, 2*V*Cout) bf16   b_ref: (1, 2*V*Cout) f32
#   z_ref/r_ref: (bm, V*Cout) bf16   st_ref: (1, 2, V*Cout) f32
# ---------------------------------------------------------------------------
def gcn_res_kernel(x_ref, w_ref, b_ref, z_ref, r_ref, st_ref):
    vc = z_ref.shape[-1]
    y = jnp.dot(x_ref[...], w_ref[...],
                preferred_element_type=jnp.float32) + b_ref[...]
    z = y[:, :vc]                       # split is lane aligned (vc % 128 == 0 here)
    z_ref[...] = z.astype(z_ref.dtype)
    r_ref[...] = y[:, vc:].astype(r_ref.dtype)
    st_ref[:, 0:1, :] = jnp.sum(z, axis=0, keepdims=True).reshape(1, 1, vc)
    st_ref[:, 1:2, :] = jnp.sum(z * z, axis=0, keepdims=True).reshape(1, 1, vc)


# ---------------------------------------------------------------------------
# Kernel 2: BN affine (scale/shift precomputed from fused stats) -> LeakyReLU
# -> temporal conv with DENSE per-channel (Cout, Cout) weights per tap
# [+ residual add].  The temporal zero pad lives in a VMEM scratch; the tap
# slices are whole-V row blocks (tile aligned).  Also emits channel stats of
# the result for the next BatchNorm.
#   u_ref: (nb, T*V, C) bf16   sc/sh/b_ref: (1, 1, C) f32   w_ref: (kt, C, C) bf16
#   [r_ref: (nb, T*V, C) bf16]  o_ref: (nb, T*V, C) bf16   st_ref: (1, 2, C) f32
#   pad_ref: (nb, (T+2*pad)*V, C) f32 VMEM scratch
# ---------------------------------------------------------------------------
def bn_lrelu_tconv_kernel(*refs, kt, V, pad, add_res):
    if add_res:
        u_ref, sc_ref, sh_ref, w_ref, b_ref, r_ref, o_ref, st_ref, pad_ref = refs
    else:
        u_ref, sc_ref, sh_ref, w_ref, b_ref, o_ref, st_ref, pad_ref = refs
        r_ref = None
    nb, TV, C = u_ref.shape

    # BatchNorm affine + LeakyReLU (f32 compute)
    h = u_ref[...].astype(jnp.float32) * sc_ref[...] + sh_ref[...]
    h = _lrelu(h)

    # temporal zero padding entirely in VMEM (no HBM pad round trip)
    pad_ref[...] = jnp.zeros(pad_ref.shape, pad_ref.dtype)
    pad_ref[:, pad * V:pad * V + TV, :] = h

    # Dense per-channel temporal conv: kt GEMMs (nb*TV, C) x (C, C), f32 acc.
    # TODO(synk): when C % 128 == 0, fuse the kt taps into one
    #             (nb*TV, kt*C) x (kt*C, C) GEMM via a lane-aligned im2col.
    acc = None
    for dt in range(kt):                               # static python loop
        tap = pad_ref[:, dt * V:dt * V + TV, :].reshape(nb * TV, C)
        y = jnp.dot(tap.astype(w_ref.dtype), w_ref[dt],
                    preferred_element_type=jnp.float32)
        acc = y if acc is None else acc + y            # bias added once below

    out = acc.reshape(nb, TV, C) + b_ref[...]
    if add_res:
        out = out + r_ref[...].astype(jnp.float32)
    o_ref[...] = out.astype(o_ref.dtype)

    # per-block channel statistics of the tensor the *next* BatchNorm sees
    o2 = out.reshape(nb * TV, C)
    st_ref[:, 0:1, :] = jnp.sum(o2, axis=0, keepdims=True).reshape(1, 1, C)
    st_ref[:, 1:2, :] = jnp.sum(o2 * o2, axis=0, keepdims=True).reshape(1, 1, C)


# ---------------------------------------------------------------------------
# Kernel 3: final BN affine + LeakyReLU (elementwise, row-tiled, lane-dense).
# ---------------------------------------------------------------------------
def bn_lrelu_kernel(u_ref, sc_ref, sh_ref, o_ref):
    o_ref[...] = _lrelu(u_ref[...].astype(jnp.float32) * sc_ref[...] + sh_ref[...])


def _row_tile(n, target=512, mult=16):
    """Largest multiple-of-`mult` divisor of n that is <= target; prefer a
    tiling that leaves >= 2 grid steps (pipelining / v7x megacore).
    target=512 suits v7x's 64 MiB VMEM; raise to 1024 on v5e/v6e."""
    best = n
    for t in range(min(n, target), mult - 1, -1):
        if n % t == 0 and t % mult == 0:
            best = t
            break
    if best == n and n > mult:
        for t in range(n // 2, mult - 1, -1):
            if n % t == 0 and t % mult == 0:
                return t
    return best


def _sample_tile(n, rows_per_sample, target_rows=512):
    """Samples per block for the temporal stages; keep >= 2 grid steps."""
    best = 1
    for d in range(1, n + 1):
        if n % d == 0 and d * rows_per_sample <= target_rows:
            best = d
    if best == n and n > 1:
        for d in range(n // 2, 0, -1):
            if n % d == 0:
                return d
    return best


def st_gcn_forward(x, A, params):
    """x: (N, Cin, T, V) NCHW float32, A: (K, V, V). Returns (N, Cout, T, V)."""
    N, Cin, T, V = x.shape
    Cout = params['wr'].shape[1]
    kt = params['wt1'].shape[0]
    pad = (kt - 1) // 2
    NT, TV, VC = N * T, T * V, V * Cout
    f32, act = jnp.float32, _ACT_DTYPE
    count = float(N * T * V)
    cparams = pltpu.CompilerParams(dimension_semantics=("parallel",),
                                   vmem_limit_bytes=_VMEM_LIMIT)

    # ---- trace-time layout change + weight folding (tiny tensors) -----------
    x_flat = jnp.transpose(x, (0, 2, 3, 1)).reshape(NT, V * Cin).astype(act)

    hp = jax.lax.Precision.HIGHEST      # folding is tiny; keep it exact
    bg = params['bg'].reshape(A.shape[0], Cout)
    w_gcn = jnp.einsum('kvw,kio->viwo', A, params['wg'],
                       precision=hp).reshape(V * Cin, VC)
    b_gcn = jnp.einsum('kvw,ko->wo', A, bg, precision=hp).reshape(VC)
    eyeV = jnp.eye(V, dtype=f32)
    w_res = jnp.einsum('vw,io->viwo', eyeV, params['wr'],
                       precision=hp).reshape(V * Cin, VC)
    b_res = jnp.tile(params['br'].reshape(Cout), V)
    w_in = jnp.concatenate([w_gcn, w_res], axis=1).astype(act)   # (V*Cin, 2*VC)
    b_in = jnp.concatenate([b_gcn, b_res]).reshape(1, 2 * VC).astype(f32)

    # dense per-channel temporal weights (kt, Cout, Cout) -- no block-diag-over-V
    wt1 = params['wt1'].astype(act)
    wt2 = params['wt2'].astype(act)
    bt1 = params['bt1'].reshape(1, 1, Cout).astype(f32)
    bt2 = params['bt2'].reshape(1, 1, Cout).astype(f32)

    def bn_scale_shift(stats, gamma, beta):
        """Finish the tiny cross-block reduction of the in-kernel BN stats."""
        s = jnp.sum(stats[:, 0, :], axis=0)
        q = jnp.sum(stats[:, 1, :], axis=0)
        if s.shape[0] != Cout:                       # stage-1 stats: fold V groups
            s = s.reshape(V, Cout).sum(axis=0)
            q = q.reshape(V, Cout).sum(axis=0)
        mean = s / count
        var = q / count - mean * mean                # biased, as BatchNorm2d
        scale = gamma.reshape(Cout) * jax.lax.rsqrt(var + _EPS)
        shift = beta.reshape(Cout) - mean * scale
        return scale, shift

    # ---- stage 1: graph conv + residual as one row-tiled GEMM ----------------
    # (constant-index operands below could also use pipeline_mode=pl.Buffered(1)
    #  to halve their VMEM footprint; left at the default here.)
    bm = _row_tile(NT)
    gm = pl.cdiv(NT, bm)
    z, res, st1 = pl.pallas_call(
        gcn_res_kernel,
        out_shape=(jax.ShapeDtypeStruct((NT, VC), act),
                   jax.ShapeDtypeStruct((NT, VC), act),
                   jax.ShapeDtypeStruct((gm, 2, VC), f32)),
        grid=(gm,),
        in_specs=[pl.BlockSpec((bm, V * Cin), lambda i: (i, 0)),
                  pl.BlockSpec((V * Cin, 2 * VC), lambda i: (0, 0)),
                  pl.BlockSpec((1, 2 * VC), lambda i: (0, 0))],
        out_specs=(pl.BlockSpec((bm, VC), lambda i: (i, 0)),
                   pl.BlockSpec((bm, VC), lambda i: (i, 0)),
                   pl.BlockSpec((1, 2, VC), lambda i: (i, 0, 0))),
        compiler_params=cparams,
    )(x_flat, w_in, b_in)

    # ---- stages 2/3: BN -> LeakyReLU -> temporal conv (dense per-channel) ----
    # TODO(synk): for long T, add a second (T-block) grid axis with halo rows.
    nb = _sample_tile(N, TV)
    gn = pl.cdiv(N, nb)

    def tconv_call(u, scale, shift, w, b, res3):
        add_res = res3 is not None
        in_specs = [pl.BlockSpec((nb, TV, Cout), lambda i: (i, 0, 0)),
                    pl.BlockSpec((1, 1, Cout), lambda i: (0, 0, 0)),
                    pl.BlockSpec((1, 1, Cout), lambda i: (0, 0, 0)),
                    pl.BlockSpec((kt, Cout, Cout), lambda i: (0, 0, 0)),
                    pl.BlockSpec((1, 1, Cout), lambda i: (0, 0, 0))]
        args = [u, scale.reshape(1, 1, Cout), shift.reshape(1, 1, Cout), w, b]
        if add_res:
            in_specs.append(pl.BlockSpec((nb, TV, Cout), lambda i: (i, 0, 0)))
            args.append(res3)
        out, st = pl.pallas_call(
            functools.partial(bn_lrelu_tconv_kernel, kt=kt, V=V, pad=pad,
                              add_res=add_res),
            out_shape=(jax.ShapeDtypeStruct((N, TV, Cout), act),
                       jax.ShapeDtypeStruct((gn, 2, Cout), f32)),
            grid=(gn,),
            in_specs=in_specs,
            out_specs=(pl.BlockSpec((nb, TV, Cout), lambda i: (i, 0, 0)),
                       pl.BlockSpec((1, 2, Cout), lambda i: (i, 0, 0))),
            scratch_shapes=[pltpu.VMEM((nb, TV + 2 * pad * V, Cout), f32)],
            compiler_params=cparams,
        )(*args)
        return out, st

    sc1, sh1 = bn_scale_shift(st1, params['g1'], params['be1'])
    h1, st2 = tconv_call(z.reshape(N, TV, Cout), sc1, sh1, wt1, bt1, None)

    sc2, sh2 = bn_scale_shift(st2, params['g2'], params['be2'])
    h2, st3 = tconv_call(h1, sc2, sh2, wt2, bt2, res.reshape(N, TV, Cout))

    # ---- stage 4: final BN + LeakyReLU (row-tiled, lane-dense) ---------------
    sc3, sh3 = bn_scale_shift(st3, params['g3'], params['be3'])
    out_flat = pl.pallas_call(
        bn_lrelu_kernel,
        out_shape=jax.ShapeDtypeStruct((NT, VC), f32),
        grid=(gm,),
        in_specs=[pl.BlockSpec((bm, VC), lambda i: (i, 0)),
                  pl.BlockSpec((1, VC), lambda i: (0, 0)),
                  pl.BlockSpec((1, VC), lambda i: (0, 0))],
        out_specs=pl.BlockSpec((bm, VC), lambda i: (i, 0)),
        compiler_params=cparams,
    )(h2.reshape(NT, VC),
      jnp.tile(sc3, V).reshape(1, VC),
      jnp.tile(sh3, V).reshape(1, VC))

    return jnp.transpose(out_flat.reshape(N, T, V, Cout), (0, 3, 1, 2))


def st_gcn_reference(x, A, p):
    """Pure-JAX NCHW reference mirroring the PyTorch forward (f32, HIGHEST)."""
    hp = jax.lax.Precision.HIGHEST
    N, Cin, T, V = x.shape
    K = A.shape[0]
    Cout = p['wr'].shape[1]
    eps, slope = 1e-5, 0.01

    def lrelu(u):
        return jnp.where(u > 0, u, slope * u)

    def bn(u, g, b):
        mean = u.mean(axis=(0, 2, 3), keepdims=True)
        var = ((u - mean) ** 2).mean(axis=(0, 2, 3), keepdims=True)
        return ((u - mean) * jax.lax.rsqrt(var + eps)
                * g.reshape(1, Cout, 1, 1) + b.reshape(1, Cout, 1, 1))

    def tconv(u, w, b):
        kt = w.shape[0]
        pad = (kt - 1) // 2
        up = jnp.pad(u, ((0, 0), (0, 0), (pad, pad), (0, 0)))
        out = jnp.zeros((N, Cout, T, V), jnp.float32) + b.reshape(1, Cout, 1, 1)
        for dt in range(kt):
            out = out + jnp.einsum('nitv,io->notv', up[:, :, dt:dt + T], w[dt],
                                   precision=hp)
        return out

    res = jnp.einsum('nitv,io->notv', x, p['wr'], precision=hp) \
        + p['br'].reshape(1, Cout, 1, 1)
    y = jnp.einsum('nitv,kio->nkotv', x, p['wg'], precision=hp) \
        + p['bg'].reshape(1, K, Cout, 1, 1)
    z = jnp.einsum('nkotv,kvw->notw', y, A, precision=hp)

    h = tconv(lrelu(bn(z, p['g1'], p['be1'])), p['wt1'], p['bt1'])
    h = tconv(lrelu(bn(h, p['g2'], p['be2'])), p['wt2'], p['bt2'])
    h = h + res
    h = lrelu(bn(h, p['g3'], p['be3']))
    return h


if __name__ == "__main__":
    # N, Cin, Cout, T, V, K(spatial kernel), kt(temporal kernel)
    N, Cin, Cout, T, V, K, kt = 4, 4, 32, 8, 16, 3, 3

    key = jax.random.PRNGKey(0)
    ks = jax.random.split(key, 20)

    x = jax.random.normal(ks[0], (N, Cin, T, V), jnp.float32)
    A = jax.random.uniform(ks[1], (K, V, V), jnp.float32)
    A = A / jnp.sum(A, axis=-1, keepdims=True)

    params = dict(
        # ConvGraphical: Conv2d(Cin, K*Cout, 1x1) stored as (K, Cin, Cout) + bias (K,1,Cout)
        wg=0.3 * jax.random.normal(ks[2], (K, Cin, Cout), jnp.float32),
        bg=0.1 * jax.random.normal(ks[3], (K, 1, Cout), jnp.float32),
        # Residual: Conv2d(Cin, Cout, 1x1)
        wr=0.3 * jax.random.normal(ks[4], (Cin, Cout), jnp.float32),
        br=0.1 * jax.random.normal(ks[5], (1, Cout), jnp.float32),
        # ConvTemporal: BN1, conv1 (kt,1), BN2, conv2 (kt,1)
        g1=1.0 + 0.1 * jax.random.normal(ks[6], (1, Cout), jnp.float32),
        be1=0.1 * jax.random.normal(ks[7], (1, Cout), jnp.float32),
        wt1=0.2 * jax.random.normal(ks[8], (kt, Cout, Cout), jnp.float32),
        bt1=0.1 * jax.random.normal(ks[9], (1, Cout), jnp.float32),
        g2=1.0 + 0.1 * jax.random.normal(ks[10], (1, Cout), jnp.float32),
        be2=0.1 * jax.random.normal(ks[11], (1, Cout), jnp.float32),
        wt2=0.2 * jax.random.normal(ks[12], (kt, Cout, Cout), jnp.float32),
        bt2=0.1 * jax.random.normal(ks[13], (1, Cout), jnp.float32),
        # final BatchNorm (self.norm)
        g3=1.0 + 0.1 * jax.random.normal(ks[14], (1, Cout), jnp.float32),
        be3=0.1 * jax.random.normal(ks[15], (1, Cout), jnp.float32),
    )

    out = jax.jit(st_gcn_forward)(x, A, params)
    out = jax.block_until_ready(out)
    assert out.shape == (N, Cout, T, V)

    ref = st_gcn_reference(x, A, params)
    # bf16 activation storage + single-pass bf16 MXU operands => looser tolerance
    # than the previous f32/HIGHEST version (as sanctioned by the perf review).
    err_max = float(jnp.max(jnp.abs(out - ref)))
    rel_l2 = float(jnp.linalg.norm(out - ref) / jnp.linalg.norm(ref))
    assert err_max < 2e-1, f"max abs err vs reference: {err_max}"
    assert rel_l2 < 2e-2, f"relative L2 err vs reference: {rel_l2}"

    print("KERNEL_OK")
</pallas_src>

<mosaic_0001>
module attributes {stable_mosaic.version = 11 : i64} {
  func.func @gcn_res_kernel(%arg0: i32, %arg1: memref<16x64xbf16, #tpu.memory_space<vmem>>, %arg2: memref<64x1024xbf16, #tpu.memory_space<vmem>>, %arg3: memref<1x1024xf32, #tpu.memory_space<vmem>>, %arg4: memref<16x512xbf16, #tpu.memory_space<vmem>>, %arg5: memref<16x512xbf16, #tpu.memory_space<vmem>>, %arg6: memref<1x2x512xf32, #tpu.memory_space<vmem>>) attributes {dimension_semantics = [#tpu.dimension_semantics<parallel>], iteration_bounds = array<i64: 2>, scalar_prefetch = 0 : i64, scratch_operands = 0 : i64, tpu.core_type = #tpu.core_type<tc>, window_params = [{transform_indices = @transform_0, window_bounds = array<i64: 16, 64>}, {pipeline_mode = #tpu.pipeline_mode<synchronous>, transform_indices = @transform_1, window_bounds = array<i64: 64, 1024>}, {pipeline_mode = #tpu.pipeline_mode<synchronous>, transform_indices = @transform_2, window_bounds = array<i64: 1, 1024>}, {transform_indices = @transform_3, window_bounds = array<i64: 16, 512>}, {transform_indices = @transform_4, window_bounds = array<i64: 16, 512>}, {transform_indices = @transform_5, window_bounds = array<i64: 1, 2, 512>}]} {
    %c0 = arith.constant 0 : index
    %c0_0 = arith.constant 0 : index
    %0 = vector.load %arg1[%c0, %c0_0] : memref<16x64xbf16, #tpu.memory_space<vmem>>, vector<16x64xbf16>
    %c0_1 = arith.constant 0 : index
    %c0_2 = arith.constant 0 : index
    %1 = vector.load %arg2[%c0_1, %c0_2] : memref<64x1024xbf16, #tpu.memory_space<vmem>>, vector<64x1024xbf16>
    %cst = arith.constant dense<0.000000e+00> : vector<16x1024xf32>
    %2 = tpu.matmul %0, %1, %cst {dimension_numbers = #tpu.dot_dimension_numbers<[1], [0], [0], [1], [0, 0, 1, 1], [], []>} : vector<16x64xbf16>, vector<64x1024xbf16>, vector<16x1024xf32> -> vector<16x1024xf32>
    %c0_3 = arith.constant 0 : index
    %c0_4 = arith.constant 0 : index
    %3 = vector.load %arg3[%c0_3, %c0_4] : memref<1x1024xf32, #tpu.memory_space<vmem>>, vector<1x1024xf32>
    %4 = vector.broadcast %3 : vector<1x1024xf32> to vector<16x1024xf32>
    %5 = arith.addf %2, %4 : vector<16x1024xf32>
    %6 = vector.extract_strided_slice %5 {offsets = [0, 0], sizes = [16, 512], strides = [1, 1]} : vector<16x1024xf32> to vector<16x512xf32>
    %7 = arith.truncf %6 : vector<16x512xf32> to vector<16x512xbf16>
    %c0_5 = arith.constant 0 : index
    %c0_6 = arith.constant 0 : index
    %8 = vector.load %arg4[%c0_5, %c0_6] : memref<16x512xbf16, #tpu.memory_space<vmem>>, vector<16x512xbf16>
    tpu.vector_store %arg4[%c0_5, %c0_6], %7 {strides = array<i32>} : memref<16x512xbf16, #tpu.memory_space<vmem>>, vector<16x512xbf16>,
    %9 = vector.extract_strided_slice %5 {offsets = [0, 512], sizes = [16, 512], strides = [1, 1]} : vector<16x1024xf32> to vector<16x512xf32>
    %10 = arith.truncf %9 : vector<16x512xf32> to vector<16x512xbf16>
    %c0_7 = arith.constant 0 : index
    %c0_8 = arith.constant 0 : index
    %11 = vector.load %arg5[%c0_7, %c0_8] : memref<16x512xbf16, #tpu.memory_space<vmem>>, vector<16x512xbf16>
    tpu.vector_store %arg5[%c0_7, %c0_8], %10 {strides = array<i32>} : memref<16x512xbf16, #tpu.memory_space<vmem>>, vector<16x512xbf16>,
    %cst_9 = arith.constant dense<0.000000e+00> : vector<512xf32>
    %12 = vector.multi_reduction <add>, %6, %cst_9 [0] : vector<16x512xf32> to vector<512xf32>
    %13 = vector.shape_cast %12 : vector<512xf32> to vector<1x512xf32>
    %14 = vector.shape_cast %13 : vector<1x512xf32> to vector<1x1x512xf32>
    %c0_10 = arith.constant 0 : index
    %c0_11 = arith.constant 0 : index
    %c0_12 = arith.constant 0 : index
    %15 = vector.load %arg6[%c0_10, %c0_11, %c0_12] : memref<1x2x512xf32, #tpu.memory_space<vmem>>, vector<1x1x512xf32>
    tpu.vector_store %arg6[%c0_10, %c0_11, %c0_12], %14 {strides = array<i32>} : memref<1x2x512xf32, #tpu.memory_space<vmem>>, vector<1x1x512xf32>,
    %16 = arith.mulf %6, %6 : vector<16x512xf32>
    %cst_13 = arith.constant dense<0.000000e+00> : vector<512xf32>
    %17 = vector.multi_reduction <add>, %16, %cst_13 [0] : vector<16x512xf32> to vector<512xf32>
    %18 = vector.shape_cast %17 : vector<512xf32> to vector<1x512xf32>
    %19 = vector.shape_cast %18 : vector<1x512xf32> to vector<1x1x512xf32>
    %c0_14 = arith.constant 0 : index
    %c1 = arith.constant 1 : index
    %c0_15 = arith.constant 0 : index
    %20 = vector.load %arg6[%c0_14, %c1, %c0_15] : memref<1x2x512xf32, #tpu.memory_space<vmem>>, vector<1x1x512xf32>
    tpu.vector_store %arg6[%c0_14, %c1, %c0_15], %19 {strides = array<i32>} : memref<1x2x512xf32, #tpu.memory_space<vmem>>, vector<1x1x512xf32>,
    return
  }
  func.func @transform_0(%arg0: i32) -> (i32, i32) {
    %c0_i32 = arith.constant 0 : i32
    %c0_i32_0 = arith.constant 0 : i32
    return %arg0, %c0_i32 : i32, i32
  }
  func.func @transform_1(%arg0: i32) -> (i32, i32) {
    %c0_i32 = arith.constant 0 : i32
    %c0_i32_0 = arith.constant 0 : i32
    %c0_i32_1 = arith.constant 0 : i32
    return %c0_i32, %c0_i32_0 : i32, i32
  }
  func.func @transform_2(%arg0: i32) -> (i32, i32) {
    %c0_i32 = arith.constant 0 : i32
    %c0_i32_0 = arith.constant 0 : i32
    %c0_i32_1 = arith.constant 0 : i32
    return %c0_i32, %c0_i32_0 : i32, i32
  }
  func.func @transform_3(%arg0: i32) -> (i32, i32) {
    %c0_i32 = arith.constant 0 : i32
    %c0_i32_0 = arith.constant 0 : i32
    return %arg0, %c0_i32 : i32, i32
  }
  func.func @transform_4(%arg0: i32) -> (i32, i32) {
    %c0_i32 = arith.constant 0 : i32
    %c0_i32_0 = arith.constant 0 : i32
    return %arg0, %c0_i32 : i32, i32
  }
  func.func @transform_5(%arg0: i32) -> (i32, i32, i32) {
    %c0_i32 = arith.constant 0 : i32
    %c0_i32_0 = arith.constant 0 : i32
    %c0_i32_1 = arith.constant 0 : i32
    return %arg0, %c0_i32, %c0_i32_0 : i32, i32, i32
  }
}

module attributes {stable_mosaic.version = 11 : i64} {
  func.func @bn_lrelu_tconv_kernel(%arg0: i32, %arg1: memref<2x128x32xbf16, #tpu.memory_space<vmem>>, %arg2: memref<1x1x32xf32, #tpu.memory_space<vmem>>, %arg3: memref<1x1x32xf32, #tpu.memory_space<vmem>>, %arg4: memref<3x32x32xbf16, #tpu.memory_space<vmem>>, %arg5: memref<1x1x32xf32, #tpu.memory_space<vmem>>, %arg6: memref<2x128x32xbf16, #tpu.memory_space<vmem>>, %arg7: memref<1x2x32xf32, #tpu.memory_space<vmem>>, %arg8: memref<2x160x32xf32, #tpu.memory_space<vmem>>) attributes {dimension_semantics = [#tpu.dimension_semantics<parallel>], iteration_bounds = array<i64: 2>, scalar_prefetch = 0 : i64, scratch_operands = 1 : i64, tpu.core_type = #tpu.core_type<tc>, window_params = [{transform_indices = @transform_0, window_bounds = array<i64: 2, 128, 32>}, {pipeline_mode = #tpu.pipeline_mode<synchronous>, transform_indices = @transform_1, window_bounds = array<i64: 1, 1, 32>}, {pipeline_mode = #tpu.pipeline_mode<synchronous>, transform_indices = @transform_2, window_bounds = array<i64: 1, 1, 32>}, {pipeline_mode = #tpu.pipeline_mode<synchronous>, transform_indices = @transform_3, window_bounds = array<i64: 3, 32, 32>}, {pipeline_mode = #tpu.pipeline_mode<synchronous>, transform_indices = @transform_4, window_bounds = array<i64: 1, 1, 32>}, {transform_indices = @transform_5, window_bounds = array<i64: 2, 128, 32>}, {transform_indices = @transform_6, window_bounds = array<i64: 1, 2, 32>}]} {
    %c0 = arith.constant 0 : index
    %c0_0 = arith.constant 0 : index
    %c0_1 = arith.constant 0 : index
    %0 = vector.load %arg1[%c0, %c0_0, %c0_1] : memref<2x128x32xbf16, #tpu.memory_space<vmem>>, vector<2x128x32xbf16>
    %1 = arith.extf %0 : vector<2x128x32xbf16> to vector<2x128x32xf32>
    %c0_2 = arith.constant 0 : index
    %c0_3 = arith.constant 0 : index
    %c0_4 = arith.constant 0 : index
    %2 = vector.load %arg2[%c0_2, %c0_3, %c0_4] : memref<1x1x32xf32, #tpu.memory_space<vmem>>, vector<1x1x32xf32>
    %3 = vector.broadcast %2 : vector<1x1x32xf32> to vector<2x128x32xf32>
    %4 = arith.mulf %1, %3 : vector<2x128x32xf32>
    %c0_5 = arith.constant 0 : index
    %c0_6 = arith.constant 0 : index
    %c0_7 = arith.constant 0 : index
    %5 = vector.load %arg3[%c0_5, %c0_6, %c0_7] : memref<1x1x32xf32, #tpu.memory_space<vmem>>, vector<1x1x32xf32>
    %6 = vector.broadcast %5 : vector<1x1x32xf32> to vector<2x128x32xf32>
    %7 = arith.addf %4, %6 : vector<2x128x32xf32>
    %cst = arith.constant 0.000000e+00 : f32
    %8 = vector.broadcast %cst : f32 to vector<2x128x32xf32>
    %9 = arith.cmpf ogt, %7, %8 : vector<2x128x32xf32>
    %cst_8 = arith.constant 0.00999999977 : f32
    %10 = vector.broadcast %cst_8 : f32 to vector<2x128x32xf32>
    %11 = arith.mulf %10, %7 : vector<2x128x32xf32>
    %12 = arith.select %9, %7, %11 : vector<2x128x32xi1>, vector<2x128x32xf32>
    %cst_9 = arith.constant 0.000000e+00 : f32
    %13 = vector.broadcast %cst_9 : f32 to vector<2x160x32xf32>
    %c0_10 = arith.constant 0 : index
    %c0_11 = arith.constant 0 : index
    %c0_12 = arith.constant 0 : index
    %14 = vector.load %arg8[%c0_10, %c0_11, %c0_12] : memref<2x160x32xf32, #tpu.memory_space<vmem>>, vector<2x160x32xf32>
    tpu.vector_store %arg8[%c0_10, %c0_11, %c0_12], %13 {strides = array<i32>} : memref<2x160x32xf32, #tpu.memory_space<vmem>>, vector<2x160x32xf32>,
    %c0_13 = arith.constant 0 : index
    %c16 = arith.constant 16 : index
    %c0_14 = arith.constant 0 : index
    %15 = vector.load %arg8[%c0_13, %c16, %c0_14] : memref<2x160x32xf32, #tpu.memory_space<vmem>>, vector<2x128x32xf32>
    tpu.vector_store %arg8[%c0_13, %c16, %c0_14], %12 {strides = array<i32>} : memref<2x160x32xf32, #tpu.memory_space<vmem>>, vector<2x128x32xf32>,
    %c0_15 = arith.constant 0 : index
    %c0_16 = arith.constant 0 : index
    %c0_17 = arith.constant 0 : index
    %16 = vector.load %arg8[%c0_15, %c0_16, %c0_17] : memref<2x160x32xf32, #tpu.memory_space<vmem>>, vector<2x128x32xf32>
    %17 = vector.shape_cast %16 : vector<2x128x32xf32> to vector<256x32xf32>
    %18 = arith.truncf %17 : vector<256x32xf32> to vector<256x32xbf16>
    %c0_18 = arith.constant 0 : index
    %c0_19 = arith.constant 0 : index
    %c0_20 = arith.constant 0 : index
    %19 = vector.load %arg4[%c0_18, %c0_19, %c0_20] : memref<3x32x32xbf16, #tpu.memory_space<vmem>>, vector<1x32x32xbf16>
    %20 = vector.shape_cast %19 : vector<1x32x32xbf16> to vector<32x32xbf16>
    %cst_21 = arith.constant dense<0.000000e+00> : vector<256x32xf32>
    %21 = tpu.matmul %18, %20, %cst_21 {dimension_numbers = #tpu.dot_dimension_numbers<[1], [0], [0], [1], [0, 0, 1, 1], [], []>} : vector<256x32xbf16>, vector<32x32xbf16>, vector<256x32xf32> -> vector<256x32xf32>
    %c0_22 = arith.constant 0 : index
    %c16_23 = arith.constant 16 : index
    %c0_24 = arith.constant 0 : index
    %22 = vector.load %arg8[%c0_22, %c16_23, %c0_24] : memref<2x160x32xf32, #tpu.memory_space<vmem>>, vector<2x128x32xf32>
    %23 = vector.shape_cast %22 : vector<2x128x32xf32> to vector<256x32xf32>
    %24 = arith.truncf %23 : vector<256x32xf32> to vector<256x32xbf16>
    %c1 = arith.constant 1 : index
    %c0_25 = arith.constant 0 : index
    %c0_26 = arith.constant 0 : index
    %25 = vector.load %arg4[%c1, %c0_25, %c0_26] : memref<3x32x32xbf16, #tpu.memory_space<vmem>>, vector<1x32x32xbf16>
    %26 = vector.shape_cast %25 : vector<1x32x32xbf16> to vector<32x32xbf16>
    %cst_27 = arith.constant dense<0.000000e+00> : vector<256x32xf32>
    %27 = tpu.matmul %24, %26, %cst_27 {dimension_numbers = #tpu.dot_dimension_numbers<[1], [0], [0], [1], [0, 0, 1, 1], [], []>} : vector<256x32xbf16>, vector<32x32xbf16>, vector<256x32xf32> -> vector<256x32xf32>
    %28 = arith.addf %21, %27 : vector<256x32xf32>
    %c0_28 = arith.constant 0 : index
    %c32 = arith.constant 32 : index
    %c0_29 = arith.constant 0 : index
    %29 = vector.load %arg8[%c0_28, %c32, %c0_29] : memref<2x160x32xf32, #tpu.memory_space<vmem>>, vector<2x128x32xf32>
    %30 = vector.shape_cast %29 : vector<2x128x32xf32> to vector<256x32xf32>
    %31 = arith.truncf %30 : vector<256x32xf32> to vector<256x32xbf16>
    %c2 = arith.constant 2 : index
    %c0_30 = arith.constant 0 : index
    %c0_31 = arith.constant 0 : index
    %32 = vector.load %arg4[%c2, %c0_30, %c0_31] : memref<3x32x32xbf16, #tpu.memory_space<vmem>>, vector<1x32x32xbf16>
    %33 = vector.shape_cast %32 : vector<1x32x32xbf16> to vector<32x32xbf16>
    %cst_32 = arith.constant dense<0.000000e+00> : vector<256x32xf32>
    %34 = tpu.matmul %31, %33, %cst_32 {dimension_numbers = #tpu.dot_dimension_numbers<[1], [0], [0], [1], [0, 0, 1, 1], [], []>} : vector<256x32xbf16>, vector<32x32xbf16>, vector<256x32xf32> -> vector<256x32xf32>
    %35 = arith.addf %28, %34 : vector<256x32xf32>
    %36 = vector.shape_cast %35 : vector<256x32xf32> to vector<2x128x32xf32>
    %c0_33 = arith.constant 0 : index
    %c0_34 = arith.constant 0 : index
    %c0_35 = arith.constant 0 : index
    %37 = vector.load %arg5[%c0_33, %c0_34, %c0_35] : memref<1x1x32xf32, #tpu.memory_space<vmem>>, vector<1x1x32xf32>
    %38 = vector.broadcast %37 : vector<1x1x32xf32> to vector<2x128x32xf32>
    %39 = arith.addf %36, %38 : vector<2x128x32xf32>
    %40 = arith.truncf %39 : vector<2x128x32xf32> to vector<2x128x32xbf16>
    %c0_36 = arith.constant 0 : index
    %c0_37 = arith.constant 0 : index
    %c0_38 = arith.constant 0 : index
    %41 = vector.load %arg6[%c0_36, %c0_37, %c0_38] : memref<2x128x32xbf16, #tpu.memory_space<vmem>>, vector<2x128x32xbf16>
    tpu.vector_store %arg6[%c0_36, %c0_37, %c0_38], %40 {strides = array<i32>} : memref<2x128x32xbf16, #tpu.memory_space<vmem>>, vector<2x128x32xbf16>,
    %42 = vector.shape_cast %39 : vector<2x128x32xf32> to vector<256x32xf32>
    %cst_39 = arith.constant dense<0.000000e+00> : vector<32xf32>
    %43 = vector.multi_reduction <add>, %42, %cst_39 [0] : vector<256x32xf32> to vector<32xf32>
    %44 = vector.shape_cast %43 : vector<32xf32> to vector<1x32xf32>
    %45 = vector.shape_cast %44 : vector<1x32xf32> to vector<1x1x32xf32>
    %c0_40 = arith.constant 0 : index
    %c0_41 = arith.constant 0 : index
    %c0_42 = arith.constant 0 : index
    %46 = vector.load %arg7[%c0_40, %c0_41, %c0_42] : memref<1x2x32xf32, #tpu.memory_space<vmem>>, vector<1x1x32xf32>
    tpu.vector_store %arg7[%c0_40, %c0_41, %c0_42], %45 {strides = array<i32>} : memref<1x2x32xf32, #tpu.memory_space<vmem>>, vector<1x1x32xf32>,
    %47 = arith.mulf %42, %42 : vector<256x32xf32>
    %cst_43 = arith.constant dense<0.000000e+00> : vector<32xf32>
    %48 = vector.multi_reduction <add>, %47, %cst_43 [0] : vector<256x32xf32> to vector<32xf32>
    %49 = vector.shape_cast %48 : vector<32xf32> to vector<1x32xf32>
    %50 = vector.shape_cast %49 : vector<1x32xf32> to vector<1x1x32xf32>
    %c0_44 = arith.constant 0 : index
    %c1_45 = arith.constant 1 : index
    %c0_46 = arith.constant 0 : index
    %51 = vector.load %arg7[%c0_44, %c1_45, %c0_46] : memref<1x2x32xf32, #tpu.memory_space<vmem>>, vector<1x1x32xf32>
    tpu.vector_store %arg7[%c0_44, %c1_45, %c0_46], %50 {strides = array<i32>} : memref<1x2x32xf32, #tpu.memory_space<vmem>>, vector<1x1x32xf32>,
    return
  }
  func.func @transform_0(%arg0: i32) -> (i32, i32, i32) {
    %c0_i32 = arith.constant 0 : i32
    %c0_i32_0 = arith.constant 0 : i32
    %c0_i32_1 = arith.constant 0 : i32
    return %arg0, %c0_i32, %c0_i32_0 : i32, i32, i32
  }
  func.func @transform_1(%arg0: i32) -> (i32, i32, i32) {
    %c0_i32 = arith.constant 0 : i32
    %c0_i32_0 = arith.constant 0 : i32
    %c0_i32_1 = arith.constant 0 : i32
    %c0_i32_2 = arith.constant 0 : i32
    return %c0_i32, %c0_i32_0, %c0_i32_1 : i32, i32, i32
  }
  func.func @transform_2(%arg0: i32) -> (i32, i32, i32) {
    %c0_i32 = arith.constant 0 : i32
    %c0_i32_0 = arith.constant 0 : i32
    %c0_i32_1 = arith.constant 0 : i32
    %c0_i32_2 = arith.constant 0 : i32
    return %c0_i32, %c0_i32_0, %c0_i32_1 : i32, i32, i32
  }
  func.func @transform_3(%arg0: i32) -> (i32, i32, i32) {
    %c0_i32 = arith.constant 0 : i32
    %c0_i32_0 = arith.constant 0 : i32
    %c0_i32_1 = arith.constant 0 : i32
    %c0_i32_2 = arith.constant 0 : i32
    return %c0_i32, %c0_i32_0, %c0_i32_1 : i32, i32, i32
  }
  func.func @transform_4(%arg0: i32) -> (i32, i32, i32) {
    %c0_i32 = arith.constant 0 : i32
    %c0_i32_0 = arith.constant 0 : i32
    %c0_i32_1 = arith.constant 0 : i32
    %c0_i32_2 = arith.constant 0 : i32
    return %c0_i32, %c0_i32_0, %c0_i32_1 : i32, i32, i32
  }
  func.func @transform_5(%arg0: i32) -> (i32, i32, i32) {
    %c0_i32 = arith.constant 0 : i32
    %c0_i32_0 = arith.constant 0 : i32
    %c0_i32_1 = arith.constant 0 : i32
    return %arg0, %c0_i32, %c0_i32_0 : i32, i32, i32
  }
  func.func @transform_6(%arg0: i32) -> (i32, i32, i32) {
    %c0_i32 = arith.constant 0 : i32
    %c0_i32_0 = arith.constant 0 : i32
    %c0_i32_1 = arith.constant 0 : i32
    return %arg0, %c0_i32, %c0_i32_0 : i32, i32, i32
  }
}

module attributes {stable_mosaic.version = 11 : i64} {
  func.func @bn_lrelu_tconv_kernel(%arg0: i32, %arg1: memref<2x128x32xbf16, #tpu.memory_space<vmem>>, %arg2: memref<1x1x32xf32, #tpu.memory_space<vmem>>, %arg3: memref<1x1x32xf32, #tpu.memory_space<vmem>>, %arg4: memref<3x32x32xbf16, #tpu.memory_space<vmem>>, %arg5: memref<1x1x32xf32, #tpu.memory_space<vmem>>, %arg6: memref<2x128x32xbf16, #tpu.memory_space<vmem>>, %arg7: memref<2x128x32xbf16, #tpu.memory_space<vmem>>, %arg8: memref<1x2x32xf32, #tpu.memory_space<vmem>>, %arg9: memref<2x160x32xf32, #tpu.memory_space<vmem>>) attributes {dimension_semantics = [#tpu.dimension_semantics<parallel>], iteration_bounds = array<i64: 2>, scalar_prefetch = 0 : i64, scratch_operands = 1 : i64, tpu.core_type = #tpu.core_type<tc>, window_params = [{transform_indices = @transform_0, window_bounds = array<i64: 2, 128, 32>}, {pipeline_mode = #tpu.pipeline_mode<synchronous>, transform_indices = @transform_1, window_bounds = array<i64: 1, 1, 32>}, {pipeline_mode = #tpu.pipeline_mode<synchronous>, transform_indices = @transform_2, window_bounds = array<i64: 1, 1, 32>}, {pipeline_mode = #tpu.pipeline_mode<synchronous>, transform_indices = @transform_3, window_bounds = array<i64: 3, 32, 32>}, {pipeline_mode = #tpu.pipeline_mode<synchronous>, transform_indices = @transform_4, window_bounds = array<i64: 1, 1, 32>}, {transform_indices = @transform_5, window_bounds = array<i64: 2, 128, 32>}, {transform_indices = @transform_6, window_bounds = array<i64: 2, 128, 32>}, {transform_indices = @transform_7, window_bounds = array<i64: 1, 2, 32>}]} {
    %c0 = arith.constant 0 : index
    %c0_0 = arith.constant 0 : index
    %c0_1 = arith.constant 0 : index
    %0 = vector.load %arg1[%c0, %c0_0, %c0_1] : memref<2x128x32xbf16, #tpu.memory_space<vmem>>, vector<2x128x32xbf16>
    %1 = arith.extf %0 : vector<2x128x32xbf16> to vector<2x128x32xf32>
    %c0_2 = arith.constant 0 : index
    %c0_3 = arith.constant 0 : index
    %c0_4 = arith.constant 0 : index
    %2 = vector.load %arg2[%c0_2, %c0_3, %c0_4] : memref<1x1x32xf32, #tpu.memory_space<vmem>>, vector<1x1x32xf32>
    %3 = vector.broadcast %2 : vector<1x1x32xf32> to vector<2x128x32xf32>
    %4 = arith.mulf %1, %3 : vector<2x128x32xf32>
    %c0_5 = arith.constant 0 : index
    %c0_6 = arith.constant 0 : index
    %c0_7 = arith.constant 0 : index
    %5 = vector.load %arg3[%c0_5, %c0_6, %c0_7] : memref<1x1x32xf32, #tpu.memory_space<vmem>>, vector<1x1x32xf32>
    %6 = vector.broadcast %5 : vector<1x1x32xf32> to vector<2x128x32xf32>
    %7 = arith.addf %4, %6 : vector<2x128x32xf32>
    %cst = arith.constant 0.000000e+00 : f32
    %8 = vector.broadcast %cst : f32 to vector<2x128x32xf32>
    %9 = arith.cmpf ogt, %7, %8 : vector<2x128x32xf32>
    %cst_8 = arith.constant 0.00999999977 : f32
    %10 = vector.broadcast %cst_8 : f32 to vector<2x128x32xf32>
    %11 = arith.mulf %10, %7 : vector<2x128x32xf32>
    %12 = arith.select %9, %7, %11 : vector<2x128x32xi1>, vector<2x128x32xf32>
    %cst_9 = arith.constant 0.000000e+00 : f32
    %13 = vector.broadcast %cst_9 : f32 to vector<2x160x32xf32>
    %c0_10 = arith.constant 0 : index
    %c0_11 = arith.constant 0 : index
    %c0_12 = arith.constant 0 : index
    %14 = vector.load %arg9[%c0_10, %c0_11, %c0_12] : memref<2x160x32xf32, #tpu.memory_space<vmem>>, vector<2x160x32xf32>
    tpu.vector_store %arg9[%c0_10, %c0_11, %c0_12], %13 {strides = array<i32>} : memref<2x160x32xf32, #tpu.memory_space<vmem>>, vector<2x160x32xf32>,
    %c0_13 = arith.constant 0 : index
    %c16 = arith.constant 16 : index
    %c0_14 = arith.constant 0 : index
    %15 = vector.load %arg9[%c0_13, %c16, %c0_14] : memref<2x160x32xf32, #tpu.memory_space<vmem>>, vector<2x128x32xf32>
    tpu.vector_store %arg9[%c0_13, %c16, %c0_14], %12 {strides = array<i32>} : memref<2x160x32xf32, #tpu.memory_space<vmem>>, vector<2x128x32xf32>,
    %c0_15 = arith.constant 0 : index
    %c0_16 = arith.constant 0 : index
    %c0_17 = arith.constant 0 : index
    %16 = vector.load %arg9[%c0_15, %c0_16, %c0_17] : memref<2x160x32xf32, #tpu.memory_space<vmem>>, vector<2x128x32xf32>
    %17 = vector.shape_cast %16 : vector<2x128x32xf32> to vector<256x32xf32>
    %18 = arith.truncf %17 : vector<256x32xf32> to vector<256x32xbf16>
    %c0_18 = arith.constant 0 : index
    %c0_19 = arith.constant 0 : index
    %c0_20 = arith.constant 0 : index
    %19 = vector.load %arg4[%c0_18, %c0_19, %c0_20] : memref<3x32x32xbf16, #tpu.memory_space<vmem>>, vector<1x32x32xbf16>
    %20 = vector.shape_cast %19 : vector<1x32x32xbf16> to vector<32x32xbf16>
    %cst_21 = arith.constant dense<0.000000e+00> : vector<256x32xf32>
    %21 = tpu.matmul %18, %20, %cst_21 {dimension_numbers = #tpu.dot_dimension_numbers<[1], [0], [0], [1], [0, 0, 1, 1], [], []>} : vector<256x32xbf16>, vector<32x32xbf16>, vector<256x32xf32> -> vector<256x32xf32>
    %c0_22 = arith.constant 0 : index
    %c16_23 = arith.constant 16 : index
    %c0_24 = arith.constant 0 : index
    %22 = vector.load %arg9[%c0_22, %c16_23, %c0_24] : memref<2x160x32xf32, #tpu.memory_space<vmem>>, vector<2x128x32xf32>
    %23 = vector.shape_cast %22 : vector<2x128x32xf32> to vector<256x32xf32>
    %24 = arith.truncf %23 : vector<256x32xf32> to vector<256x32xbf16>
    %c1 = arith.constant 1 : index
    %c0_25 = arith.constant 0 : index
    %c0_26 = arith.constant 0 : index
    %25 = vector.load %arg4[%c1, %c0_25, %c0_26] : memref<3x32x32xbf16, #tpu.memory_space<vmem>>, vector<1x32x32xbf16>
    %26 = vector.shape_cast %25 : vector<1x32x32xbf16> to vector<32x32xbf16>
    %cst_27 = arith.constant dense<0.000000e+00> : vector<256x32xf32>
    %27 = tpu.matmul %24, %26, %cst_27 {dimension_numbers = #tpu.dot_dimension_numbers<[1], [0], [0], [1], [0, 0, 1, 1], [], []>} : vector<256x32xbf16>, vector<32x32xbf16>, vector<256x32xf32> -> vector<256x32xf32>
    %28 = arith.addf %21, %27 : vector<256x32xf32>
    %c0_28 = arith.constant 0 : index
    %c32 = arith.constant 32 : index
    %c0_29 = arith.constant 0 : index
    %29 = vector.load %arg9[%c0_28, %c32, %c0_29] : memref<2x160x32xf32, #tpu.memory_space<vmem>>, vector<2x128x32xf32>
    %30 = vector.shape_cast %29 : vector<2x128x32xf32> to vector<256x32xf32>
    %31 = arith.truncf %30 : vector<256x32xf32> to vector<256x32xbf16>
    %c2 = arith.constant 2 : index
    %c0_30 = arith.constant 0 : index
    %c0_31 = arith.constant 0 : index
    %32 = vector.load %arg4[%c2, %c0_30, %c0_31] : memref<3x32x32xbf16, #tpu.memory_space<vmem>>, vector<1x32x32xbf16>
    %33 = vector.shape_cast %32 : vector<1x32x32xbf16> to vector<32x32xbf16>
    %cst_32 = arith.constant dense<0.000000e+00> : vector<256x32xf32>
    %34 = tpu.matmul %31, %33, %cst_32 {dimension_numbers = #tpu.dot_dimension_numbers<[1], [0], [0], [1], [0, 0, 1, 1], [], []>} : vector<256x32xbf16>, vector<32x32xbf16>, vector<256x32xf32> -> vector<256x32xf32>
    %35 = arith.addf %28, %34 : vector<256x32xf32>
    %36 = vector.shape_cast %35 : vector<256x32xf32> to vector<2x128x32xf32>
    %c0_33 = arith.constant 0 : index
    %c0_34 = arith.constant 0 : index
    %c0_35 = arith.constant 0 : index
    %37 = vector.load %arg5[%c0_33, %c0_34, %c0_35] : memref<1x1x32xf32, #tpu.memory_space<vmem>>, vector<1x1x32xf32>
    %38 = vector.broadcast %37 : vector<1x1x32xf32> to vector<2x128x32xf32>
    %39 = arith.addf %36, %38 : vector<2x128x32xf32>
    %c0_36 = arith.constant 0 : index
    %c0_37 = arith.constant 0 : index
    %c0_38 = arith.constant 0 : index
    %40 = vector.load %arg6[%c0_36, %c0_37, %c0_38] : memref<2x128x32xbf16, #tpu.memory_space<vmem>>, vector<2x128x32xbf16>
    %41 = arith.extf %40 : vector<2x128x32xbf16> to vector<2x128x32xf32>
    %42 = arith.addf %39, %41 : vector<2x128x32xf32>
    %43 = arith.truncf %42 : vector<2x128x32xf32> to vector<2x128x32xbf16>
    %c0_39 = arith.constant 0 : index
    %c0_40 = arith.constant 0 : index
    %c0_41 = arith.constant 0 : index
    %44 = vector.load %arg7[%c0_39, %c0_40, %c0_41] : memref<2x128x32xbf16, #tpu.memory_space<vmem>>, vector<2x128x32xbf16>
    tpu.vector_store %arg7[%c0_39, %c0_40, %c0_41], %43 {strides = array<i32>} : memref<2x128x32xbf16, #tpu.memory_space<vmem>>, vector<2x128x32xbf16>,
    %45 = vector.shape_cast %42 : vector<2x128x32xf32> to vector<256x32xf32>
    %cst_42 = arith.constant dense<0.000000e+00> : vector<32xf32>
    %46 = vector.multi_reduction <add>, %45, %cst_42 [0] : vector<256x32xf32> to vector<32xf32>
    %47 = vector.shape_cast %46 : vector<32xf32> to vector<1x32xf32>
    %48 = vector.shape_cast %47 : vector<1x32xf32> to vector<1x1x32xf32>
    %c0_43 = arith.constant 0 : index
    %c0_44 = arith.constant 0 : index
    %c0_45 = arith.constant 0 : index
    %49 = vector.load %arg8[%c0_43, %c0_44, %c0_45] : memref<1x2x32xf32, #tpu.memory_space<vmem>>, vector<1x1x32xf32>
    tpu.vector_store %arg8[%c0_43, %c0_44, %c0_45], %48 {strides = array<i32>} : memref<1x2x32xf32, #tpu.memory_space<vmem>>, vector<1x1x32xf32>,
    %50 = arith.mulf %45, %45 : vector<256x32xf32>
    %cst_46 = arith.constant dense<0.000000e+00> : vector<32xf32>
    %51 = vector.multi_reduction <add>, %50, %cst_46 [0] : vector<256x32xf32> to vector<32xf32>
    %52 = vector.shape_cast %51 : vector<32xf32> to vector<1x32xf32>
    %53 = vector.shape_cast %52 : vector<1x32xf32> to vector<1x1x32xf32>
    %c0_47 = arith.constant 0 : index
    %c1_48 = arith.constant 1 : index
    %c0_49 = arith.constant 0 : index
    %54 = vector.load %arg8[%c0_47, %c1_48, %c0_49] : memref<1x2x32xf32, #tpu.memory_space<vmem>>, vector<1x1x32xf32>
    tpu.vector_store %arg8[%c0_47, %c1_48, %c0_49], %53 {strides = array<i32>} : memref<1x2x32xf32, #tpu.memory_space<vmem>>, vector<1x1x32xf32>,
    return
  }
  func.func @transform_0(%arg0: i32) -> (i32, i32, i32) {
    %c0_i32 = arith.constant 0 : i32
    %c0_i32_0 = arith.constant 0 : i32
    %c0_i32_1 = arith.constant 0 : i32
    return %arg0, %c0_i32, %c0_i32_0 : i32, i32, i32
  }
  func.func @transform_1(%arg0: i32) -> (i32, i32, i32) {
    %c0_i32 = arith.constant 0 : i32
    %c0_i32_0 = arith.constant 0 : i32
    %c0_i32_1 = arith.constant 0 : i32
    %c0_i32_2 = arith.constant 0 : i32
    return %c0_i32, %c0_i32_0, %c0_i32_1 : i32, i32, i32
  }
  func.func @transform_2(%arg0: i32) -> (i32, i32, i32) {
    %c0_i32 = arith.constant 0 : i32
    %c0_i32_0 = arith.constant 0 : i32
    %c0_i32_1 = arith.constant 0 : i32
    %c0_i32_2 = arith.constant 0 : i32
    return %c0_i32, %c0_i32_0, %c0_i32_1 : i32, i32, i32
  }
  func.func @transform_3(%arg0: i32) -> (i32, i32, i32) {
    %c0_i32 = arith.constant 0 : i32
    %c0_i32_0 = arith.constant 0 : i32
    %c0_i32_1 = arith.constant 0 : i32
    %c0_i32_2 = arith.constant 0 : i32
    return %c0_i32, %c0_i32_0, %c0_i32_1 : i32, i32, i32
  }
  func.func @transform_4(%arg0: i32) -> (i32, i32, i32) {
    %c0_i32 = arith.constant 0 : i32
    %c0_i32_0 = arith.constant 0 : i32
    %c0_i32_1 = arith.constant 0 : i32
    %c0_i32_2 = arith.constant 0 : i32
    return %c0_i32, %c0_i32_0, %c0_i32_1 : i32, i32, i32
  }
  func.func @transform_5(%arg0: i32) -> (i32, i32, i32) {
    %c0_i32 = arith.constant 0 : i32
    %c0_i32_0 = arith.constant 0 : i32
    %c0_i32_1 = arith.constant 0 : i32
    return %arg0, %c0_i32, %c0_i32_0 : i32, i32, i32
  }
  func.func @transform_6(%arg0: i32) -> (i32, i32, i32) {
    %c0_i32 = arith.constant 0 : i32
    %c0_i32_0 = arith.constant 0 : i32
    %c0_i32_1 = arith.constant 0 : i32
    return %arg0, %c0_i32, %c0_i32_0 : i32, i32, i32
  }
  func.func @transform_7(%arg0: i32) -> (i32, i32, i32) {
    %c0_i32 = arith.constant 0 : i32
    %c0_i32_0 = arith.constant 0 : i32
    %c0_i32_1 = arith.constant 0 : i32
    return %arg0, %c0_i32, %c0_i32_0 : i32, i32, i32
  }
}

module attributes {stable_mosaic.version = 11 : i64} {
  func.func @bn_lrelu_kernel(%arg0: i32, %arg1: memref<16x512xbf16, #tpu.memory_space<vmem>>, %arg2: memref<1x512xf32, #tpu.memory_space<vmem>>, %arg3: memref<1x512xf32, #tpu.memory_space<vmem>>, %arg4: memref<16x512xf32, #tpu.memory_space<vmem>>) attributes {dimension_semantics = [#tpu.dimension_semantics<parallel>], iteration_bounds = array<i64: 2>, scalar_prefetch = 0 : i64, scratch_operands = 0 : i64, tpu.core_type = #tpu.core_type<tc>, window_params = [{transform_indices = @transform_0, window_bounds = array<i64: 16, 512>}, {pipeline_mode = #tpu.pipeline_mode<synchronous>, transform_indices = @transform_1, window_bounds = array<i64: 1, 512>}, {pipeline_mode = #tpu.pipeline_mode<synchronous>, transform_indices = @transform_2, window_bounds = array<i64: 1, 512>}, {transform_indices = @transform_3, window_bounds = array<i64: 16, 512>}]} {
    %c0 = arith.constant 0 : index
    %c0_0 = arith.constant 0 : index
    %0 = vector.load %arg1[%c0, %c0_0] : memref<16x512xbf16, #tpu.memory_space<vmem>>, vector<16x512xbf16>
    %1 = arith.extf %0 : vector<16x512xbf16> to vector<16x512xf32>
    %c0_1 = arith.constant 0 : index
    %c0_2 = arith.constant 0 : index
    %2 = vector.load %arg2[%c0_1, %c0_2] : memref<1x512xf32, #tpu.memory_space<vmem>>, vector<1x512xf32>
    %3 = vector.broadcast %2 : vector<1x512xf32> to vector<16x512xf32>
    %4 = arith.mulf %1, %3 : vector<16x512xf32>
    %c0_3 = arith.constant 0 : index
    %c0_4 = arith.constant 0 : index
    %5 = vector.load %arg3[%c0_3, %c0_4] : memref<1x512xf32, #tpu.memory_space<vmem>>, vector<1x512xf32>
    %6 = vector.broadcast %5 : vector<1x512xf32> to vector<16x512xf32>
    %7 = arith.addf %4, %6 : vector<16x512xf32>
    %cst = arith.constant 0.000000e+00 : f32
    %8 = vector.broadcast %cst : f32 to vector<16x512xf32>
    %9 = arith.cmpf ogt, %7, %8 : vector<16x512xf32>
    %cst_5 = arith.constant 0.00999999977 : f32
    %10 = vector.broadcast %cst_5 : f32 to vector<16x512xf32>
    %11 = arith.mulf %10, %7 : vector<16x512xf32>
    %12 = arith.select %9, %7, %11 : vector<16x512xi1>, vector<16x512xf32>
    %c0_6 = arith.constant 0 : index
    %c0_7 = arith.constant 0 : index
    %13 = vector.load %arg4[%c0_6, %c0_7] : memref<16x512xf32, #tpu.memory_space<vmem>>, vector<16x512xf32>
    tpu.vector_store %arg4[%c0_6, %c0_7], %12 {strides = array<i32>} : memref<16x512xf32, #tpu.memory_space<vmem>>, vector<16x512xf32>,
    return
  }
  func.func @transform_0(%arg0: i32) -> (i32, i32) {
    %c0_i32 = arith.constant 0 : i32
    %c0_i32_0 = arith.constant 0 : i32
    return %arg0, %c0_i32 : i32, i32
  }
  func.func @transform_1(%arg0: i32) -> (i32, i32) {
    %c0_i32 = arith.constant 0 : i32
    %c0_i32_0 = arith.constant 0 : i32
    %c0_i32_1 = arith.constant 0 : i32
    return %c0_i32, %c0_i32_0 : i32, i32
  }
  func.func @transform_2(%arg0: i32) -> (i32, i32) {
    %c0_i32 = arith.constant 0 : i32
    %c0_i32_0 = arith.constant 0 : i32
    %c0_i32_1 = arith.constant 0 : i32
    return %c0_i32, %c0_i32_0 : i32, i32
  }
  func.func @transform_3(%arg0: i32) -> (i32, i32) {
    %c0_i32 = arith.constant 0 : i32
    %c0_i32_0 = arith.constant 0 : i32
    return %arg0, %c0_i32 : i32, i32
  }
}

</mosaic_0001>

<llo_original>
// kernel: tile.16
$region0: #{tile.16}
  #allocation0 [shape = 's32[1]{0}', space=sflag, size = 0x4, scoped, tag = 'scoped memory for tile.16']
  %s0 = inlined_call_operand.vmem [shape: f32[32], index: 0, kind: input, shape index: {}]
  %s1 = inlined_call_operand.vmem [shape: f32[16,32], index: 1, kind: output, shape index: {}]
  // Predicated region
  $region2: #{tile.16} parent=0 // pred_check
    _
  $region3: #{tile.16} parent=0 // pred_check_branch
    %3 = sbr.rel (0) target = $region5
  $region4: #{tile.16} parent=0 // pred_region
    _
  $region5: #{tile.16} parent=0 // pred_fallthru
    _
  %v4 = vld [vmem:[%s0] ss:$0 sm:$0xff]
  %5 = vst [vmem:[%s1] sm:$0xff] %v4
  %s6 = scalar_lea.vmem %s1, 8
  %7 = vst [vmem:[%s6] sm:$0xff] %v4

// kernel: st_gcn_forward.4
$region0: #{st_gcn_forward.4}
  #allocation0 [shape = 'u32[]', space=smem, size = 0x4, offset = 0x4, fixed_abs, tag = 'smem constant byte address 0x4 - core index']
  #allocation1 [shape = 'u32[144,128]{1,0:T(1,128)}', space=vmem, size = 0x12000, scoped, tag = 'internal scratch']
  %s0 = inlined_call_operand.hbm [shape: bf16[32,64], index: 0, kind: input, shape index: {}]
  %s1 = inlined_call_operand.hbm [shape: bf16[64,1024], index: 1, kind: input, shape index: {}]
  %s2 = inlined_call_operand.hbm [shape: f32[1,1024], index: 2, kind: input, shape index: {}]
  %s3 = inlined_call_operand.hbm [shape: bf16[32,512], index: 3, kind: output, shape index: {0}]
  %s4 = inlined_call_operand.hbm [shape: bf16[32,512], index: 4, kind: output, shape index: {1}]
  %s5 = inlined_call_operand.hbm [shape: f32[2,2,512], index: 5, kind: output, shape index: {2}]
  %6 = xla_tuple %s3, %s4, %s5
  %s7 = sld [smem:[#allocation0]]
  $region73: #{st_gcn_forward.4} parent=0
    _
  %s9 = ssub.s32 1, %s7
  %s10 = scalar_select 0, %s9, %s7
  $region1: #{st_gcn_forward.4} parent=0
    #allocation2 [shape = 'u8[8192]{0}', space=vmem, size = 0x2000, scoped, tag = 'input window, operand 0']
    #allocation3 [shape = 's32[2]{0}', space=sflag, size = 0x8, scoped, tag = 'scoped memory for st_gcn_forward.4']
    #allocation4 [shape = 's32[2]{0}', space=sflag, size = 0x8, scoped, tag = 'scoped memory for st_gcn_forward.4']
    #allocation5 [shape = 'u8[131072]{0}', space=vmem, size = 0x20000, scoped, tag = 'input window, operand 1, single buffered']
    #allocation6 [shape = 's32[1]{0}', space=sflag, size = 0x4, scoped, tag = 'scoped memory for st_gcn_forward.4']
    #allocation7 [shape = 'u8[4096]{0}', space=vmem, size = 0x1000, scoped, tag = 'input window, operand 2, single buffered']
    #allocation8 [shape = 'u8[32768]{0}', space=vmem, size = 0x8000, scoped, tag = 'output window, operand 0']
    #allocation9 [shape = 'u8[32768]{0}', space=vmem, size = 0x8000, scoped, tag = 'output window, operand 1']
    #allocation10 [shape = 's32[2]{0}', space=sflag, size = 0x8, scoped, tag = 'scoped memory for st_gcn_forward.4']
    #allocation11 [shape = 'u8[8192]{0}', space=vmem, size = 0x2000, scoped, tag = 'output window, operand 2']
    %11 = vsyncpa [#allocation3], 0
    %s12 = scalar_lea.sflag [#allocation3], 1
    %13 = vsyncpa %s12, 0
    %14 = vsyncpa [#allocation6], 0
    %15 = vsyncpa [#allocation4], 0
    %s16 = scalar_lea.sflag [#allocation4], 1
    %17 = vsyncpa %s16, 0
    %18 = vsyncpa [#allocation10], 0
    %s19 = scalar_lea.sflag [#allocation10], 1
    %20 = vsyncpa %s19, 0
    loop: start=0, step=1, limit=4
    $region2: #{st_gcn_forward.4} parent=1 // loop_pre_header
      _
    $region3: #{st_gcn_forward.4} parent=1 // loop_header
      %s22 = sphi 0, %s26
      %p23 = scmp.ge.s32.totalorder %s22, 4
      %s32 = sphi 0, %s34
      %s35 = sphi 0, %s32
      %s36 = sphi 0, %s35
      %s52 = sphi 0, %s36
      %s56 = sphi 0, %s56
      %s58 = sphi 0, %s56
      %s59 = sphi 0, %s58
      %s73 = sphi 0, %s59
      %s77 = sphi 0, %s77
      %s79 = sphi 0, %s77
      %s80 = sphi 0, %s79
      %s94 = sphi 0, %s80
      %s100 = sphi 0, %s102
      %s103 = sphi 0, %s100
      %s104 = sphi 0, %s103
      %s120 = sphi 0, %s104
      %s126 = sphi 0, %s128
      %s129 = sphi 0, %s126
      %s130 = sphi 0, %s129
      %s146 = sphi 0, %s130
      %s152 = sphi 0, %s154
      %s155 = sphi 0, %s152
      %s156 = sphi 0, %s155
      %s172 = sphi 0, %s156
    $region4: #{st_gcn_forward.4} parent=1 // loop_header_branch
      %25 = sbr.rel (%p23) target = $region8
    $region5: #{st_gcn_forward.4} parent=1 // loop_body
      %s27 = ssub.s32 %s22, 1
      %s28 = ssub.s32 %s22, 2
      %s29 = sadd.s32 %s22, 1
      %s30 = ssub.s32 %s22, %s29
      %p31 = scmp.eq.s32.totalorder %s30, 0
      %s33 = sadd.s32 %s32, 1
      %s34 = scalar_select %p31, %s32, %s33
      %p37 = pneg %p31
      %p38 = scmp.eq.s32.totalorder %s22, 1
      %p39 = por %p37, %p38
      %p40 = scmp.ne.s32.totalorder %s32, %s35
      %p41 = scmp.eq.s32.totalorder %s22, 0
      %p42 = por %p40, %p41
      %p43 = scmp.ne.s32.totalorder %s32, %s35
      %p44 = scmp.eq.s32.totalorder %s27, 1
      %p45 = por %p43, %p44
      %p46 = scmp.ne.s32.totalorder %s35, %s36
      %p47 = scmp.eq.s32.totalorder %s27, 0
      %p48 = por %p46, %p47
      %p49 = scmp.ne.s32.totalorder %s35, %s36
      %p50 = scmp.eq.s32.totalorder %s28, 1
      %p51 = por %p49, %p50
      %p53 = scmp.ne.s32.totalorder %s36, %s52
      %p54 = scmp.eq.s32.totalorder %s28, 0
      %p55 = por %p53, %p54
      %s57 = sadd.s32 %s56, 1
      %p60 = scmp.eq.s32.totalorder %s22, 1
      %p61 = scmp.ne.s32.totalorder %s56, %s58
      %p62 = scmp.eq.s32.totalorder %s22, 0
      %p63 = por %p61, %p62
      %p64 = scmp.ne.s32.totalorder %s56, %s58
      %p65 = scmp.eq.s32.totalorder %s27, 1
      %p66 = por %p64, %p65
      %p67 = scmp.ne.s32.totalorder %s58, %s59
      %p68 = scmp.eq.s32.totalorder %s27, 0
      %p69 = por %p67, %p68
      %p70 = scmp.ne.s32.totalorder %s58, %s59
      %p71 = scmp.eq.s32.totalorder %s28, 1
      %p72 = por %p70, %p71
      %p74 = scmp.ne.s32.totalorder %s59, %s73
      %p75 = scmp.eq.s32.totalorder %s28, 0
      %p76 = por %p74, %p75
      %s78 = sadd.s32 %s77, 1
      %p81 = scmp.eq.s32.totalorder %s22, 1
      %p82 = scmp.ne.s32.totalorder %s77, %s79
      %p83 = scmp.eq.s32.totalorder %s22, 0
      %p84 = por %p82, %p83
      %p85 = scmp.ne.s32.totalorder %s77, %s79
      %p86 = scmp.eq.s32.totalorder %s27, 1
      %p87 = por %p85, %p86
      %p88 = scmp.ne.s32.totalorder %s79, %s80
      %p89 = scmp.eq.s32.totalorder %s27, 0
      %p90 = por %p88, %p89
      %p91 = scmp.ne.s32.totalorder %s79, %s80
      %p92 = scmp.eq.s32.totalorder %s28, 1
      %p93 = por %p91, %p92
      %p95 = scmp.ne.s32.totalorder %s80, %s94
      %p96 = scmp.eq.s32.totalorder %s28, 0
      %p97 = por %p95, %p96
      %s98 = ssub.s32 %s22, %s29
      %p99 = scmp.eq.s32.totalorder %s98, 0
      %s101 = sadd.s32 %s100, 1
      %s102 = scalar_select %p99, %s100, %s101
      %p105 = pneg %p99
      %p106 = scmp.eq.s32.totalorder %s22, 1
      %p107 = por %p105, %p106
      %p108 = scmp.ne.s32.totalorder %s100, %s103
      %p109 = scmp.eq.s32.totalorder %s22, 0
      %p110 = por %p108, %p109
      %p111 = scmp.ne.s32.totalorder %s100, %s103
      %p112 = scmp.eq.s32.totalorder %s27, 1
      %p113 = por %p111, %p112
      %p114 = scmp.ne.s32.totalorder %s103, %s104
      %p115 = scmp.eq.s32.totalorder %s27, 0
      %p116 = por %p114, %p115
      %p117 = scmp.ne.s32.totalorder %s103, %s104
      %p118 = scmp.eq.s32.totalorder %s28, 1
      %p119 = por %p117, %p118
      %p121 = scmp.ne.s32.totalorder %s104, %s120
      %p122 = scmp.eq.s32.totalorder %s28, 0
      %p123 = por %p121, %p122
      %s124 = ssub.s32 %s22, %s29
      %p125 = scmp.eq.s32.totalorder %s124, 0
      %s127 = sadd.s32 %s126, 1
      %s128 = scalar_select %p125, %s126, %s127
      %p131 = pneg %p125
      %p132 = scmp.eq.s32.totalorder %s22, 1
      %p133 = por %p131, %p132
      %p134 = scmp.ne.s32.totalorder %s126, %s129
      %p135 = scmp.eq.s32.totalorder %s22, 0
      %p136 = por %p134, %p135
      %p137 = scmp.ne.s32.totalorder %s126, %s129
      %p138 = scmp.eq.s32.totalorder %s27, 1
      %p139 = por %p137, %p138
      %p140 = scmp.ne.s32.totalorder %s129, %s130
      %p141 = scmp.eq.s32.totalorder %s27, 0
      %p142 = por %p140, %p141
      %p143 = scmp.ne.s32.totalorder %s129, %s130
      %p144 = scmp.eq.s32.totalorder %s28, 1
      %p145 = por %p143, %p144
      %p147 = scmp.ne.s32.totalorder %s130, %s146
      %p148 = scmp.eq.s32.totalorder %s28, 0
      %p149 = por %p147, %p148
      %s150 = ssub.s32 %s22, %s29
      %p151 = scmp.eq.s32.totalorder %s150, 0
      %s153 = sadd.s32 %s152, 1
      %s154 = scalar_select %p151, %s152, %s153
      %p157 = pneg %p151
      %p158 = scmp.eq.s32.totalorder %s22, 1
      %p159 = por %p157, %p158
      %p160 = scmp.ne.s32.totalorder %s152, %s155
      %p161 = scmp.eq.s32.totalorder %s22, 0
      %p162 = por %p160, %p161
      %p163 = scmp.ne.s32.totalorder %s152, %s155
      %p164 = scmp.eq.s32.totalorder %s27, 1
      %p165 = por %p163, %p164
      %p166 = scmp.ne.s32.totalorder %s155, %s156
      %p167 = scmp.eq.s32.totalorder %s27, 0
      %p168 = por %p166, %p167
      %p169 = scmp.ne.s32.totalorder %s155, %s156
      %p170 = scmp.eq.s32.totalorder %s28, 1
      %p171 = por %p169, %p170
      %p173 = scmp.ne.s32.totalorder %s156, %s172
      %p174 = scmp.eq.s32.totalorder %s28, 0
      %p175 = por %p173, %p174
      %p176 = scmp.le.s32.totalorder 1, %s22
      %p177 = scmp.lt.s32.totalorder %s22, 3
      %p178 = pnand %p176, %p177
      %p179 = pneg %p178
      // Predicated region
      $region9: #{st_gcn_forward.4} parent=5 // pred_check
        _
      $region10: #{st_gcn_forward.4} parent=5 // pred_check_branch
        %181 = sbr.rel (%p178) target = $region12
      $region11: #{st_gcn_forward.4} parent=5 // pred_region
        %s182 = ssub.s32 %s22, 1
        // Predicated region
        $region13: #{st_gcn_forward.4} parent=11 // pred_check
          %p183 = pneg %p69
        $region14: #{st_gcn_forward.4} parent=11 // pred_check_branch
          %185 = sbr.rel (%p183) target = $region16
        $region15: #{st_gcn_forward.4} parent=11 // pred_region
          %s187 = ssub.s32 4096, 4096
          %188 = vsyncadd [#allocation6], %s187
          %s189 = sshll.u32 [#allocation5], 4
          %s190 = int_to_ptr.vmem [resolvable:$true] %s189
          %195 = dma.hbm_to_vmem [thread:$0]  %s1, 4096, %s190, [#allocation6], 512, 512, 32
        $region16: #{st_gcn_forward.4} parent=11 // pred_fallthru
          _
        // Predicated region
        $region17: #{st_gcn_forward.4} parent=11 // pred_check
          %p196 = pneg %p90
        $region18: #{st_gcn_forward.4} parent=11 // pred_check_branch
          %198 = sbr.rel (%p196) target = $region20
        $region19: #{st_gcn_forward.4} parent=11 // pred_region
          %s200 = ssub.s32 128, 128
          %201 = vsyncadd [#allocation6], %s200
          %s203 = sshll.u32 [#allocation7], 4
          %s204 = int_to_ptr.vmem [resolvable:$true] %s203
          %206 = dma.hbm_to_vmem [thread:$0]  %s2, 128, %s204, [#allocation6]
        $region20: #{st_gcn_forward.4} parent=11 // pred_fallthru
          _
      $region12: #{st_gcn_forward.4} parent=5 // pred_fallthru
        _
      %p207 = scmp.lt.s32.totalorder %s22, 2
      // Predicated region
      $region21: #{st_gcn_forward.4} parent=5 // pred_check
        %p208 = pneg %p207
      $region22: #{st_gcn_forward.4} parent=5 // pred_check_branch
        %210 = sbr.rel (%p208) target = $region24
      $region23: #{st_gcn_forward.4} parent=5 // pred_region
        // Predicated region
        $region25: #{st_gcn_forward.4} parent=23 // pred_check
          %p211 = pneg %p42
        $region26: #{st_gcn_forward.4} parent=23 // pred_check_branch
          %213 = sbr.rel (%p211) target = $region28
        $region27: #{st_gcn_forward.4} parent=23 // pred_region
          %s214 = sand.u32 %s32, 1
          %s215 = scalar_lea.sflag [#allocation3], %s214
          %s216 = sand.u32 %s32, 1
          %s217 = smul.addr %s216, 8
          %s218 = scalar_lea.vmem [#allocation2], %s217
          %s219 = smul.u32 2, %s22
          %s221 = ssub.s32 128, 128
          %222 = vsyncadd %s215, %s221
          %s223 = smul.addr %s219, 64
          %s224 = scalar_lea.hbm %s0, %s223
          %s225 = sshll.u32 %s218, 4
          %s226 = int_to_ptr.vmem [resolvable:$true] %s225
          %231 = dma.hbm_to_vmem [thread:$0]  %s224, 128, %s226, %s215, 64, 64, 4
        $region28: #{st_gcn_forward.4} parent=23 // pred_fallthru
          _
      $region24: #{st_gcn_forward.4} parent=5 // pred_fallthru
        _
      %p232 = scmp.le.s32.totalorder 1, %s22
      %p233 = scmp.lt.s32.totalorder %s22, 3
      %p234 = pnand %p232, %p233
      %p235 = pneg %p234
      // Predicated region
      $region29: #{st_gcn_forward.4} parent=5 // pred_check
        _
      $region30: #{st_gcn_forward.4} parent=5 // pred_check_branch
        %237 = sbr.rel (%p234) target = $region32
      $region31: #{st_gcn_forward.4} parent=5 // pred_region
        %s238 = ssub.s32 %s22, 1
        %s239 = sand.u32 %s35, 1
        %s240 = scalar_lea.sflag [#allocation3], %s239
        %s241 = sand.u32 %s35, 1
        %s242 = smul.addr %s241, 8
        %s243 = scalar_lea.vmem [#allocation2], %s242
        // Predicated region
        $region33: #{st_gcn_forward.4} parent=31 // pred_check
          %p244 = pneg %p48
        $region34: #{st_gcn_forward.4} parent=31 // pred_check_branch
          %246 = sbr.rel (%p244) target = $region36
        $region35: #{st_gcn_forward.4} parent=31 // pred_region
          %247 = dma.done %s240, 128
        $region36: #{st_gcn_forward.4} parent=31 // pred_fallthru
          _
        // Predicated region
        $region37: #{st_gcn_forward.4} parent=31 // pred_check
          %p248 = pneg %p69
        $region38: #{st_gcn_forward.4} parent=31 // pred_check_branch
          %250 = sbr.rel (%p248) target = $region40
        $region39: #{st_gcn_forward.4} parent=31 // pred_region
          %251 = dma.done [#allocation6], 4096
        $region40: #{st_gcn_forward.4} parent=31 // pred_fallthru
          _
        // Predicated region
        $region41: #{st_gcn_forward.4} parent=31 // pred_check
          %p252 = pneg %p90
        $region42: #{st_gcn_forward.4} parent=31 // pred_check_branch
          %254 = sbr.rel (%p252) target = $region44
        $region43: #{st_gcn_forward.4} parent=31 // pred_region
          %255 = dma.done [#allocation6], 128
        $region44: #{st_gcn_forward.4} parent=31 // pred_fallthru
          _
        %s256 = sand.u32 %s35, 1
        %s257 = scalar_lea.sflag [#allocation3], %s256
        %s258 = sand.u32 %s35, 1
        %s259 = smul.addr %s258, 8
        %s260 = scalar_lea.vmem [#allocation2], %s259
        %p261 = pneg %p48
        %p262 = pneg %p45
        %p263 = pneg %p69
        %p264 = pneg %p66
        %p265 = pneg %p90
        %p266 = pneg %p87
        %p267 = pneg %p116
        %p268 = pneg %p113
        %s269 = sand.u32 %s103, 1
        %s270 = scalar_lea.sflag [#allocation4], %s269
        %s271 = sand.u32 %s103, 1
        %s272 = smul.addr %s271, 32
        %s273 = scalar_lea.vmem [#allocation8], %s272
        %p274 = pneg %p142
        %p275 = pneg %p139
        %s276 = sand.u32 %s27, 1
        %s277 = scalar_lea.sflag [#allocation10], %s276
        %s278 = sand.u32 %s129, 1
        %s279 = smul.addr %s278, 32
        %s280 = scalar_lea.vmem [#allocation9], %s279
        %p281 = pneg %p168
        %p282 = pneg %p165
        %s283 = sand.u32 %s27, 1
        %s284 = scalar_lea.sflag [#allocation10], %s283
        %s285 = sand.u32 %s155, 1
        %s286 = smul.addr %s285, 8
        %s287 = scalar_lea.vmem [#allocation11], %s286
        %s288 = smul.u32 2, %s27
        %s289 = smul.u32 2, %s27
        %s290 = smul.u32 2, %s27
        %v292 = vld [vmem:[%s243] sm:$0xf]
        %v293 = vld [vmem:[%s243 + $0x4] sm:$0xf]
        %v294 = vld [vmem:[#allocation5] sm:$0xff]
        %v295 = vld [vmem:[#allocation5 + $0x8] sm:$0xff]
        %v296 = vld [vmem:[#allocation5 + $0x10] sm:$0xff]
        %v297 = vld [vmem:[#allocation5 + $0x18] sm:$0xff]
        %v298 = vld [vmem:[#allocation5 + $0x20] sm:$0xff]
        %v299 = vld [vmem:[#allocation5 + $0x28] sm:$0xff]
        %v300 = vld [vmem:[#allocation5 + $0x30] sm:$0xff]
        %v301 = vld [vmem:[#allocation5 + $0x38] sm:$0xff]
        %v302 = vld [vmem:[#allocation5 + $0x40] sm:$0xff]
        %v303 = vld [vmem:[#allocation5 + $0x48] sm:$0xff]
        %v304 = vld [vmem:[#allocation5 + $0x50] sm:$0xff]
        %v305 = vld [vmem:[#allocation5 + $0x58] sm:$0xff]
        %v306 = vld [vmem:[#allocation5 + $0x60] sm:$0xff]
        %v307 = vld [vmem:[#allocation5 + $0x68] sm:$0xff]
        %v308 = vld [vmem:[#allocation5 + $0x70] sm:$0xff]
        %v309 = vld [vmem:[#allocation5 + $0x78] sm:$0xff]
        %v310 = vld [vmem:[#allocation5 + $0x80] sm:$0xff]
        %v311 = vld [vmem:[#allocation5 + $0x88] sm:$0xff]
        %v312 = vld [vmem:[#allocation5 + $0x90] sm:$0xff]
        %v313 = vld [vmem:[#allocation5 + $0x98] sm:$0xff]
        %v314 = vld [vmem:[#allocation5 + $0xa0] sm:$0xff]
        %v315 = vld [vmem:[#allocation5 + $0xa8] sm:$0xff]
        %v316 = vld [vmem:[#allocation5 + $0xb0] sm:$0xff]
        %v317 = vld [vmem:[#allocation5 + $0xb8] sm:$0xff]
        %v318 = vld [vmem:[#allocation5 + $0xc0] sm:$0xff]
        %v319 = vld [vmem:[#allocation5 + $0xc8] sm:$0xff]
        %v320 = vld [vmem:[#allocation5 + $0xd0] sm:$0xff]
        %v321 = vld [vmem:[#allocation5 + $0xd8] sm:$0xff]
        %v322 = vld [vmem:[#allocation5 + $0xe0] sm:$0xff]
        %v323 = vld [vmem:[#allocation5 + $0xe8] sm:$0xff]
        %v324 = vld [vmem:[#allocation5 + $0xf0] sm:$0xff]
        %v325 = vld [vmem:[#allocation5 + $0xf8] sm:$0xff]
        %v326 = vld [vmem:[#allocation7] sm:$0xff]
        %v328 = vlaneseq
        %v329 = vshrl.u32 %v328, 7
        %v330 = vsub.s32 0, %v329
        %v331 = vrot.slane %v326, %v330
        %v332 = vlaneseq
        %v333 = vshrl.u32 %v332, 7
        %v334 = vsub.s32 1, %v333
        %v335 = vrot.slane %v326, %v334
        %v336 = vlaneseq
        %v337 = vshrl.u32 %v336, 7
        %v338 = vsub.s32 2, %v337
        %v339 = vrot.slane %v326, %v338
        %v340 = vlaneseq
        %v341 = vshrl.u32 %v340, 7
        %v342 = vsub.s32 3, %v341
        %v343 = vrot.slane %v326, %v342
        %v344 = vlaneseq
        %v345 = vshrl.u32 %v344, 7
        %v346 = vsub.s32 4, %v345
        %v347 = vrot.slane %v326, %v346
        %v348 = vlaneseq
        %v349 = vshrl.u32 %v348, 7
        %v350 = vsub.s32 5, %v349
        %v351 = vrot.slane %v326, %v350
        %v352 = vlaneseq
        %v353 = vshrl.u32 %v352, 7
        %v354 = vsub.s32 6, %v353
        %v355 = vrot.slane %v326, %v354
        %v356 = vlaneseq
        %v357 = vshrl.u32 %v356, 7
        %v358 = vsub.s32 7, %v357
        %v359 = vrot.slane %v326, %v358
        %v370 = vunpack.c.l.b16 %v292
        %v371 = vunpack.c.l.b16 %v293
        %v372 = vpack.c.b16 %v371, %v370
        %v405 = vunpack.c.l.b16 %v294
        %v406 = vunpack.c.h.b16 %v294
        %v407 = vunpack.c.l.b16 %v295
        %v408 = vunpack.c.h.b16 %v295
        %v409 = vunpack.c.l.b16 %v296
        %v410 = vunpack.c.h.b16 %v296
        %v411 = vunpack.c.l.b16 %v297
        %v412 = vunpack.c.h.b16 %v297
        %v413 = vunpack.c.l.b16 %v298
        %v414 = vunpack.c.h.b16 %v298
        %v415 = vunpack.c.l.b16 %v299
        %v416 = vunpack.c.h.b16 %v299
        %v417 = vunpack.c.l.b16 %v300
        %v418 = vunpack.c.h.b16 %v300
        %v419 = vunpack.c.l.b16 %v301
        %v420 = vunpack.c.h.b16 %v301
        %v421 = vunpack.c.l.b16 %v302
        %v422 = vunpack.c.h.b16 %v302
        %v423 = vunpack.c.l.b16 %v303
        %v424 = vunpack.c.h.b16 %v303
        %v425 = vunpack.c.l.b16 %v304
        %v426 = vunpack.c.h.b16 %v304
        %v427 = vunpack.c.l.b16 %v305
        %v428 = vunpack.c.h.b16 %v305
        %v429 = vunpack.c.l.b16 %v306
        %v430 = vunpack.c.h.b16 %v306
        %v431 = vunpack.c.l.b16 %v307
        %v432 = vunpack.c.h.b16 %v307
        %v433 = vunpack.c.l.b16 %v308
        %v434 = vunpack.c.h.b16 %v308
        %v435 = vunpack.c.l.b16 %v309
        %v436 = vunpack.c.h.b16 %v309
        %v437 = vunpack.c.l.b16 %v310
        %v438 = vunpack.c.h.b16 %v310
        %v439 = vunpack.c.l.b16 %v311
        %v440 = vunpack.c.h.b16 %v311
        %v441 = vunpack.c.l.b16 %v312
        %v442 = vunpack.c.h.b16 %v312
        %v443 = vunpack.c.l.b16 %v313
        %v444 = vunpack.c.h.b16 %v313
        %v445 = vunpack.c.l.b16 %v314
        %v446 = vunpack.c.h.b16 %v314
        %v447 = vunpack.c.l.b16 %v315
        %v448 = vunpack.c.h.b16 %v315
        %v449 = vunpack.c.l.b16 %v316
        %v450 = vunpack.c.h.b16 %v316
        %v451 = vunpack.c.l.b16 %v317
        %v452 = vunpack.c.h.b16 %v317
        %v453 = vunpack.c.l.b16 %v318
        %v454 = vunpack.c.h.b16 %v318
        %v455 = vunpack.c.l.b16 %v319
        %v456 = vunpack.c.h.b16 %v319
        %v457 = vunpack.c.l.b16 %v320
        %v458 = vunpack.c.h.b16 %v320
        %v459 = vunpack.c.l.b16 %v321
        %v460 = vunpack.c.h.b16 %v321
        %v461 = vunpack.c.l.b16 %v322
        %v462 = vunpack.c.h.b16 %v322
        %v463 = vunpack.c.l.b16 %v323
        %v464 = vunpack.c.h.b16 %v323
        %v465 = vunpack.c.l.b16 %v324
        %v466 = vunpack.c.h.b16 %v324
        %v467 = vunpack.c.l.b16 %v325
        %v468 = vunpack.c.h.b16 %v325
        %v469 = vpack.c.b16 %v413, %v405
        %v470 = vpack.c.b16 %v414, %v406
        %v471 = vpack.c.b16 %v415, %v407
        %v472 = vpack.c.b16 %v416, %v408
        %v473 = vpack.c.b16 %v417, %v409
        %v474 = vpack.c.b16 %v418, %v410
        %v475 = vpack.c.b16 %v419, %v411
        %v476 = vpack.c.b16 %v420, %v412
        %v477 = vpack.c.b16 %v429, %v421
        %v478 = vpack.c.b16 %v430, %v422
        %v479 = vpack.c.b16 %v431, %v423
        %v480 = vpack.c.b16 %v432, %v424
        %v481 = vpack.c.b16 %v433, %v425
        %v482 = vpack.c.b16 %v434, %v426
        %v483 = vpack.c.b16 %v435, %v427
        %v484 = vpack.c.b16 %v436, %v428
        %v485 = vpack.c.b16 %v445, %v437
        %v486 = vpack.c.b16 %v446, %v438
        %v487 = vpack.c.b16 %v447, %v439
        %v488 = vpack.c.b16 %v448, %v440
        %v489 = vpack.c.b16 %v449, %v441
        %v490 = vpack.c.b16 %v450, %v442
        %v491 = vpack.c.b16 %v451, %v443
        %v492 = vpack.c.b16 %v452, %v444
        %v493 = vpack.c.b16 %v461, %v453
        %v494 = vpack.c.b16 %v462, %v454
        %v495 = vpack.c.b16 %v463, %v455
        %v496 = vpack.c.b16 %v464, %v456
        %v497 = vpack.c.b16 %v465, %v457
        %v498 = vpack.c.b16 %v466, %v458
        %v499 = vpack.c.b16 %v467, %v459
        %v500 = vpack.c.b16 %v468, %v460
        %vm533 = vcmask 523264
        %v535 = vsel %vm533, %v372, 0
        %537 = vmatprep.subr.bf16.mxu0 %v470
        %538 = vmatpush1.bf16.msra.mxu0 %v469
        %539 = vmatprep.subr.bf16.mxu0 %v478
        %540 = vmatpush1.bf16.msra.mxu0 %v477
        %541 = vmatprep.subr.bf16.mxu0 %v486
        %542 = vmatpush1.bf16.msra.mxu0 %v485
        %543 = vmatprep.subr.bf16.mxu0 %v494
        %544 = vmatpush1.bf16.msra.mxu0 %v493
        %545 = vmatprep.subr.bf16.mxu0 0
        %546 = vmatpush1.bf16.msra.mxu0 0
        %547 = vmatprep.subr.bf16.mxu0 0
        %548 = vmatpush1.bf16.msra.mxu0 0
        %549 = vmatprep.subr.bf16.mxu0 0
        %550 = vmatpush1.bf16.msra.mxu0 0
        %551 = vmatprep.subr.bf16.mxu0 0
        %552 = vmatpush1.bf16.msra.mxu0 0
        %553 = vmatprep.subr.bf16.mxu0 0
        %554 = vmatpush1.bf16.msra.mxu0 0
        %555 = vmatprep.subr.bf16.mxu0 0
        %556 = vmatpush1.bf16.msra.mxu0 0
        %557 = vmatprep.subr.bf16.mxu0 0
        %558 = vmatpush1.bf16.msra.mxu0 0
        %559 = vmatprep.subr.bf16.mxu0 0
        %560 = vmatpush1.bf16.msra.mxu0 0
        %561 = vmatprep.subr.bf16.mxu0 0
        %562 = vmatpush1.bf16.msra.mxu0 0
        %563 = vmatprep.subr.bf16.mxu0 0
        %564 = vmatpush1.bf16.msra.mxu0 0
        %565 = vmatprep.subr.bf16.mxu0 0
        %566 = vmatpush1.bf16.msra.mxu0 0
        %567 = vmatprep.subr.bf16.mxu0 0
        %568 = vmatpush1.bf16.msra.mxu0 0
        %569 = vmatprep.mubr.bf16.mxu0 0
        %570 = vmatmul.mubr.bf16.gmra.mrb[0].mxu0 %v535
        %v571 = vpop.f32.mrb[0].mxu0
        %v572 = vadd.f32 %v331, %v571
        %v573 = vpop.f32.mrb[0].mxu0
        %v574 = vadd.f32 %v335, %v573
        %v575 = vpop.f32.mrb[0].mxu0
        %v576 = vadd.f32 %v331, %v575
        %v577 = vpop.f32.mrb[0].mxu0
        %v578 = vadd.f32 %v335, %v577
        %579 = vdwg.mxu0
        %580 = vmatprep.subr.bf16.mxu0 %v472
        %581 = vmatpush1.bf16.msra.mxu0 %v471
        %582 = vmatprep.subr.bf16.mxu0 %v480
        %583 = vmatpush1.bf16.msra.mxu0 %v479
        %584 = vmatprep.subr.bf16.mxu0 %v488
        %585 = vmatpush1.bf16.msra.mxu0 %v487
        %586 = vmatprep.subr.bf16.mxu0 %v496
        %587 = vmatpush1.bf16.msra.mxu0 %v495
        %588 = vmatprep.subr.bf16.mxu0 0
        %589 = vmatpush1.bf16.msra.mxu0 0
        %590 = vmatprep.subr.bf16.mxu0 0
        %591 = vmatpush1.bf16.msra.mxu0 0
        %592 = vmatprep.subr.bf16.mxu0 0
        %593 = vmatpush1.bf16.msra.mxu0 0
        %594 = vmatprep.subr.bf16.mxu0 0
        %595 = vmatpush1.bf16.msra.mxu0 0
        %596 = vmatprep.subr.bf16.mxu0 0
        %597 = vmatpush1.bf16.msra.mxu0 0
        %598 = vmatprep.subr.bf16.mxu0 0
        %599 = vmatpush1.bf16.msra.mxu0 0
        %600 = vmatprep.subr.bf16.mxu0 0
        %601 = vmatpush1.bf16.msra.mxu0 0
        %602 = vmatprep.subr.bf16.mxu0 0
        %603 = vmatpush1.bf16.msra.mxu0 0
        %604 = vmatprep.subr.bf16.mxu0 0
        %605 = vmatpush1.bf16.msra.mxu0 0
        %606 = vmatprep.subr.bf16.mxu0 0
        %607 = vmatpush1.bf16.msra.mxu0 0
        %608 = vmatprep.subr.bf16.mxu0 0
        %609 = vmatpush1.bf16.msra.mxu0 0
        %610 = vmatprep.subr.bf16.mxu0 0
        %611 = vmatpush1.bf16.msra.mxu0 0
        %612 = vmatprep.mubr.bf16.mxu0 0
        %613 = vmatmul.mubr.bf16.gmra.mrb[0].mxu0 %v535
        %v614 = vpop.f32.mrb[0].mxu0
        %v615 = vadd.f32 %v339, %v614
        %v616 = vpop.f32.mrb[0].mxu0
        %v617 = vadd.f32 %v343, %v616
        %v618 = vpop.f32.mrb[0].mxu0
        %v619 = vadd.f32 %v339, %v618
        %v620 = vpop.f32.mrb[0].mxu0
        %v621 = vadd.f32 %v343, %v620
        %622 = vdwg.mxu0
        %623 = vmatprep.subr.bf16.mxu0 %v474
        %624 = vmatpush1.bf16.msra.mxu0 %v473
        %625 = vmatprep.subr.bf16.mxu0 %v482
        %626 = vmatpush1.bf16.msra.mxu0 %v481
        %627 = vmatprep.subr.bf16.mxu0 %v490
        %628 = vmatpush1.bf16.msra.mxu0 %v489
        %629 = vmatprep.subr.bf16.mxu0 %v498
        %630 = vmatpush1.bf16.msra.mxu0 %v497
        %631 = vmatprep.subr.bf16.mxu0 0
        %632 = vmatpush1.bf16.msra.mxu0 0
        %633 = vmatprep.subr.bf16.mxu0 0
        %634 = vmatpush1.bf16.msra.mxu0 0
        %635 = vmatprep.subr.bf16.mxu0 0
        %636 = vmatpush1.bf16.msra.mxu0 0
        %637 = vmatprep.subr.bf16.mxu0 0
        %638 = vmatpush1.bf16.msra.mxu0 0
        %639 = vmatprep.subr.bf16.mxu0 0
        %640 = vmatpush1.bf16.msra.mxu0 0
        %641 = vmatprep.subr.bf16.mxu0 0
        %642 = vmatpush1.bf16.msra.mxu0 0
        %643 = vmatprep.subr.bf16.mxu0 0
        %644 = vmatpush1.bf16.msra.mxu0 0
        %645 = vmatprep.subr.bf16.mxu0 0
        %646 = vmatpush1.bf16.msra.mxu0 0
        %647 = vmatprep.subr.bf16.mxu0 0
        %648 = vmatpush1.bf16.msra.mxu0 0
        %649 = vmatprep.subr.bf16.mxu0 0
        %650 = vmatpush1.bf16.msra.mxu0 0
        %651 = vmatprep.subr.bf16.mxu0 0
        %652 = vmatpush1.bf16.msra.mxu0 0
        %653 = vmatprep.subr.bf16.mxu0 0
        %654 = vmatpush1.bf16.msra.mxu0 0
        %655 = vmatprep.mubr.bf16.mxu0 0
        %656 = vmatmul.mubr.bf16.gmra.mrb[0].mxu0 %v535
        %v657 = vpop.f32.mrb[0].mxu0
        %v658 = vadd.f32 %v347, %v657
        %v659 = vpop.f32.mrb[0].mxu0
        %v660 = vadd.f32 %v351, %v659
        %v661 = vpop.f32.mrb[0].mxu0
        %v662 = vadd.f32 %v347, %v661
        %v663 = vpop.f32.mrb[0].mxu0
        %v664 = vadd.f32 %v351, %v663
        %665 = vdwg.mxu0
        %666 = vmatprep.subr.bf16.mxu0 %v476
        %667 = vmatpush1.bf16.msra.mxu0 %v475
        %668 = vmatprep.subr.bf16.mxu0 %v484
        %669 = vmatpush1.bf16.msra.mxu0 %v483
        %670 = vmatprep.subr.bf16.mxu0 %v492
        %671 = vmatpush1.bf16.msra.mxu0 %v491
        %672 = vmatprep.subr.bf16.mxu0 %v500
        %673 = vmatpush1.bf16.msra.mxu0 %v499
        %674 = vmatprep.subr.bf16.mxu0 0
        %675 = vmatpush1.bf16.msra.mxu0 0
        %676 = vmatprep.subr.bf16.mxu0 0
        %677 = vmatpush1.bf16.msra.mxu0 0
        %678 = vmatprep.subr.bf16.mxu0 0
        %679 = vmatpush1.bf16.msra.mxu0 0
        %680 = vmatprep.subr.bf16.mxu0 0
        %681 = vmatpush1.bf16.msra.mxu0 0
        %682 = vmatprep.subr.bf16.mxu0 0
        %683 = vmatpush1.bf16.msra.mxu0 0
        %684 = vmatprep.subr.bf16.mxu0 0
        %685 = vmatpush1.bf16.msra.mxu0 0
        %686 = vmatprep.subr.bf16.mxu0 0
        %687 = vmatpush1.bf16.msra.mxu0 0
        %688 = vmatprep.subr.bf16.mxu0 0
        %689 = vmatpush1.bf16.msra.mxu0 0
        %690 = vmatprep.subr.bf16.mxu0 0
        %691 = vmatpush1.bf16.msra.mxu0 0
        %692 = vmatprep.subr.bf16.mxu0 0
        %693 = vmatpush1.bf16.msra.mxu0 0
        %694 = vmatprep.subr.bf16.mxu0 0
        %695 = vmatpush1.bf16.msra.mxu0 0
        %696 = vmatprep.subr.bf16.mxu0 0
        %697 = vmatpush1.bf16.msra.mxu0 0
        %698 = vmatprep.mubr.bf16.mxu0 0
        %699 = vmatmul.mubr.bf16.gmra.mrb[0].mxu0 %v535
        %v700 = vpop.f32.mrb[0].mxu0
        %v701 = vadd.f32 %v355, %v700
        %v702 = vpop.f32.mrb[0].mxu0
        %v703 = vadd.f32 %v359, %v702
        %v704 = vpop.f32.mrb[0].mxu0
        %v705 = vadd.f32 %v355, %v704
        %v706 = vpop.f32.mrb[0].mxu0
        %v707 = vadd.f32 %v359, %v706
        %708 = vdwg.mxu0
        %v709 = vpack.c.bf16 %v576, %v572
        %v710 = vpack.c.bf16 %v578, %v574
        %v711 = vpack.c.bf16 %v619, %v615
        %v712 = vpack.c.bf16 %v621, %v617
        %v717 = vunpack.c.l.b16 %v709
        %v718 = vunpack.c.l.b16 %v710
        %v719 = vunpack.c.l.b16 %v711
        %v720 = vunpack.c.l.b16 %v712
        %v721 = vunpack.c.h.b16 %v709
        %v722 = vunpack.c.h.b16 %v710
        %v723 = vunpack.c.h.b16 %v711
        %v724 = vunpack.c.h.b16 %v712
        %v725 = vpack.c.b16 %v718, %v717
        %v726 = vpack.c.b16 %v720, %v719
        %v727 = vpack.c.b16 %v722, %v721
        %v728 = vpack.c.b16 %v724, %v723
        %733 = vst [vmem:[%s273] sm:$0xff] %v725
        %734 = vst [vmem:[%s273 + $0x8] sm:$0xff] %v726
        %735 = vst [vmem:[%s273 + $0x10] sm:$0xff] %v727
        %736 = vst [vmem:[%s273 + $0x18] sm:$0xff] %v728
        %v737 = vpack.c.bf16 %v662, %v658
        %v738 = vpack.c.bf16 %v664, %v660
        %v739 = vpack.c.bf16 %v705, %v701
        %v740 = vpack.c.bf16 %v707, %v703
        %v745 = vunpack.c.l.b16 %v737
        %v746 = vunpack.c.l.b16 %v738
        %v747 = vunpack.c.l.b16 %v739
        %v748 = vunpack.c.l.b16 %v740
        %v749 = vunpack.c.h.b16 %v737
        %v750 = vunpack.c.h.b16 %v738
        %v751 = vunpack.c.h.b16 %v739
        %v752 = vunpack.c.h.b16 %v740
        %v753 = vpack.c.b16 %v746, %v745
        %v754 = vpack.c.b16 %v748, %v747
        %v755 = vpack.c.b16 %v750, %v749
        %v756 = vpack.c.b16 %v752, %v751
        %761 = vst [vmem:[%s280] sm:$0xff] %v753
        %762 = vst [vmem:[%s280 + $0x8] sm:$0xff] %v754
        %763 = vst [vmem:[%s280 + $0x10] sm:$0xff] %v755
        %764 = vst [vmem:[%s280 + $0x18] sm:$0xff] %v756
        %v765 = vadd.f32 %v572, %v576
        %v766 = vrot.slane %v765, 4
        %v767 = vadd.f32 %v765, %v766
        %v768 = vrot.slane %v767, 2
        %v769 = vadd.f32 %v767, %v768
        %v770 = vrot.slane %v769, 1
        %v771 = vadd.f32 %v769, %v770
        %v772 = vadd.f32 %v574, %v578
        %v773 = vrot.slane %v772, 4
        %v774 = vadd.f32 %v772, %v773
        %v775 = vrot.slane %v774, 2
        %v776 = vadd.f32 %v774, %v775
        %v777 = vrot.slane %v776, 1
        %v778 = vadd.f32 %v776, %v777
        %v779 = vadd.f32 %v615, %v619
        %v780 = vrot.slane %v779, 4
        %v781 = vadd.f32 %v779, %v780
        %v782 = vrot.slane %v781, 2
        %v783 = vadd.f32 %v781, %v782
        %v784 = vrot.slane %v783, 1
        %v785 = vadd.f32 %v783, %v784
        %v786 = vadd.f32 %v617, %v621
        %v787 = vrot.slane %v786, 4
        %v788 = vadd.f32 %v786, %v787
        %v789 = vrot.slane %v788, 2
        %v790 = vadd.f32 %v788, %v789
        %v791 = vrot.slane %v790, 1
        %v792 = vadd.f32 %v790, %v791
        %v797 = vcombine.low %v771, %v778
        %v798 = vcombine.low %v785, %v792
        %v800 = vunpack.c.l.s4 1966171168
        %v801 = vunpack.c.0.s8 %v800
        %v802 = vlaneseq
        %v803 = vshrl.u32 %v802, 7
        %v804 = vsub.s32 %v801, %v803
        %v805 = vrot.slane %v797, %v804
        %v807 = vunpack.c.l.s4 1966171168
        %v808 = vunpack.c.0.s8 %v807
        %v809 = vlaneseq
        %v810 = vshrl.u32 %v809, 7
        %v811 = vsub.s32 %v808, %v810
        %v812 = vrot.slane %v798, %v811
        %v813 = vcombine.low %v805, %v812
        %v815 = vunpack.c.l.s4 1966171168
        %v816 = vunpack.c.0.s8 %v815
        %v817 = vlaneseq
        %v818 = vshrl.u32 %v817, 7
        %v819 = vsub.s32 %v816, %v818
        %v820 = vrot.slane %v813, %v819
        %v822 = vlaneseq
        %vm823 = vcmp.ge.s32.totalorder %v822, 0
        %vm824 = vcmp.lt.s32.totalorder %v822, 512
        %vm825 = vmand %vm823, %vm824
        %826 = vst.msk [vmem:[%s287] ss:$2 sm:$0xf] %vm825, %v820
        %v827 = vmul.f32 %v572, %v572
        %v828 = vmul.f32 %v574, %v574
        %v829 = vmul.f32 %v615, %v615
        %v830 = vmul.f32 %v617, %v617
        %v831 = vmul.f32 %v576, %v576
        %v832 = vmul.f32 %v578, %v578
        %v833 = vmul.f32 %v619, %v619
        %v834 = vmul.f32 %v621, %v621
        %v835 = vadd.f32 %v827, %v831
        %v836 = vrot.slane %v835, 4
        %v837 = vadd.f32 %v835, %v836
        %v838 = vrot.slane %v837, 2
        %v839 = vadd.f32 %v837, %v838
        %v840 = vrot.slane %v839, 1
        %v841 = vadd.f32 %v839, %v840
        %v842 = vadd.f32 %v828, %v832
        %v843 = vrot.slane %v842, 4
        %v844 = vadd.f32 %v842, %v843
        %v845 = vrot.slane %v844, 2
        %v846 = vadd.f32 %v844, %v845
        %v847 = vrot.slane %v846, 1
        %v848 = vadd.f32 %v846, %v847
        %v849 = vadd.f32 %v829, %v833
        %v850 = vrot.slane %v849, 4
        %v851 = vadd.f32 %v849, %v850
        %v852 = vrot.slane %v851, 2
        %v853 = vadd.f32 %v851, %v852
        %v854 = vrot.slane %v853, 1
        %v855 = vadd.f32 %v853, %v854
        %v856 = vadd.f32 %v830, %v834
        %v857 = vrot.slane %v856, 4
        %v858 = vadd.f32 %v856, %v857
        %v859 = vrot.slane %v858, 2
        %v860 = vadd.f32 %v858, %v859
        %v861 = vrot.slane %v860, 1
        %v862 = vadd.f32 %v860, %v861
        %v867 = vcombine.low %v841, %v848
        %v868 = vcombine.low %v855, %v862
        %v870 = vunpack.c.l.s4 1966171168
        %v871 = vunpack.c.0.s8 %v870
        %v872 = vlaneseq
        %v873 = vshrl.u32 %v872, 7
        %v874 = vsub.s32 %v871, %v873
        %v875 = vrot.slane %v867, %v874
        %v877 = vunpack.c.l.s4 1966171168
        %v878 = vunpack.c.0.s8 %v877
        %v879 = vlaneseq
        %v880 = vshrl.u32 %v879, 7
        %v881 = vsub.s32 %v878, %v880
        %v882 = vrot.slane %v868, %v881
        %v883 = vcombine.low %v875, %v882
        %v885 = vunpack.c.l.s4 1966171168
        %v886 = vunpack.c.0.s8 %v885
        %v887 = vlaneseq
        %v888 = vshrl.u32 %v887, 7
        %v889 = vsub.s32 %v886, %v888
        %v890 = vrot.slane %v883, %v889
        %s892 = scalar_lea.vmem %s287, 1 [#allocation11]
        %893 = vst.msk [vmem:[%s892] ss:$2 sm:$0xf] %vm825, %v890
        %s894 = sand.u32 %s103, 1
        %s895 = scalar_lea.sflag [#allocation4], %s894
        %s896 = sand.u32 %s103, 1
        %s897 = smul.addr %s896, 32
        %s898 = scalar_lea.vmem [#allocation8], %s897
        %s899 = sand.u32 %s27, 1
        %s900 = scalar_lea.sflag [#allocation10], %s899
        %s901 = sand.u32 %s129, 1
        %s902 = smul.addr %s901, 32
        %s903 = scalar_lea.vmem [#allocation9], %s902
        %s904 = sand.u32 %s27, 1
        %s905 = scalar_lea.sflag [#allocation10], %s904
        %s906 = sand.u32 %s155, 1
        %s907 = smul.addr %s906, 8
        %s908 = scalar_lea.vmem [#allocation11], %s907
        // Predicated region
        $region45: #{st_gcn_forward.4} parent=31 // pred_check
          %p909 = pneg %p113
        $region46: #{st_gcn_forward.4} parent=31 // pred_check_branch
          %911 = sbr.rel (%p909) target = $region48
        $region47: #{st_gcn_forward.4} parent=31 // pred_region
          %s912 = smul.u32 2, %s27
          %s914 = ssub.s32 512, 512
          %915 = vsyncadd %s895, %s914
          %s916 = smul.addr %s912, 4
          %s917 = smul.addr %s916, 64
          %s918 = scalar_lea.hbm %s3, %s917
          %s919 = sshll.u32 %s898, 4
          %s920 = int_to_ptr.vmem [resolvable:$true] %s919
          %925 = dma.vmem_to_hbm [thread:$0]  %s920, 512, %s918, %s895, 256, 256, 16
        $region48: #{st_gcn_forward.4} parent=31 // pred_fallthru
          _
        // Predicated region
        $region49: #{st_gcn_forward.4} parent=31 // pred_check
          %p926 = pneg %p139
        $region50: #{st_gcn_forward.4} parent=31 // pred_check_branch
          %928 = sbr.rel (%p926) target = $region52
        $region51: #{st_gcn_forward.4} parent=31 // pred_region
          %s929 = smul.u32 2, %s27
          %s931 = ssub.s32 512, 512
          %932 = vsyncadd %s900, %s931
          %s933 = smul.addr %s929, 4
          %s934 = smul.addr %s933, 64
          %s935 = scalar_lea.hbm %s4, %s934
          %s936 = sshll.u32 %s903, 4
          %s937 = int_to_ptr.vmem [resolvable:$true] %s936
          %942 = dma.vmem_to_hbm [thread:$0]  %s937, 512, %s935, %s900, 256, 256, 16
        $region52: #{st_gcn_forward.4} parent=31 // pred_fallthru
          _
        // Predicated region
        $region53: #{st_gcn_forward.4} parent=31 // pred_check
          %p943 = pneg %p165
        $region54: #{st_gcn_forward.4} parent=31 // pred_check_branch
          %945 = sbr.rel (%p943) target = $region56
        $region55: #{st_gcn_forward.4} parent=31 // pred_region
          %s947 = ssub.s32 128, 128
          %948 = vsyncadd %s905, %s947
          %s949 = smul.addr %s27, 4
          %s950 = smul.addr %s949, 32
          %s951 = scalar_lea.hbm %s5, %s950
          %s953 = sshll.u32 %s908, 4
          %s954 = int_to_ptr.vmem [resolvable:$true] %s953
          %956 = dma.vmem_to_hbm [thread:$0]  %s954, 128, %s951, %s905
        $region56: #{st_gcn_forward.4} parent=31 // pred_fallthru
          _
      $region32: #{st_gcn_forward.4} parent=5 // pred_fallthru
        _
      %p957 = scmp.le.s32.totalorder 2, %s22
      // Predicated region
      $region57: #{st_gcn_forward.4} parent=5 // pred_check
        %p958 = pneg %p957
      $region58: #{st_gcn_forward.4} parent=5 // pred_check_branch
        %960 = sbr.rel (%p958) target = $region60
      $region59: #{st_gcn_forward.4} parent=5 // pred_region
        %s961 = ssub.s32 %s22, 2
        // Predicated region
        $region61: #{st_gcn_forward.4} parent=59 // pred_check
          %p962 = pneg %p119
        $region62: #{st_gcn_forward.4} parent=59 // pred_check_branch
          %964 = sbr.rel (%p962) target = $region64
        $region63: #{st_gcn_forward.4} parent=59 // pred_region
          %s965 = sand.u32 %s104, 1
          %s966 = scalar_lea.sflag [#allocation4], %s965
          %s967 = sand.u32 %s104, 1
          %s968 = smul.addr %s967, 32
          %s969 = scalar_lea.vmem [#allocation8], %s968
          %970 = dma.done %s966, 512
        $region64: #{st_gcn_forward.4} parent=59 // pred_fallthru
          _
        // Predicated region
        $region65: #{st_gcn_forward.4} parent=59 // pred_check
          %p971 = pneg %p145
        $region66: #{st_gcn_forward.4} parent=59 // pred_check_branch
          %973 = sbr.rel (%p971) target = $region68
        $region67: #{st_gcn_forward.4} parent=59 // pred_region
          %s974 = sand.u32 %s28, 1
          %s975 = scalar_lea.sflag [#allocation10], %s974
          %s976 = sand.u32 %s130, 1
          %s977 = smul.addr %s976, 32
          %s978 = scalar_lea.vmem [#allocation9], %s977
          %979 = dma.done %s975, 512
        $region68: #{st_gcn_forward.4} parent=59 // pred_fallthru
          _
        // Predicated region
        $region69: #{st_gcn_forward.4} parent=59 // pred_check
          %p980 = pneg %p171
        $region70: #{st_gcn_forward.4} parent=59 // pred_check_branch
          %982 = sbr.rel (%p980) target = $region72
        $region71: #{st_gcn_forward.4} parent=59 // pred_region
          %s983 = sand.u32 %s28, 1
          %s984 = scalar_lea.sflag [#allocation10], %s983
          %s985 = sand.u32 %s156, 1
          %s986 = smul.addr %s985, 8
          %s987 = scalar_lea.vmem [#allocation11], %s986
          %988 = dma.done %s984, 128
        $region72: #{st_gcn_forward.4} parent=59 // pred_fallthru
          _
      $region60: #{st_gcn_forward.4} parent=5 // pred_fallthru
        _
    $region6: #{st_gcn_forward.4} parent=1 // loop_footer
      %s26 = sadd.s32 1, %s22
    $region7: #{st_gcn_forward.4} parent=1 // loop_footer_branch
      %21 = sbr.rel target = $region3
    $region8: #{st_gcn_forward.4} parent=1 // loop_exit
      _
    %989 = vsyncpa [#allocation3], 1
    %s990 = scalar_lea.sflag [#allocation3], 1
    %991 = vsyncpa %s990, 1
    %992 = vsyncpa [#allocation6], 1
    %993 = vsyncpa [#allocation4], 1
    %s994 = scalar_lea.sflag [#allocation4], 1
    %995 = vsyncpa %s994, 1
    %996 = vsyncpa [#allocation10], 1
    %s997 = scalar_lea.sflag [#allocation10], 1
    %998 = vsyncpa %s997, 1

// kernel: tile.22
$region0: #{tile.22}
  %s0 = inlined_call_operand.vmem [shape: f32[16,32], index: 0, kind: input, shape index: {}]
  %s1 = inlined_call_operand.hbm [shape: f32[1,512], index: 1, kind: output, shape index: {}]
  $region1: #{tile.22} parent=0
    #allocation0 [shape = 'u8[2048]{0}', space=vmem, size = 0x800, scoped, tag = 'operand span for operand 1']
    #allocation1 [shape = 's32[1]{0}', space=sflag, size = 0x4, scoped, tag = 'scoped memory for tile.22']
    #allocation2 [shape = 'u8[16384]{0}', space=vmem, size = 0x4000, scoped, tag = 'scoped mem for output reshape']
    %2 = vsyncpa [#allocation1], 0
    %v3 = vld [vmem:[%s0] ss:$4 sm:$0xf]
    %vm4 = vcmask 261120
    %5 = vst.msk [vmem:[#allocation2] ss:$8 sm:$0xf] %vm4, %v3
    %s6 = scalar_lea.vmem %s0, 3
    %v7 = vld [vmem:[%s6] ss:$4 sm:$0xf]
    %8 = vrot.lane.b32.xlu0 %v7, 96
    %v9 = vpop.permute.xlu0 %8
    %vm10 = vcmask 1048320
    %11 = vst.msk [vmem:[#allocation2] ss:$8 sm:$0xf] %vm10, %v9
    %s12 = scalar_lea.vmem %s0, 2
    %v13 = vld [vmem:[%s12] ss:$4 sm:$0xf]
    %14 = vrot.lane.b32.xlu0 %v13, 64
    %v15 = vpop.permute.xlu0 %14
    %vm16 = vcmask 785920
    %17 = vst.msk [vmem:[#allocation2] ss:$8 sm:$0xf] %vm16, %v15
    %s18 = scalar_lea.vmem %s0, 1
    %v19 = vld [vmem:[%s18] ss:$4 sm:$0xf]
    %20 = vrot.lane.b32.xlu0 %v19, 32
    %v21 = vpop.permute.xlu0 %20
    %vm22 = vcmask 523520
    %23 = vst.msk [vmem:[#allocation2] ss:$8 sm:$0xf] %vm22, %v21
    %s25 = sshllo.u32 0, 1
    %v27 = vld [vmem:[#allocation2] sm:%s25]
    %s28 = sshllo.u32 0, 1
    %29 = vst [vmem:[#allocation0] sm:%s28] %v27
    %s30 = scalar_lea.vmem [#allocation2], 8
    %v31 = vld [vmem:[%s30] sm:%s25]
    %s32 = sshllo.u32 0, 1
    %s33 = scalar_lea.vmem [#allocation0], 1
    %34 = vst [vmem:[%s33] sm:%s32] %v31
    %s35 = scalar_lea.vmem [#allocation2], 16
    %v36 = vld [vmem:[%s35] sm:%s25]
    %s37 = sshllo.u32 0, 1
    %s38 = smul.addr 1, 2
    %s39 = scalar_lea.vmem [#allocation0], %s38
    %40 = vst [vmem:[%s39] sm:%s37] %v36
    %s41 = scalar_lea.vmem [#allocation2], 24
    %v42 = vld [vmem:[%s41] sm:%s25]
    %s43 = sshllo.u32 0, 1
    %s44 = smul.addr 1, 3
    %s45 = scalar_lea.vmem [#allocation0], %s44
    %46 = vst [vmem:[%s45] sm:%s43] %v42
    %s48 = ssub.s32 64, 64
    %49 = vsyncadd [#allocation1], %s48
    %s51 = sshll.u32 [#allocation0], 4
    %s52 = int_to_ptr.vmem [resolvable:$true] %s51
    %54 = dma.vmem_to_hbm [thread:$0]  %s52, 64, %s1, [#allocation1]
    %55 = dma.done [#allocation1], 64
    %56 = vsyncpa [#allocation1], 1

// kernel: st_gcn_forward.5
$region0: #{st_gcn_forward.5}
  #allocation0 [shape = 'u32[]', space=smem, size = 0x4, offset = 0x4, fixed_abs, tag = 'smem constant byte address 0x4 - core index']
  #allocation1 [shape = 'u32[144,128]{1,0:T(1,128)}', space=vmem, size = 0x12000, scoped, tag = 'internal scratch']
  #allocation2 [shape = 'f32[2,160,32]{2,1,0:T(8,128)}', space=vmem, size = 0x28000, scoped, tag = 'scratch operand']
  %s0 = inlined_call_operand.hbm [shape: bf16[4,128,32], index: 0, kind: input, shape index: {}]
  %s1 = inlined_call_operand.hbm [shape: f32[1,1,32], index: 1, kind: input, shape index: {}]
  %s2 = inlined_call_operand.hbm [shape: f32[1,1,32], index: 2, kind: input, shape index: {}]
  %s3 = inlined_call_operand.hbm [shape: bf16[3,32,32], index: 3, kind: input, shape index: {}]
  %s4 = inlined_call_operand.hbm [shape: f32[1,1,32], index: 4, kind: input, shape index: {}]
  %s5 = inlined_call_operand.hbm [shape: bf16[4,128,32], index: 5, kind: output, shape index: {0}]
  %s6 = inlined_call_operand.hbm [shape: f32[2,2,32], index: 6, kind: output, shape index: {1}]
  %7 = xla_tuple %s5, %s6
  %s8 = sld [smem:[#allocation0]]
  $region81: #{st_gcn_forward.5} parent=0
    _
  %s10 = ssub.s32 1, %s8
  %s11 = scalar_select 0, %s10, %s8
  $region1: #{st_gcn_forward.5} parent=0
    #allocation3 [shape = 'u8[131072]{0}', space=vmem, size = 0x20000, scoped, tag = 'input window, operand 0']
    #allocation4 [shape = 's32[2]{0}', space=sflag, size = 0x8, scoped, tag = 'scoped memory for st_gcn_forward.5']
    #allocation5 [shape = 's32[2]{0}', space=sflag, size = 0x8, scoped, tag = 'scoped memory for st_gcn_forward.5']
    #allocation6 [shape = 'u8[512]{0}', space=vmem, size = 0x400, scoped, tag = 'input window, operand 1, single buffered']
    #allocation7 [shape = 's32[1]{0}', space=sflag, size = 0x4, scoped, tag = 'scoped memory for st_gcn_forward.5']
    #allocation8 [shape = 'u8[512]{0}', space=vmem, size = 0x400, scoped, tag = 'input window, operand 2, single buffered']
    #allocation9 [shape = 'u8[24576]{0}', space=vmem, size = 0x6000, scoped, tag = 'input window, operand 3, single buffered']
    #allocation10 [shape = 's32[1]{0}', space=sflag, size = 0x4, scoped, tag = 'scoped memory for st_gcn_forward.5']
    #allocation11 [shape = 'u8[512]{0}', space=vmem, size = 0x400, scoped, tag = 'input window, operand 4, single buffered']
    #allocation12 [shape = 'u8[131072]{0}', space=vmem, size = 0x20000, scoped, tag = 'output window, operand 0']
    #allocation13 [shape = 'u8[2048]{0}', space=vmem, size = 0x800, scoped, tag = 'output window, operand 1']
    #allocation14 [shape = 's32[2]{0}', space=sflag, size = 0x8, scoped, tag = 'scoped memory for st_gcn_forward.5']
    %12 = vsyncpa [#allocation4], 0
    %s13 = scalar_lea.sflag [#allocation4], 1
    %14 = vsyncpa %s13, 0
    %15 = vsyncpa [#allocation7], 0
    %16 = vsyncpa [#allocation10], 0
    %17 = vsyncpa [#allocation5], 0
    %s18 = scalar_lea.sflag [#allocation5], 1
    %19 = vsyncpa %s18, 0
    %20 = vsyncpa [#allocation14], 0
    %s21 = scalar_lea.sflag [#allocation14], 1
    %22 = vsyncpa %s21, 0
    loop: start=0, step=1, limit=4
    $region2: #{st_gcn_forward.5} parent=1 // loop_pre_header
      _
    $region3: #{st_gcn_forward.5} parent=1 // loop_header
      %s24 = sphi 0, %s28
      %p25 = scmp.ge.s32.totalorder %s24, 4
      %s34 = sphi 0, %s36
      %s37 = sphi 0, %s34
      %s38 = sphi 0, %s37
      %s54 = sphi 0, %s38
      %s58 = sphi 0, %s58
      %s60 = sphi 0, %s58
      %s61 = sphi 0, %s60
      %s75 = sphi 0, %s61
      %s79 = sphi 0, %s79
      %s81 = sphi 0, %s79
      %s82 = sphi 0, %s81
      %s96 = sphi 0, %s82
      %s100 = sphi 0, %s100
      %s102 = sphi 0, %s100
      %s103 = sphi 0, %s102
      %s117 = sphi 0, %s103
      %s121 = sphi 0, %s121
      %s123 = sphi 0, %s121
      %s124 = sphi 0, %s123
      %s138 = sphi 0, %s124
      %s144 = sphi 0, %s146
      %s147 = sphi 0, %s144
      %s148 = sphi 0, %s147
      %s164 = sphi 0, %s148
      %s170 = sphi 0, %s172
      %s173 = sphi 0, %s170
      %s174 = sphi 0, %s173
      %s190 = sphi 0, %s174
    $region4: #{st_gcn_forward.5} parent=1 // loop_header_branch
      %27 = sbr.rel (%p25) target = $region8
    $region5: #{st_gcn_forward.5} parent=1 // loop_body
      %s29 = ssub.s32 %s24, 1
      %s30 = ssub.s32 %s24, 2
      %s31 = sadd.s32 %s24, 1
      %s32 = ssub.s32 %s24, %s31
      %p33 = scmp.eq.s32.totalorder %s32, 0
      %s35 = sadd.s32 %s34, 1
      %s36 = scalar_select %p33, %s34, %s35
      %p39 = pneg %p33
      %p40 = scmp.eq.s32.totalorder %s24, 1
      %p41 = por %p39, %p40
      %p42 = scmp.ne.s32.totalorder %s34, %s37
      %p43 = scmp.eq.s32.totalorder %s24, 0
      %p44 = por %p42, %p43
      %p45 = scmp.ne.s32.totalorder %s34, %s37
      %p46 = scmp.eq.s32.totalorder %s29, 1
      %p47 = por %p45, %p46
      %p48 = scmp.ne.s32.totalorder %s37, %s38
      %p49 = scmp.eq.s32.totalorder %s29, 0
      %p50 = por %p48, %p49
      %p51 = scmp.ne.s32.totalorder %s37, %s38
      %p52 = scmp.eq.s32.totalorder %s30, 1
      %p53 = por %p51, %p52
      %p55 = scmp.ne.s32.totalorder %s38, %s54
      %p56 = scmp.eq.s32.totalorder %s30, 0
      %p57 = por %p55, %p56
      %s59 = sadd.s32 %s58, 1
      %p62 = scmp.eq.s32.totalorder %s24, 1
      %p63 = scmp.ne.s32.totalorder %s58, %s60
      %p64 = scmp.eq.s32.totalorder %s24, 0
      %p65 = por %p63, %p64
      %p66 = scmp.ne.s32.totalorder %s58, %s60
      %p67 = scmp.eq.s32.totalorder %s29, 1
      %p68 = por %p66, %p67
      %p69 = scmp.ne.s32.totalorder %s60, %s61
      %p70 = scmp.eq.s32.totalorder %s29, 0
      %p71 = por %p69, %p70
      %p72 = scmp.ne.s32.totalorder %s60, %s61
      %p73 = scmp.eq.s32.totalorder %s30, 1
      %p74 = por %p72, %p73
      %p76 = scmp.ne.s32.totalorder %s61, %s75
      %p77 = scmp.eq.s32.totalorder %s30, 0
      %p78 = por %p76, %p77
      %s80 = sadd.s32 %s79, 1
      %p83 = scmp.eq.s32.totalorder %s24, 1
      %p84 = scmp.ne.s32.totalorder %s79, %s81
      %p85 = scmp.eq.s32.totalorder %s24, 0
      %p86 = por %p84, %p85
      %p87 = scmp.ne.s32.totalorder %s79, %s81
      %p88 = scmp.eq.s32.totalorder %s29, 1
      %p89 = por %p87, %p88
      %p90 = scmp.ne.s32.totalorder %s81, %s82
      %p91 = scmp.eq.s32.totalorder %s29, 0
      %p92 = por %p90, %p91
      %p93 = scmp.ne.s32.totalorder %s81, %s82
      %p94 = scmp.eq.s32.totalorder %s30, 1
      %p95 = por %p93, %p94
      %p97 = scmp.ne.s32.totalorder %s82, %s96
      %p98 = scmp.eq.s32.totalorder %s30, 0
      %p99 = por %p97, %p98
      %s101 = sadd.s32 %s100, 1
      %p104 = scmp.eq.s32.totalorder %s24, 1
      %p105 = scmp.ne.s32.totalorder %s100, %s102
      %p106 = scmp.eq.s32.totalorder %s24, 0
      %p107 = por %p105, %p106
      %p108 = scmp.ne.s32.totalorder %s100, %s102
      %p109 = scmp.eq.s32.totalorder %s29, 1
      %p110 = por %p108, %p109
      %p111 = scmp.ne.s32.totalorder %s102, %s103
      %p112 = scmp.eq.s32.totalorder %s29, 0
      %p113 = por %p111, %p112
      %p114 = scmp.ne.s32.totalorder %s102, %s103
      %p115 = scmp.eq.s32.totalorder %s30, 1
      %p116 = por %p114, %p115
      %p118 = scmp.ne.s32.totalorder %s103, %s117
      %p119 = scmp.eq.s32.totalorder %s30, 0
      %p120 = por %p118, %p119
      %s122 = sadd.s32 %s121, 1
      %p125 = scmp.eq.s32.totalorder %s24, 1
      %p126 = scmp.ne.s32.totalorder %s121, %s123
      %p127 = scmp.eq.s32.totalorder %s24, 0
      %p128 = por %p126, %p127
      %p129 = scmp.ne.s32.totalorder %s121, %s123
      %p130 = scmp.eq.s32.totalorder %s29, 1
      %p131 = por %p129, %p130
      %p132 = scmp.ne.s32.totalorder %s123, %s124
      %p133 = scmp.eq.s32.totalorder %s29, 0
      %p134 = por %p132, %p133
      %p135 = scmp.ne.s32.totalorder %s123, %s124
      %p136 = scmp.eq.s32.totalorder %s30, 1
      %p137 = por %p135, %p136
      %p139 = scmp.ne.s32.totalorder %s124, %s138
      %p140 = scmp.eq.s32.totalorder %s30, 0
      %p141 = por %p139, %p140
      %s142 = ssub.s32 %s24, %s31
      %p143 = scmp.eq.s32.totalorder %s142, 0
      %s145 = sadd.s32 %s144, 1
      %s146 = scalar_select %p143, %s144, %s145
      %p149 = pneg %p143
      %p150 = scmp.eq.s32.totalorder %s24, 1
      %p151 = por %p149, %p150
      %p152 = scmp.ne.s32.totalorder %s144, %s147
      %p153 = scmp.eq.s32.totalorder %s24, 0
      %p154 = por %p152, %p153
      %p155 = scmp.ne.s32.totalorder %s144, %s147
      %p156 = scmp.eq.s32.totalorder %s29, 1
      %p157 = por %p155, %p156
      %p158 = scmp.ne.s32.totalorder %s147, %s148
      %p159 = scmp.eq.s32.totalorder %s29, 0
      %p160 = por %p158, %p159
      %p161 = scmp.ne.s32.totalorder %s147, %s148
      %p162 = scmp.eq.s32.totalorder %s30, 1
      %p163 = por %p161, %p162
      %p165 = scmp.ne.s32.totalorder %s148, %s164
      %p166 = scmp.eq.s32.totalorder %s30, 0
      %p167 = por %p165, %p166
      %s168 = ssub.s32 %s24, %s31
      %p169 = scmp.eq.s32.totalorder %s168, 0
      %s171 = sadd.s32 %s170, 1
      %s172 = scalar_select %p169, %s170, %s171
      %p175 = pneg %p169
      %p176 = scmp.eq.s32.totalorder %s24, 1
      %p177 = por %p175, %p176
      %p178 = scmp.ne.s32.totalorder %s170, %s173
      %p179 = scmp.eq.s32.totalorder %s24, 0
      %p180 = por %p178, %p179
      %p181 = scmp.ne.s32.totalorder %s170, %s173
      %p182 = scmp.eq.s32.totalorder %s29, 1
      %p183 = por %p181, %p182
      %p184 = scmp.ne.s32.totalorder %s173, %s174
      %p185 = scmp.eq.s32.totalorder %s29, 0
      %p186 = por %p184, %p185
      %p187 = scmp.ne.s32.totalorder %s173, %s174
      %p188 = scmp.eq.s32.totalorder %s30, 1
      %p189 = por %p187, %p188
      %p191 = scmp.ne.s32.totalorder %s174, %s190
      %p192 = scmp.eq.s32.totalorder %s30, 0
      %p193 = por %p191, %p192
      %p194 = scmp.le.s32.totalorder 1, %s24
      %p195 = scmp.lt.s32.totalorder %s24, 3
      %p196 = pnand %p194, %p195
      %p197 = pneg %p196
      // Predicated region
      $region9: #{st_gcn_forward.5} parent=5 // pred_check
        _
      $region10: #{st_gcn_forward.5} parent=5 // pred_check_branch
        %199 = sbr.rel (%p196) target = $region12
      $region11: #{st_gcn_forward.5} parent=5 // pred_region
        %s200 = ssub.s32 %s24, 1
        // Predicated region
        $region13: #{st_gcn_forward.5} parent=11 // pred_check
          %p201 = pneg %p71
        $region14: #{st_gcn_forward.5} parent=11 // pred_check_branch
          %203 = sbr.rel (%p201) target = $region16
        $region15: #{st_gcn_forward.5} parent=11 // pred_region
          %s205 = ssub.s32 16, 16
          %206 = vsyncadd [#allocation7], %s205
          %s208 = sshll.u32 [#allocation6], 4
          %s209 = int_to_ptr.vmem [resolvable:$true] %s208
          %211 = dma.hbm_to_vmem [thread:$0]  %s1, 16, %s209, [#allocation7]
        $region16: #{st_gcn_forward.5} parent=11 // pred_fallthru
          _
        // Predicated region
        $region17: #{st_gcn_forward.5} parent=11 // pred_check
          %p212 = pneg %p92
        $region18: #{st_gcn_forward.5} parent=11 // pred_check_branch
          %214 = sbr.rel (%p212) target = $region20
        $region19: #{st_gcn_forward.5} parent=11 // pred_region
          %s216 = ssub.s32 16, 16
          %217 = vsyncadd [#allocation7], %s216
          %s219 = sshll.u32 [#allocation8], 4
          %s220 = int_to_ptr.vmem [resolvable:$true] %s219
          %222 = dma.hbm_to_vmem [thread:$0]  %s2, 16, %s220, [#allocation7]
        $region20: #{st_gcn_forward.5} parent=11 // pred_fallthru
          _
        // Predicated region
        $region21: #{st_gcn_forward.5} parent=11 // pred_check
          %p223 = pneg %p113
        $region22: #{st_gcn_forward.5} parent=11 // pred_check_branch
          %225 = sbr.rel (%p223) target = $region24
        $region23: #{st_gcn_forward.5} parent=11 // pred_region
          %s227 = ssub.s32 768, 768
          %228 = vsyncadd [#allocation10], %s227
          %s229 = sshll.u32 [#allocation9], 4
          %s230 = int_to_ptr.vmem [resolvable:$true] %s229
          %235 = dma.hbm_to_vmem [thread:$0]  %s3, 768, %s230, [#allocation10], 64, 64, 4
        $region24: #{st_gcn_forward.5} parent=11 // pred_fallthru
          _
        // Predicated region
        $region25: #{st_gcn_forward.5} parent=11 // pred_check
          %p236 = pneg %p134
        $region26: #{st_gcn_forward.5} parent=11 // pred_check_branch
          %238 = sbr.rel (%p236) target = $region28
        $region27: #{st_gcn_forward.5} parent=11 // pred_region
          %s240 = ssub.s32 16, 16
          %241 = vsyncadd [#allocation10], %s240
          %s243 = sshll.u32 [#allocation11], 4
          %s244 = int_to_ptr.vmem [resolvable:$true] %s243
          %246 = dma.hbm_to_vmem [thread:$0]  %s4, 16, %s244, [#allocation10]
        $region28: #{st_gcn_forward.5} parent=11 // pred_fallthru
          _
      $region12: #{st_gcn_forward.5} parent=5 // pred_fallthru
        _
      %p247 = scmp.lt.s32.totalorder %s24, 2
      // Predicated region
      $region29: #{st_gcn_forward.5} parent=5 // pred_check
        %p248 = pneg %p247
      $region30: #{st_gcn_forward.5} parent=5 // pred_check_branch
        %250 = sbr.rel (%p248) target = $region32
      $region31: #{st_gcn_forward.5} parent=5 // pred_region
        // Predicated region
        $region33: #{st_gcn_forward.5} parent=31 // pred_check
          %p251 = pneg %p44
        $region34: #{st_gcn_forward.5} parent=31 // pred_check_branch
          %253 = sbr.rel (%p251) target = $region36
        $region35: #{st_gcn_forward.5} parent=31 // pred_region
          %s254 = sand.u32 %s34, 1
          %s255 = scalar_lea.sflag [#allocation4], %s254
          %s256 = sand.u32 %s34, 1
          %s257 = smul.addr %s256, 128
          %s258 = scalar_lea.vmem [#allocation3], %s257
          %s259 = smul.u32 2, %s24
          %s261 = ssub.s32 2048, 2048
          %262 = vsyncadd %s255, %s261
          %s263 = smul.addr %s259, 16
          %s264 = smul.addr %s263, 64
          %s265 = scalar_lea.hbm %s0, %s264
          %s266 = sshll.u32 %s258, 4
          %s267 = int_to_ptr.vmem [resolvable:$true] %s266
          %272 = dma.hbm_to_vmem [thread:$0]  %s265, 2048, %s267, %s255, 64, 64, 4
        $region36: #{st_gcn_forward.5} parent=31 // pred_fallthru
          _
      $region32: #{st_gcn_forward.5} parent=5 // pred_fallthru
        _
      %p273 = scmp.le.s32.totalorder 1, %s24
      %p274 = scmp.lt.s32.totalorder %s24, 3
      %p275 = pnand %p273, %p274
      %p276 = pneg %p275
      // Predicated region
      $region37: #{st_gcn_forward.5} parent=5 // pred_check
        _
      $region38: #{st_gcn_forward.5} parent=5 // pred_check_branch
        %278 = sbr.rel (%p275) target = $region40
      $region39: #{st_gcn_forward.5} parent=5 // pred_region
        %s279 = ssub.s32 %s24, 1
        %s280 = sand.u32 %s37, 1
        %s281 = scalar_lea.sflag [#allocation4], %s280
        %s282 = sand.u32 %s37, 1
        %s283 = smul.addr %s282, 128
        %s284 = scalar_lea.vmem [#allocation3], %s283
        // Predicated region
        $region41: #{st_gcn_forward.5} parent=39 // pred_check
          %p285 = pneg %p50
        $region42: #{st_gcn_forward.5} parent=39 // pred_check_branch
          %287 = sbr.rel (%p285) target = $region44
        $region43: #{st_gcn_forward.5} parent=39 // pred_region
          %288 = dma.done %s281, 2048
        $region44: #{st_gcn_forward.5} parent=39 // pred_fallthru
          _
        // Predicated region
        $region45: #{st_gcn_forward.5} parent=39 // pred_check
          %p289 = pneg %p71
        $region46: #{st_gcn_forward.5} parent=39 // pred_check_branch
          %291 = sbr.rel (%p289) target = $region48
        $region47: #{st_gcn_forward.5} parent=39 // pred_region
          %292 = dma.done [#allocation7], 16
        $region48: #{st_gcn_forward.5} parent=39 // pred_fallthru
          _
        // Predicated region
        $region49: #{st_gcn_forward.5} parent=39 // pred_check
          %p293 = pneg %p92
        $region50: #{st_gcn_forward.5} parent=39 // pred_check_branch
          %295 = sbr.rel (%p293) target = $region52
        $region51: #{st_gcn_forward.5} parent=39 // pred_region
          %296 = dma.done [#allocation7], 16
        $region52: #{st_gcn_forward.5} parent=39 // pred_fallthru
          _
        // Predicated region
        $region53: #{st_gcn_forward.5} parent=39 // pred_check
          %p297 = pneg %p113
        $region54: #{st_gcn_forward.5} parent=39 // pred_check_branch
          %299 = sbr.rel (%p297) target = $region56
        $region55: #{st_gcn_forward.5} parent=39 // pred_region
          %300 = dma.done [#allocation10], 768
        $region56: #{st_gcn_forward.5} parent=39 // pred_fallthru
          _
        // Predicated region
        $region57: #{st_gcn_forward.5} parent=39 // pred_check
          %p301 = pneg %p134
        $region58: #{st_gcn_forward.5} parent=39 // pred_check_branch
          %303 = sbr.rel (%p301) target = $region60
        $region59: #{st_gcn_forward.5} parent=39 // pred_region
          %304 = dma.done [#allocation10], 16
        $region60: #{st_gcn_forward.5} parent=39 // pred_fallthru
          _
        %s305 = sand.u32 %s37, 1
        %s306 = scalar_lea.sflag [#allocation4], %s305
        %s307 = sand.u32 %s37, 1
        %s308 = smul.addr %s307, 128
        %s309 = scalar_lea.vmem [#allocation3], %s308
        %p310 = pneg %p50
        %p311 = pneg %p47
        %p312 = pneg %p71
        %p313 = pneg %p68
        %p314 = pneg %p92
        %p315 = pneg %p89
        %p316 = pneg %p113
        %p317 = pneg %p110
        %p318 = pneg %p134
        %p319 = pneg %p131
        %p320 = pneg %p160
        %p321 = pneg %p157
        %s322 = sand.u32 %s147, 1
        %s323 = scalar_lea.sflag [#allocation5], %s322
        %s324 = sand.u32 %s147, 1
        %s325 = smul.addr %s324, 128
        %s326 = scalar_lea.vmem [#allocation12], %s325
        %p327 = pneg %p186
        %p328 = pneg %p183
        %s329 = sand.u32 %s173, 1
        %s330 = scalar_lea.sflag [#allocation14], %s329
        %s331 = sand.u32 %s173, 1
        %s332 = smul.addr %s331, 2
        %s333 = scalar_lea.vmem [#allocation13], %s332
        %s334 = smul.u32 2, %s29
        %s335 = smul.u32 2, %s29
        %v337 = vld [vmem:[%s284] sm:$0xf]
        %v338 = vld [vmem:[%s284 + $0x4] sm:$0xf]
        %v339 = vld [vmem:[%s284 + $0x8] sm:$0xf]
        %v340 = vld [vmem:[%s284 + $0xc] sm:$0xf]
        %v341 = vld [vmem:[%s284 + $0x10] sm:$0xf]
        %v342 = vld [vmem:[%s284 + $0x14] sm:$0xf]
        %v343 = vld [vmem:[%s284 + $0x18] sm:$0xf]
        %v344 = vld [vmem:[%s284 + $0x1c] sm:$0xf]
        %v345 = vld [vmem:[%s284 + $0x20] sm:$0xf]
        %v346 = vld [vmem:[%s284 + $0x24] sm:$0xf]
        %v347 = vld [vmem:[%s284 + $0x28] sm:$0xf]
        %v348 = vld [vmem:[%s284 + $0x2c] sm:$0xf]
        %v349 = vld [vmem:[%s284 + $0x30] sm:$0xf]
        %v350 = vld [vmem:[%s284 + $0x34] sm:$0xf]
        %v351 = vld [vmem:[%s284 + $0x38] sm:$0xf]
        %v352 = vld [vmem:[%s284 + $0x3c] sm:$0xf]
        %v353 = vld [vmem:[%s284 + $0x40] sm:$0xf]
        %v354 = vld [vmem:[%s284 + $0x44] sm:$0xf]
        %v355 = vld [vmem:[%s284 + $0x48] sm:$0xf]
        %v356 = vld [vmem:[%s284 + $0x4c] sm:$0xf]
        %v357 = vld [vmem:[%s284 + $0x50] sm:$0xf]
        %v358 = vld [vmem:[%s284 + $0x54] sm:$0xf]
        %v359 = vld [vmem:[%s284 + $0x58] sm:$0xf]
        %v360 = vld [vmem:[%s284 + $0x5c] sm:$0xf]
        %v361 = vld [vmem:[%s284 + $0x60] sm:$0xf]
        %v362 = vld [vmem:[%s284 + $0x64] sm:$0xf]
        %v363 = vld [vmem:[%s284 + $0x68] sm:$0xf]
        %v364 = vld [vmem:[%s284 + $0x6c] sm:$0xf]
        %v365 = vld [vmem:[%s284 + $0x70] sm:$0xf]
        %v366 = vld [vmem:[%s284 + $0x74] sm:$0xf]
        %v367 = vld [vmem:[%s284 + $0x78] sm:$0xf]
        %v368 = vld [vmem:[%s284 + $0x7c] sm:$0xf]
        %v369 = vunpack.c.l.bf16 %v337
        %v370 = vunpack.c.l.bf16 %v338
        %v371 = vunpack.c.l.bf16 %v339
        %v372 = vunpack.c.l.bf16 %v340
        %v373 = vunpack.c.l.bf16 %v341
        %v374 = vunpack.c.l.bf16 %v342
        %v375 = vunpack.c.l.bf16 %v343
        %v376 = vunpack.c.l.bf16 %v344
        %v377 = vunpack.c.l.bf16 %v345
        %v378 = vunpack.c.l.bf16 %v346
        %v379 = vunpack.c.l.bf16 %v347
        %v380 = vunpack.c.l.bf16 %v348
        %v381 = vunpack.c.l.bf16 %v349
        %v382 = vunpack.c.l.bf16 %v350
        %v383 = vunpack.c.l.bf16 %v351
        %v384 = vunpack.c.l.bf16 %v352
        %v385 = vunpack.c.l.bf16 %v353
        %v386 = vunpack.c.l.bf16 %v354
        %v387 = vunpack.c.l.bf16 %v355
        %v388 = vunpack.c.l.bf16 %v356
        %v389 = vunpack.c.l.bf16 %v357
        %v390 = vunpack.c.l.bf16 %v358
        %v391 = vunpack.c.l.bf16 %v359
        %v392 = vunpack.c.l.bf16 %v360
        %v393 = vunpack.c.l.bf16 %v361
        %v394 = vunpack.c.l.bf16 %v362
        %v395 = vunpack.c.l.bf16 %v363
        %v396 = vunpack.c.l.bf16 %v364
        %v397 = vunpack.c.l.bf16 %v365
        %v398 = vunpack.c.l.bf16 %v366
        %v399 = vunpack.c.l.bf16 %v367
        %v400 = vunpack.c.l.bf16 %v368
        %v401 = vld [vmem:[#allocation6] sm:$0x1]
        %v403 = vlaneseq
        %v404 = vshrl.u32 %v403, 7
        %v405 = vsub.s32 0, %v404
        %v406 = vrot.slane %v401, %v405
        %v408 = vmul.f32 %v369, %v406
        %v409 = vmul.f32 %v370, %v406
        %v410 = vmul.f32 %v371, %v406
        %v411 = vmul.f32 %v372, %v406
        %v412 = vmul.f32 %v373, %v406
        %v413 = vmul.f32 %v374, %v406
        %v414 = vmul.f32 %v375, %v406
        %v415 = vmul.f32 %v376, %v406
        %v416 = vmul.f32 %v377, %v406
        %v417 = vmul.f32 %v378, %v406
        %v418 = vmul.f32 %v379, %v406
        %v419 = vmul.f32 %v380, %v406
        %v420 = vmul.f32 %v381, %v406
        %v421 = vmul.f32 %v382, %v406
        %v422 = vmul.f32 %v383, %v406
        %v423 = vmul.f32 %v384, %v406
        %v424 = vmul.f32 %v385, %v406
        %v425 = vmul.f32 %v386, %v406
        %v426 = vmul.f32 %v387, %v406
        %v427 = vmul.f32 %v388, %v406
        %v428 = vmul.f32 %v389, %v406
        %v429 = vmul.f32 %v390, %v406
        %v430 = vmul.f32 %v391, %v406
        %v431 = vmul.f32 %v392, %v406
        %v432 = vmul.f32 %v393, %v406
        %v433 = vmul.f32 %v394, %v406
        %v434 = vmul.f32 %v395, %v406
        %v435 = vmul.f32 %v396, %v406
        %v436 = vmul.f32 %v397, %v406
        %v437 = vmul.f32 %v398, %v406
        %v438 = vmul.f32 %v399, %v406
        %v439 = vmul.f32 %v400, %v406
        %v440 = vld [vmem:[#allocation8] sm:$0x1]
        %v442 = vlaneseq
        %v443 = vshrl.u32 %v442, 7
        %v444 = vsub.s32 0, %v443
        %v445 = vrot.slane %v440, %v444
        %v447 = vadd.f32 %v408, %v445
        %v448 = vadd.f32 %v409, %v445
        %v449 = vadd.f32 %v410, %v445
        %v450 = vadd.f32 %v411, %v445
        %v451 = vadd.f32 %v412, %v445
        %v452 = vadd.f32 %v413, %v445
        %v453 = vadd.f32 %v414, %v445
        %v454 = vadd.f32 %v415, %v445
        %v455 = vadd.f32 %v416, %v445
        %v456 = vadd.f32 %v417, %v445
        %v457 = vadd.f32 %v418, %v445
        %v458 = vadd.f32 %v419, %v445
        %v459 = vadd.f32 %v420, %v445
        %v460 = vadd.f32 %v421, %v445
        %v461 = vadd.f32 %v422, %v445
        %v462 = vadd.f32 %v423, %v445
        %v463 = vadd.f32 %v424, %v445
        %v464 = vadd.f32 %v425, %v445
        %v465 = vadd.f32 %v426, %v445
        %v466 = vadd.f32 %v427, %v445
        %v467 = vadd.f32 %v428, %v445
        %v468 = vadd.f32 %v429, %v445
        %v469 = vadd.f32 %v430, %v445
        %v470 = vadd.f32 %v431, %v445
        %v471 = vadd.f32 %v432, %v445
        %v472 = vadd.f32 %v433, %v445
        %v473 = vadd.f32 %v434, %v445
        %v474 = vadd.f32 %v435, %v445
        %v475 = vadd.f32 %v436, %v445
        %v476 = vadd.f32 %v437, %v445
        %v477 = vadd.f32 %v438, %v445
        %v478 = vadd.f32 %v439, %v445
        %vm479 = vcmp.gt.f32.partialorder %v447, 0.0
        %vm480 = vcmp.gt.f32.partialorder %v448, 0.0
        %vm481 = vcmp.gt.f32.partialorder %v449, 0.0
        %vm482 = vcmp.gt.f32.partialorder %v450, 0.0
        %vm483 = vcmp.gt.f32.partialorder %v451, 0.0
        %vm484 = vcmp.gt.f32.partialorder %v452, 0.0
        %vm485 = vcmp.gt.f32.partialorder %v453, 0.0
        %vm486 = vcmp.gt.f32.partialorder %v454, 0.0
        %vm487 = vcmp.gt.f32.partialorder %v455, 0.0
        %vm488 = vcmp.gt.f32.partialorder %v456, 0.0
        %vm489 = vcmp.gt.f32.partialorder %v457, 0.0
        %vm490 = vcmp.gt.f32.partialorder %v458, 0.0
        %vm491 = vcmp.gt.f32.partialorder %v459, 0.0
        %vm492 = vcmp.gt.f32.partialorder %v460, 0.0
        %vm493 = vcmp.gt.f32.partialorder %v461, 0.0
        %vm494 = vcmp.gt.f32.partialorder %v462, 0.0
        %vm495 = vcmp.gt.f32.partialorder %v463, 0.0
        %vm496 = vcmp.gt.f32.partialorder %v464, 0.0
        %vm497 = vcmp.gt.f32.partialorder %v465, 0.0
        %vm498 = vcmp.gt.f32.partialorder %v466, 0.0
        %vm499 = vcmp.gt.f32.partialorder %v467, 0.0
        %vm500 = vcmp.gt.f32.partialorder %v468, 0.0
        %vm501 = vcmp.gt.f32.partialorder %v469, 0.0
        %vm502 = vcmp.gt.f32.partialorder %v470, 0.0
        %vm503 = vcmp.gt.f32.partialorder %v471, 0.0
        %vm504 = vcmp.gt.f32.partialorder %v472, 0.0
        %vm505 = vcmp.gt.f32.partialorder %v473, 0.0
        %vm506 = vcmp.gt.f32.partialorder %v474, 0.0
        %vm507 = vcmp.gt.f32.partialorder %v475, 0.0
        %vm508 = vcmp.gt.f32.partialorder %v476, 0.0
        %vm509 = vcmp.gt.f32.partialorder %v477, 0.0
        %vm510 = vcmp.gt.f32.partialorder %v478, 0.0
        %v511 = vmul.f32 %v447, 0.01
        %v512 = vmul.f32 %v448, 0.01
        %v513 = vmul.f32 %v449, 0.01
        %v514 = vmul.f32 %v450, 0.01
        %v515 = vmul.f32 %v451, 0.01
        %v516 = vmul.f32 %v452, 0.01
        %v517 = vmul.f32 %v453, 0.01
        %v518 = vmul.f32 %v454, 0.01
        %v519 = vmul.f32 %v455, 0.01
        %v520 = vmul.f32 %v456, 0.01
        %v521 = vmul.f32 %v457, 0.01
        %v522 = vmul.f32 %v458, 0.01
        %v523 = vmul.f32 %v459, 0.01
        %v524 = vmul.f32 %v460, 0.01
        %v525 = vmul.f32 %v461, 0.01
        %v526 = vmul.f32 %v462, 0.01
        %v527 = vmul.f32 %v463, 0.01
        %v528 = vmul.f32 %v464, 0.01
        %v529 = vmul.f32 %v465, 0.01
        %v530 = vmul.f32 %v466, 0.01
        %v531 = vmul.f32 %v467, 0.01
        %v532 = vmul.f32 %v468, 0.01
        %v533 = vmul.f32 %v469, 0.01
        %v534 = vmul.f32 %v470, 0.01
        %v535 = vmul.f32 %v471, 0.01
        %v536 = vmul.f32 %v472, 0.01
        %v537 = vmul.f32 %v473, 0.01
        %v538 = vmul.f32 %v474, 0.01
        %v539 = vmul.f32 %v475, 0.01
        %v540 = vmul.f32 %v476, 0.01
        %v541 = vmul.f32 %v477, 0.01
        %v542 = vmul.f32 %v478, 0.01
        %v543 = vsel %vm479, %v447, %v511
        %v544 = vsel %vm480, %v448, %v512
        %v545 = vsel %vm481, %v449, %v513
        %v546 = vsel %vm482, %v450, %v514
        %v547 = vsel %vm483, %v451, %v515
        %v548 = vsel %vm484, %v452, %v516
        %v549 = vsel %vm485, %v453, %v517
        %v550 = vsel %vm486, %v454, %v518
        %v551 = vsel %vm487, %v455, %v519
        %v552 = vsel %vm488, %v456, %v520
        %v553 = vsel %vm489, %v457, %v521
        %v554 = vsel %vm490, %v458, %v522
        %v555 = vsel %vm491, %v459, %v523
        %v556 = vsel %vm492, %v460, %v524
        %v557 = vsel %vm493, %v461, %v525
        %v558 = vsel %vm494, %v462, %v526
        %v559 = vsel %vm495, %v463, %v527
        %v560 = vsel %vm496, %v464, %v528
        %v561 = vsel %vm497, %v465, %v529
        %v562 = vsel %vm498, %v466, %v530
        %v563 = vsel %vm499, %v467, %v531
        %v564 = vsel %vm500, %v468, %v532
        %v565 = vsel %vm501, %v469, %v533
        %v566 = vsel %vm502, %v470, %v534
        %v567 = vsel %vm503, %v471, %v535
        %v568 = vsel %vm504, %v472, %v536
        %v569 = vsel %vm505, %v473, %v537
        %v570 = vsel %vm506, %v474, %v538
        %v571 = vsel %vm507, %v475, %v539
        %v572 = vsel %vm508, %v476, %v540
        %v573 = vsel %vm509, %v477, %v541
        %v574 = vsel %vm510, %v478, %v542
        %vm575 = vcmask 261120
        %576 = vst.msk [vmem:[#allocation2] sm:$0xff] %vm575, 0.0
        %577 = vst.msk [vmem:[#allocation2 + $0x8] sm:$0xff] %vm575, 0.0
        %578 = vst.msk [vmem:[#allocation2 + $0x10] sm:$0xff] %vm575, 0.0
        %579 = vst.msk [vmem:[#allocation2 + $0x18] sm:$0xff] %vm575, 0.0
        %580 = vst.msk [vmem:[#allocation2 + $0x20] sm:$0xff] %vm575, 0.0
        %581 = vst.msk [vmem:[#allocation2 + $0x28] sm:$0xff] %vm575, 0.0
        %582 = vst.msk [vmem:[#allocation2 + $0x30] sm:$0xff] %vm575, 0.0
        %583 = vst.msk [vmem:[#allocation2 + $0x38] sm:$0xff] %vm575, 0.0
        %584 = vst.msk [vmem:[#allocation2 + $0x40] sm:$0xff] %vm575, 0.0
        %585 = vst.msk [vmem:[#allocation2 + $0x48] sm:$0xff] %vm575, 0.0
        %586 = vst.msk [vmem:[#allocation2 + $0x50] sm:$0xff] %vm575, 0.0
        %587 = vst.msk [vmem:[#allocation2 + $0x58] sm:$0xff] %vm575, 0.0
        %588 = vst.msk [vmem:[#allocation2 + $0x60] sm:$0xff] %vm575, 0.0
        %589 = vst.msk [vmem:[#allocation2 + $0x68] sm:$0xff] %vm575, 0.0
        %590 = vst.msk [vmem:[#allocation2 + $0x70] sm:$0xff] %vm575, 0.0
        %591 = vst.msk [vmem:[#allocation2 + $0x78] sm:$0xff] %vm575, 0.0
        %592 = vst.msk [vmem:[#allocation2 + $0x80] sm:$0xff] %vm575, 0.0
        %593 = vst.msk [vmem:[#allocation2 + $0x88] sm:$0xff] %vm575, 0.0
        %594 = vst.msk [vmem:[#allocation2 + $0x90] sm:$0xff] %vm575, 0.0
        %595 = vst.msk [vmem:[#allocation2 + $0x98] sm:$0xff] %vm575, 0.0
        %596 = vst.msk [vmem:[#allocation2 + $0xa0] sm:$0xff] %vm575, 0.0
        %597 = vst.msk [vmem:[#allocation2 + $0xa8] sm:$0xff] %vm575, 0.0
        %598 = vst.msk [vmem:[#allocation2 + $0xb0] sm:$0xff] %vm575, 0.0
        %599 = vst.msk [vmem:[#allocation2 + $0xb8] sm:$0xff] %vm575, 0.0
        %600 = vst.msk [vmem:[#allocation2 + $0xc0] sm:$0xff] %vm575, 0.0
        %601 = vst.msk [vmem:[#allocation2 + $0xc8] sm:$0xff] %vm575, 0.0
        %602 = vst.msk [vmem:[#allocation2 + $0xd0] sm:$0xff] %vm575, 0.0
        %603 = vst.msk [vmem:[#allocation2 + $0xd8] sm:$0xff] %vm575, 0.0
        %604 = vst.msk [vmem:[#allocation2 + $0xe0] sm:$0xff] %vm575, 0.0
        %605 = vst.msk [vmem:[#allocation2 + $0xe8] sm:$0xff] %vm575, 0.0
        %606 = vst.msk [vmem:[#allocation2 + $0xf0] sm:$0xff] %vm575, 0.0
        %607 = vst.msk [vmem:[#allocation2 + $0xf8] sm:$0xff] %vm575, 0.0
        %608 = vst.msk [vmem:[#allocation2 + $0x100] sm:$0xff] %vm575, 0.0
        %609 = vst.msk [vmem:[#allocation2 + $0x108] sm:$0xff] %vm575, 0.0
        %610 = vst.msk [vmem:[#allocation2 + $0x110] sm:$0xff] %vm575, 0.0
        %611 = vst.msk [vmem:[#allocation2 + $0x118] sm:$0xff] %vm575, 0.0
        %612 = vst.msk [vmem:[#allocation2 + $0x120] sm:$0xff] %vm575, 0.0
        %613 = vst.msk [vmem:[#allocation2 + $0x128] sm:$0xff] %vm575, 0.0
        %614 = vst.msk [vmem:[#allocation2 + $0x130] sm:$0xff] %vm575, 0.0
        %615 = vst.msk [vmem:[#allocation2 + $0x138] sm:$0xff] %vm575, 0.0
        %616 = vst.msk [vmem:[#allocation2 + $0x10] sm:$0xff] %vm575, %v543
        %617 = vst.msk [vmem:[#allocation2 + $0x18] sm:$0xff] %vm575, %v544
        %618 = vst.msk [vmem:[#allocation2 + $0x20] sm:$0xff] %vm575, %v545
        %619 = vst.msk [vmem:[#allocation2 + $0x28] sm:$0xff] %vm575, %v546
        %620 = vst.msk [vmem:[#allocation2 + $0x30] sm:$0xff] %vm575, %v547
        %621 = vst.msk [vmem:[#allocation2 + $0x38] sm:$0xff] %vm575, %v548
        %622 = vst.msk [vmem:[#allocation2 + $0x40] sm:$0xff] %vm575, %v549
        %623 = vst.msk [vmem:[#allocation2 + $0x48] sm:$0xff] %vm575, %v550
        %624 = vst.msk [vmem:[#allocation2 + $0x50] sm:$0xff] %vm575, %v551
        %625 = vst.msk [vmem:[#allocation2 + $0x58] sm:$0xff] %vm575, %v552
        %626 = vst.msk [vmem:[#allocation2 + $0x60] sm:$0xff] %vm575, %v553
        %627 = vst.msk [vmem:[#allocation2 + $0x68] sm:$0xff] %vm575, %v554
        %628 = vst.msk [vmem:[#allocation2 + $0x70] sm:$0xff] %vm575, %v555
        %629 = vst.msk [vmem:[#allocation2 + $0x78] sm:$0xff] %vm575, %v556
        %630 = vst.msk [vmem:[#allocation2 + $0x80] sm:$0xff] %vm575, %v557
        %631 = vst.msk [vmem:[#allocation2 + $0x88] sm:$0xff] %vm575, %v558
        %632 = vst.msk [vmem:[#allocation2 + $0xb0] sm:$0xff] %vm575, %v559
        %633 = vst.msk [vmem:[#allocation2 + $0xb8] sm:$0xff] %vm575, %v560
        %634 = vst.msk [vmem:[#allocation2 + $0xc0] sm:$0xff] %vm575, %v561
        %635 = vst.msk [vmem:[#allocation2 + $0xc8] sm:$0xff] %vm575, %v562
        %636 = vst.msk [vmem:[#allocation2 + $0xd0] sm:$0xff] %vm575, %v563
        %637 = vst.msk [vmem:[#allocation2 + $0xd8] sm:$0xff] %vm575, %v564
        %638 = vst.msk [vmem:[#allocation2 + $0xe0] sm:$0xff] %vm575, %v565
        %639 = vst.msk [vmem:[#allocation2 + $0xe8] sm:$0xff] %vm575, %v566
        %640 = vst.msk [vmem:[#allocation2 + $0xf0] sm:$0xff] %vm575, %v567
        %641 = vst.msk [vmem:[#allocation2 + $0xf8] sm:$0xff] %vm575, %v568
        %642 = vst.msk [vmem:[#allocation2 + $0x100] sm:$0xff] %vm575, %v569
        %643 = vst.msk [vmem:[#allocation2 + $0x108] sm:$0xff] %vm575, %v570
        %644 = vst.msk [vmem:[#allocation2 + $0x110] sm:$0xff] %vm575, %v571
        %645 = vst.msk [vmem:[#allocation2 + $0x118] sm:$0xff] %vm575, %v572
        %646 = vst.msk [vmem:[#allocation2 + $0x120] sm:$0xff] %vm575, %v573
        %647 = vst.msk [vmem:[#allocation2 + $0x128] sm:$0xff] %vm575, %v574
        %v648 = vld [vmem:[#allocation2] sm:$0xff]
        %v649 = vld [vmem:[#allocation2 + $0x8] sm:$0xff]
        %v650 = vld [vmem:[#allocation2 + $0x10] sm:$0xff]
        %v651 = vld [vmem:[#allocation2 + $0x18] sm:$0xff]
        %v652 = vld [vmem:[#allocation2 + $0x20] sm:$0xff]
        %v653 = vld [vmem:[#allocation2 + $0x28] sm:$0xff]
        %v654 = vld [vmem:[#allocation2 + $0x30] sm:$0xff]
        %v655 = vld [vmem:[#allocation2 + $0x38] sm:$0xff]
        %v656 = vld [vmem:[#allocation2 + $0x40] sm:$0xff]
        %v657 = vld [vmem:[#allocation2 + $0x48] sm:$0xff]
        %v658 = vld [vmem:[#allocation2 + $0x50] sm:$0xff]
        %v659 = vld [vmem:[#allocation2 + $0x58] sm:$0xff]
        %v660 = vld [vmem:[#allocation2 + $0x60] sm:$0xff]
        %v661 = vld [vmem:[#allocation2 + $0x68] sm:$0xff]
        %v662 = vld [vmem:[#allocation2 + $0x70] sm:$0xff]
        %v663 = vld [vmem:[#allocation2 + $0x78] sm:$0xff]
        %v664 = vld [vmem:[#allocation2 + $0xa0] sm:$0xff]
        %v665 = vld [vmem:[#allocation2 + $0xa8] sm:$0xff]
        %v666 = vld [vmem:[#allocation2 + $0xb0] sm:$0xff]
        %v667 = vld [vmem:[#allocation2 + $0xb8] sm:$0xff]
        %v668 = vld [vmem:[#allocation2 + $0xc0] sm:$0xff]
        %v669 = vld [vmem:[#allocation2 + $0xc8] sm:$0xff]
        %v670 = vld [vmem:[#allocation2 + $0xd0] sm:$0xff]
        %v671 = vld [vmem:[#allocation2 + $0xd8] sm:$0xff]
        %v672 = vld [vmem:[#allocation2 + $0xe0] sm:$0xff]
        %v673 = vld [vmem:[#allocation2 + $0xe8] sm:$0xff]
        %v674 = vld [vmem:[#allocation2 + $0xf0] sm:$0xff]
        %v675 = vld [vmem:[#allocation2 + $0xf8] sm:$0xff]
        %v676 = vld [vmem:[#allocation2 + $0x100] sm:$0xff]
        %v677 = vld [vmem:[#allocation2 + $0x108] sm:$0xff]
        %v678 = vld [vmem:[#allocation2 + $0x110] sm:$0xff]
        %v679 = vld [vmem:[#allocation2 + $0x118] sm:$0xff]
        %v680 = vpack.c.bf16 %v649, %v648
        %v681 = vpack.c.bf16 %v651, %v650
        %v682 = vpack.c.bf16 %v653, %v652
        %v683 = vpack.c.bf16 %v655, %v654
        %v684 = vpack.c.bf16 %v657, %v656
        %v685 = vpack.c.bf16 %v659, %v658
        %v686 = vpack.c.bf16 %v661, %v660
        %v687 = vpack.c.bf16 %v663, %v662
        %v688 = vpack.c.bf16 %v665, %v664
        %v689 = vpack.c.bf16 %v667, %v666
        %v690 = vpack.c.bf16 %v669, %v668
        %v691 = vpack.c.bf16 %v671, %v670
        %v692 = vpack.c.bf16 %v673, %v672
        %v693 = vpack.c.bf16 %v675, %v674
        %v694 = vpack.c.bf16 %v677, %v676
        %v695 = vpack.c.bf16 %v679, %v678
        %v696 = vld [vmem:[#allocation9] sm:$0xf]
        %v697 = vld [vmem:[#allocation9 + $0x4] sm:$0xf]
        %v698 = vld [vmem:[#allocation9 + $0x8] sm:$0xf]
        %v699 = vld [vmem:[#allocation9 + $0xc] sm:$0xf]
        %v700 = vld [vmem:[#allocation2 + $0x80] sm:$0xff]
        %v701 = vld [vmem:[#allocation2 + $0x88] sm:$0xff]
        %v702 = vld [vmem:[#allocation2 + $0x120] sm:$0xff]
        %v703 = vld [vmem:[#allocation2 + $0x128] sm:$0xff]
        %v704 = vpack.c.bf16 %v701, %v700
        %v705 = vpack.c.bf16 %v703, %v702
        %s706 = scalar_lea.vmem [#allocation9], 16
        %v707 = vld [vmem:[%s706] sm:$0xf]
        %v708 = vld [vmem:[%s706 + $0x4] sm:$0xf]
        %v709 = vld [vmem:[%s706 + $0x8] sm:$0xf]
        %v710 = vld [vmem:[%s706 + $0xc] sm:$0xf]
        %v715 = vunpack.c.l.b16 %v707
        %v716 = vunpack.c.l.b16 %v708
        %v717 = vunpack.c.l.b16 %v709
        %v718 = vunpack.c.l.b16 %v710
        %v719 = vpack.c.b16 %v716, %v715
        %v720 = vpack.c.b16 %v718, %v717
        %v724 = vsel %vm575, %v681, 0
        %v727 = vsel %vm575, %v682, 0
        %v730 = vsel %vm575, %v683, 0
        %v733 = vsel %vm575, %v684, 0
        %v736 = vsel %vm575, %v685, 0
        %v739 = vsel %vm575, %v686, 0
        %v742 = vsel %vm575, %v687, 0
        %v745 = vsel %vm575, %v704, 0
        %v748 = vsel %vm575, %v689, 0
        %v751 = vsel %vm575, %v690, 0
        %v754 = vsel %vm575, %v691, 0
        %v757 = vsel %vm575, %v692, 0
        %v760 = vsel %vm575, %v693, 0
        %v763 = vsel %vm575, %v694, 0
        %v766 = vsel %vm575, %v695, 0
        %v769 = vsel %vm575, %v705, 0
        %771 = vmatprep.subr.bf16.mxu0 0
        %772 = vmatpush1.bf16.msra.mxu0 %v719
        %773 = vmatprep.subr.bf16.mxu0 0
        %774 = vmatpush1.bf16.msra.mxu0 %v720
        %775 = vmatprep.subr.bf16.mxu0 0
        %776 = vmatpush1.bf16.msra.mxu0 0
        %777 = vmatprep.subr.bf16.mxu0 0
        %778 = vmatpush1.bf16.msra.mxu0 0
        %779 = vmatprep.subr.bf16.mxu0 0
        %780 = vmatpush1.bf16.msra.mxu0 0
        %781 = vmatprep.subr.bf16.mxu0 0
        %782 = vmatpush1.bf16.msra.mxu0 0
        %783 = vmatprep.subr.bf16.mxu0 0
        %784 = vmatpush1.bf16.msra.mxu0 0
        %785 = vmatprep.subr.bf16.mxu0 0
        %786 = vmatpush1.bf16.msra.mxu0 0
        %787 = vmatprep.subr.bf16.mxu0 0
        %788 = vmatpush1.bf16.msra.mxu0 0
        %789 = vmatprep.subr.bf16.mxu0 0
        %790 = vmatpush1.bf16.msra.mxu0 0
        %791 = vmatprep.subr.bf16.mxu0 0
        %792 = vmatpush1.bf16.msra.mxu0 0
        %793 = vmatprep.subr.bf16.mxu0 0
        %794 = vmatpush1.bf16.msra.mxu0 0
        %795 = vmatprep.subr.bf16.mxu0 0
        %796 = vmatpush1.bf16.msra.mxu0 0
        %797 = vmatprep.subr.bf16.mxu0 0
        %798 = vmatpush1.bf16.msra.mxu0 0
        %799 = vmatprep.subr.bf16.mxu0 0
        %800 = vmatpush1.bf16.msra.mxu0 0
        %801 = vmatprep.subr.bf16.mxu0 0
        %802 = vmatpush1.bf16.msra.mxu0 0
        %803 = vmatprep.mubr.bf16.mxu0 0
        %804 = vmatmul.mubr.bf16.gmra.mrb[0].mxu0 %v724
        %v805 = vpop.f32.mrb[0].mxu0
        %v806 = vadd.f32 0.0, %v805
        %v807 = vpop.f32.mrb[0].mxu0
        %v808 = vpop.f32.mrb[0].mxu0
        %v809 = vadd.f32 0.0, %v808
        %v810 = vpop.f32.mrb[0].mxu0
        %811 = vmatprep.mubr.bf16.mxu0 0
        %812 = vmatmul.mubr.bf16.gmra.mrb[0].mxu0 %v727
        %v813 = vpop.f32.mrb[0].mxu0
        %v814 = vadd.f32 0.0, %v813
        %v815 = vpop.f32.mrb[0].mxu0
        %v816 = vpop.f32.mrb[0].mxu0
        %v817 = vadd.f32 0.0, %v816
        %v818 = vpop.f32.mrb[0].mxu0
        %819 = vmatprep.mubr.bf16.mxu0 0
        %820 = vmatmul.mubr.bf16.gmra.mrb[0].mxu0 %v730
        %v821 = vpop.f32.mrb[0].mxu0
        %v822 = vadd.f32 0.0, %v821
        %v823 = vpop.f32.mrb[0].mxu0
        %v824 = vpop.f32.mrb[0].mxu0
        %v825 = vadd.f32 0.0, %v824
        %v826 = vpop.f32.mrb[0].mxu0
        %827 = vmatprep.mubr.bf16.mxu0 0
        %828 = vmatmul.mubr.bf16.gmra.mrb[0].mxu0 %v733
        %v829 = vpop.f32.mrb[0].mxu0
        %v830 = vadd.f32 0.0, %v829
        %v831 = vpop.f32.mrb[0].mxu0
        %v832 = vpop.f32.mrb[0].mxu0
        %v833 = vadd.f32 0.0, %v832
        %v834 = vpop.f32.mrb[0].mxu0
        %835 = vmatprep.mubr.bf16.mxu0 0
        %836 = vmatmul.mubr.bf16.gmra.mrb[0].mxu0 %v736
        %v837 = vpop.f32.mrb[0].mxu0
        %v838 = vadd.f32 0.0, %v837
        %v839 = vpop.f32.mrb[0].mxu0
        %v840 = vpop.f32.mrb[0].mxu0
        %v841 = vadd.f32 0.0, %v840
        %v842 = vpop.f32.mrb[0].mxu0
        %843 = vmatprep.mubr.bf16.mxu0 0
        %844 = vmatmul.mubr.bf16.gmra.mrb[0].mxu0 %v739
        %v845 = vpop.f32.mrb[0].mxu0
        %v846 = vadd.f32 0.0, %v845
        %v847 = vpop.f32.mrb[0].mxu0
        %v848 = vpop.f32.mrb[0].mxu0
        %v849 = vadd.f32 0.0, %v848
        %v850 = vpop.f32.mrb[0].mxu0
        %851 = vmatprep.mubr.bf16.mxu0 0
        %852 = vmatmul.mubr.bf16.gmra.mrb[0].mxu0 %v742
        %v853 = vpop.f32.mrb[0].mxu0
        %v854 = vadd.f32 0.0, %v853
        %v855 = vpop.f32.mrb[0].mxu0
        %v856 = vpop.f32.mrb[0].mxu0
        %v857 = vadd.f32 0.0, %v856
        %v858 = vpop.f32.mrb[0].mxu0
        %859 = vmatprep.mubr.bf16.mxu0 0
        %860 = vmatmul.mubr.bf16.gmra.mrb[0].mxu0 %v745
        %v861 = vpop.f32.mrb[0].mxu0
        %v862 = vadd.f32 0.0, %v861
        %v863 = vpop.f32.mrb[0].mxu0
        %v864 = vpop.f32.mrb[0].mxu0
        %v865 = vadd.f32 0.0, %v864
        %v866 = vpop.f32.mrb[0].mxu0
        %867 = vmatprep.mubr.bf16.mxu0 0
        %868 = vmatmul.mubr.bf16.gmra.mrb[0].mxu0 %v748
        %v869 = vpop.f32.mrb[0].mxu0
        %v870 = vadd.f32 0.0, %v869
        %v871 = vpop.f32.mrb[0].mxu0
        %v872 = vpop.f32.mrb[0].mxu0
        %v873 = vadd.f32 0.0, %v872
        %v874 = vpop.f32.mrb[0].mxu0
        %875 = vmatprep.mubr.bf16.mxu0 0
        %876 = vmatmul.mubr.bf16.gmra.mrb[0].mxu0 %v751
        %v877 = vpop.f32.mrb[0].mxu0
        %v878 = vadd.f32 0.0, %v877
        %v879 = vpop.f32.mrb[0].mxu0
        %v880 = vpop.f32.mrb[0].mxu0
        %v881 = vadd.f32 0.0, %v880
        %v882 = vpop.f32.mrb[0].mxu0
        %883 = vmatprep.mubr.bf16.mxu0 0
        %884 = vmatmul.mubr.bf16.gmra.mrb[0].mxu0 %v754
        %v885 = vpop.f32.mrb[0].mxu0
        %v886 = vadd.f32 0.0, %v885
        %v887 = vpop.f32.mrb[0].mxu0
        %v888 = vpop.f32.mrb[0].mxu0
        %v889 = vadd.f32 0.0, %v888
        %v890 = vpop.f32.mrb[0].mxu0
        %891 = vmatprep.mubr.bf16.mxu0 0
        %892 = vmatmul.mubr.bf16.gmra.mrb[0].mxu0 %v757
        %v893 = vpop.f32.mrb[0].mxu0
        %v894 = vadd.f32 0.0, %v893
        %v895 = vpop.f32.mrb[0].mxu0
        %v896 = vpop.f32.mrb[0].mxu0
        %v897 = vadd.f32 0.0, %v896
        %v898 = vpop.f32.mrb[0].mxu0
        %899 = vmatprep.mubr.bf16.mxu0 0
        %900 = vmatmul.mubr.bf16.gmra.mrb[0].mxu0 %v760
        %v901 = vpop.f32.mrb[0].mxu0
        %v902 = vadd.f32 0.0, %v901
        %v903 = vpop.f32.mrb[0].mxu0
        %v904 = vpop.f32.mrb[0].mxu0
        %v905 = vadd.f32 0.0, %v904
        %v906 = vpop.f32.mrb[0].mxu0
        %907 = vmatprep.mubr.bf16.mxu0 0
        %908 = vmatmul.mubr.bf16.gmra.mrb[0].mxu0 %v763
        %v909 = vpop.f32.mrb[0].mxu0
        %v910 = vadd.f32 0.0, %v909
        %v911 = vpop.f32.mrb[0].mxu0
        %v912 = vpop.f32.mrb[0].mxu0
        %v913 = vadd.f32 0.0, %v912
        %v914 = vpop.f32.mrb[0].mxu0
        %915 = vmatprep.mubr.bf16.mxu0 0
        %916 = vmatmul.mubr.bf16.gmra.mrb[0].mxu0 %v766
        %v917 = vpop.f32.mrb[0].mxu0
        %v918 = vadd.f32 0.0, %v917
        %v919 = vpop.f32.mrb[0].mxu0
        %v920 = vpop.f32.mrb[0].mxu0
        %v921 = vadd.f32 0.0, %v920
        %v922 = vpop.f32.mrb[0].mxu0
        %923 = vmatprep.mubr.bf16.mxu0 0
        %924 = vmatmul.mubr.bf16.gmra.mrb[0].mxu0 %v769
        %v925 = vpop.f32.mrb[0].mxu0
        %v926 = vadd.f32 0.0, %v925
        %v927 = vpop.f32.mrb[0].mxu0
        %v928 = vpop.f32.mrb[0].mxu0
        %v929 = vadd.f32 0.0, %v928
        %v930 = vpop.f32.mrb[0].mxu0
        %931 = vdwg.mxu0
        %v936 = vunpack.c.l.b16 %v696
        %v937 = vunpack.c.l.b16 %v697
        %v938 = vunpack.c.l.b16 %v698
        %v939 = vunpack.c.l.b16 %v699
        %v940 = vpack.c.b16 %v937, %v936
        %v941 = vpack.c.b16 %v939, %v938
        %v945 = vsel %vm575, %v680, 0
        %v948 = vsel %vm575, %v688, 0
        %950 = vmatprep.subr.bf16.mxu0 0
        %951 = vmatpush1.bf16.msra.mxu0 %v940
        %952 = vmatprep.subr.bf16.mxu0 0
        %953 = vmatpush1.bf16.msra.mxu0 %v941
        %954 = vmatprep.subr.bf16.mxu0 0
        %955 = vmatpush1.bf16.msra.mxu0 0
        %956 = vmatprep.subr.bf16.mxu0 0
        %957 = vmatpush1.bf16.msra.mxu0 0
        %958 = vmatprep.subr.bf16.mxu0 0
        %959 = vmatpush1.bf16.msra.mxu0 0
        %960 = vmatprep.subr.bf16.mxu0 0
        %961 = vmatpush1.bf16.msra.mxu0 0
        %962 = vmatprep.subr.bf16.mxu0 0
        %963 = vmatpush1.bf16.msra.mxu0 0
        %964 = vmatprep.subr.bf16.mxu0 0
        %965 = vmatpush1.bf16.msra.mxu0 0
        %966 = vmatprep.subr.bf16.mxu0 0
        %967 = vmatpush1.bf16.msra.mxu0 0
        %968 = vmatprep.subr.bf16.mxu0 0
        %969 = vmatpush1.bf16.msra.mxu0 0
        %970 = vmatprep.subr.bf16.mxu0 0
        %971 = vmatpush1.bf16.msra.mxu0 0
        %972 = vmatprep.subr.bf16.mxu0 0
        %973 = vmatpush1.bf16.msra.mxu0 0
        %974 = vmatprep.subr.bf16.mxu0 0
        %975 = vmatpush1.bf16.msra.mxu0 0
        %976 = vmatprep.subr.bf16.mxu0 0
        %977 = vmatpush1.bf16.msra.mxu0 0
        %978 = vmatprep.subr.bf16.mxu0 0
        %979 = vmatpush1.bf16.msra.mxu0 0
        %980 = vmatprep.subr.bf16.mxu0 0
        %981 = vmatpush1.bf16.msra.mxu0 0
        %982 = vmatprep.mubr.bf16.mxu0 0
        %983 = vmatmul.mubr.bf16.gmra.mrb[0].mxu0 %v945
        %v984 = vpop.f32.mrb[0].mxu0
        %v985 = vadd.f32 %v806, %v984
        %v986 = vpop.f32.mrb[0].mxu0
        %v987 = vpop.f32.mrb[0].mxu0
        %v988 = vadd.f32 %v809, %v987
        %v989 = vpop.f32.mrb[0].mxu0
        %990 = vmatprep.mubr.bf16.mxu0 0
        %991 = vmatmul.mubr.bf16.gmra.mrb[0].mxu0 %v724
        %v992 = vpop.f32.mrb[0].mxu0
        %v993 = vadd.f32 %v814, %v992
        %v994 = vpop.f32.mrb[0].mxu0
        %v995 = vpop.f32.mrb[0].mxu0
        %v996 = vadd.f32 %v817, %v995
        %v997 = vpop.f32.mrb[0].mxu0
        %998 = vmatprep.mubr.bf16.mxu0 0
        %999 = vmatmul.mubr.bf16.gmra.mrb[0].mxu0 %v727
        %v1000 = vpop.f32.mrb[0].mxu0
        %v1001 = vadd.f32 %v822, %v1000
        %v1002 = vpop.f32.mrb[0].mxu0
        %v1003 = vpop.f32.mrb[0].mxu0
        %v1004 = vadd.f32 %v825, %v1003
        %v1005 = vpop.f32.mrb[0].mxu0
        %1006 = vmatprep.mubr.bf16.mxu0 0
        %1007 = vmatmul.mubr.bf16.gmra.mrb[0].mxu0 %v730
        %v1008 = vpop.f32.mrb[0].mxu0
        %v1009 = vadd.f32 %v830, %v1008
        %v1010 = vpop.f32.mrb[0].mxu0
        %v1011 = vpop.f32.mrb[0].mxu0
        %v1012 = vadd.f32 %v833, %v1011
        %v1013 = vpop.f32.mrb[0].mxu0
        %1014 = vmatprep.mubr.bf16.mxu0 0
        %1015 = vmatmul.mubr.bf16.gmra.mrb[0].mxu0 %v733
        %v1016 = vpop.f32.mrb[0].mxu0
        %v1017 = vadd.f32 %v838, %v1016
        %v1018 = vpop.f32.mrb[0].mxu0
        %v1019 = vpop.f32.mrb[0].mxu0
        %v1020 = vadd.f32 %v841, %v1019
        %v1021 = vpop.f32.mrb[0].mxu0
        %1022 = vmatprep.mubr.bf16.mxu0 0
        %1023 = vmatmul.mubr.bf16.gmra.mrb[0].mxu0 %v736
        %v1024 = vpop.f32.mrb[0].mxu0
        %v1025 = vadd.f32 %v846, %v1024
        %v1026 = vpop.f32.mrb[0].mxu0
        %v1027 = vpop.f32.mrb[0].mxu0
        %v1028 = vadd.f32 %v849, %v1027
        %v1029 = vpop.f32.mrb[0].mxu0
        %1030 = vmatprep.mubr.bf16.mxu0 0
        %1031 = vmatmul.mubr.bf16.gmra.mrb[0].mxu0 %v739
        %v1032 = vpop.f32.mrb[0].mxu0
        %v1033 = vadd.f32 %v854, %v1032
        %v1034 = vpop.f32.mrb[0].mxu0
        %v1035 = vpop.f32.mrb[0].mxu0
        %v1036 = vadd.f32 %v857, %v1035
        %v1037 = vpop.f32.mrb[0].mxu0
        %1038 = vmatprep.mubr.bf16.mxu0 0
        %1039 = vmatmul.mubr.bf16.gmra.mrb[0].mxu0 %v742
        %v1040 = vpop.f32.mrb[0].mxu0
        %v1041 = vadd.f32 %v862, %v1040
        %v1042 = vpop.f32.mrb[0].mxu0
        %v1043 = vpop.f32.mrb[0].mxu0
        %v1044 = vadd.f32 %v865, %v1043
        %v1045 = vpop.f32.mrb[0].mxu0
        %1046 = vmatprep.mubr.bf16.mxu0 0
        %1047 = vmatmul.mubr.bf16.gmra.mrb[0].mxu0 %v948
        %v1048 = vpop.f32.mrb[0].mxu0
        %v1049 = vadd.f32 %v870, %v1048
        %v1050 = vpop.f32.mrb[0].mxu0
        %v1051 = vpop.f32.mrb[0].mxu0
        %v1052 = vadd.f32 %v873, %v1051
        %v1053 = vpop.f32.mrb[0].mxu0
        %1054 = vmatprep.mubr.bf16.mxu0 0
        %1055 = vmatmul.mubr.bf16.gmra.mrb[0].mxu0 %v748
        %v1056 = vpop.f32.mrb[0].mxu0
        %v1057 = vadd.f32 %v878, %v1056
        %v1058 = vpop.f32.mrb[0].mxu0
        %v1059 = vpop.f32.mrb[0].mxu0
        %v1060 = vadd.f32 %v881, %v1059
        %v1061 = vpop.f32.mrb[0].mxu0
        %1062 = vmatprep.mubr.bf16.mxu0 0
        %1063 = vmatmul.mubr.bf16.gmra.mrb[0].mxu0 %v751
        %v1064 = vpop.f32.mrb[0].mxu0
        %v1065 = vadd.f32 %v886, %v1064
        %v1066 = vpop.f32.mrb[0].mxu0
        %v1067 = vpop.f32.mrb[0].mxu0
        %v1068 = vadd.f32 %v889, %v1067
        %v1069 = vpop.f32.mrb[0].mxu0
        %1070 = vmatprep.mubr.bf16.mxu0 0
        %1071 = vmatmul.mubr.bf16.gmra.mrb[0].mxu0 %v754
        %v1072 = vpop.f32.mrb[0].mxu0
        %v1073 = vadd.f32 %v894, %v1072
        %v1074 = vpop.f32.mrb[0].mxu0
        %v1075 = vpop.f32.mrb[0].mxu0
        %v1076 = vadd.f32 %v897, %v1075
        %v1077 = vpop.f32.mrb[0].mxu0
        %1078 = vmatprep.mubr.bf16.mxu0 0
        %1079 = vmatmul.mubr.bf16.gmra.mrb[0].mxu0 %v757
        %v1080 = vpop.f32.mrb[0].mxu0
        %v1081 = vadd.f32 %v902, %v1080
        %v1082 = vpop.f32.mrb[0].mxu0
        %v1083 = vpop.f32.mrb[0].mxu0
        %v1084 = vadd.f32 %v905, %v1083
        %v1085 = vpop.f32.mrb[0].mxu0
        %1086 = vmatprep.mubr.bf16.mxu0 0
        %1087 = vmatmul.mubr.bf16.gmra.mrb[0].mxu0 %v760
        %v1088 = vpop.f32.mrb[0].mxu0
        %v1089 = vadd.f32 %v910, %v1088
        %v1090 = vpop.f32.mrb[0].mxu0
        %v1091 = vpop.f32.mrb[0].mxu0
        %v1092 = vadd.f32 %v913, %v1091
        %v1093 = vpop.f32.mrb[0].mxu0
        %1094 = vmatprep.mubr.bf16.mxu0 0
        %1095 = vmatmul.mubr.bf16.gmra.mrb[0].mxu0 %v763
        %v1096 = vpop.f32.mrb[0].mxu0
        %v1097 = vadd.f32 %v918, %v1096
        %v1098 = vpop.f32.mrb[0].mxu0
        %v1099 = vpop.f32.mrb[0].mxu0
        %v1100 = vadd.f32 %v921, %v1099
        %v1101 = vpop.f32.mrb[0].mxu0
        %1102 = vmatprep.mubr.bf16.mxu0 0
        %1103 = vmatmul.mubr.bf16.gmra.mrb[0].mxu0 %v766
        %v1104 = vpop.f32.mrb[0].mxu0
        %v1105 = vadd.f32 %v926, %v1104
        %v1106 = vpop.f32.mrb[0].mxu0
        %v1107 = vpop.f32.mrb[0].mxu0
        %v1108 = vadd.f32 %v929, %v1107
        %v1109 = vpop.f32.mrb[0].mxu0
        %1110 = vdwg.mxu0
        %v1111 = vld [vmem:[#allocation2 + $0x20] sm:$0xff]
        %v1112 = vld [vmem:[#allocation2 + $0x28] sm:$0xff]
        %v1113 = vld [vmem:[#allocation2 + $0x30] sm:$0xff]
        %v1114 = vld [vmem:[#allocation2 + $0x38] sm:$0xff]
        %v1115 = vld [vmem:[#allocation2 + $0x40] sm:$0xff]
        %v1116 = vld [vmem:[#allocation2 + $0x48] sm:$0xff]
        %v1117 = vld [vmem:[#allocation2 + $0x50] sm:$0xff]
        %v1118 = vld [vmem:[#allocation2 + $0x58] sm:$0xff]
        %v1119 = vld [vmem:[#allocation2 + $0x60] sm:$0xff]
        %v1120 = vld [vmem:[#allocation2 + $0x68] sm:$0xff]
        %v1121 = vld [vmem:[#allocation2 + $0x70] sm:$0xff]
        %v1122 = vld [vmem:[#allocation2 + $0x78] sm:$0xff]
        %v1123 = vld [vmem:[#allocation2 + $0x80] sm:$0xff]
        %v1124 = vld [vmem:[#allocation2 + $0x88] sm:$0xff]
        %v1125 = vld [vmem:[#allocation2 + $0x90] sm:$0xff]
        %v1126 = vld [vmem:[#allocation2 + $0x98] sm:$0xff]
        %v1127 = vld [vmem:[#allocation2 + $0xc0] sm:$0xff]
        %v1128 = vld [vmem:[#allocation2 + $0xc8] sm:$0xff]
        %v1129 = vld [vmem:[#allocation2 + $0xd0] sm:$0xff]
        %v1130 = vld [vmem:[#allocation2 + $0xd8] sm:$0xff]
        %v1131 = vld [vmem:[#allocation2 + $0xe0] sm:$0xff]
        %v1132 = vld [vmem:[#allocation2 + $0xe8] sm:$0xff]
        %v1133 = vld [vmem:[#allocation2 + $0xf0] sm:$0xff]
        %v1134 = vld [vmem:[#allocation2 + $0xf8] sm:$0xff]
        %v1135 = vld [vmem:[#allocation2 + $0x100] sm:$0xff]
        %v1136 = vld [vmem:[#allocation2 + $0x108] sm:$0xff]
        %v1137 = vld [vmem:[#allocation2 + $0x110] sm:$0xff]
        %v1138 = vld [vmem:[#allocation2 + $0x118] sm:$0xff]
        %v1139 = vld [vmem:[#allocation2 + $0x120] sm:$0xff]
        %v1140 = vld [vmem:[#allocation2 + $0x128] sm:$0xff]
        %v1141 = vld [vmem:[#allocation2 + $0x130] sm:$0xff]
        %v1142 = vld [vmem:[#allocation2 + $0x138] sm:$0xff]
        %v1143 = vpack.c.bf16 %v1112, %v1111
        %v1144 = vpack.c.bf16 %v1114, %v1113
        %v1145 = vpack.c.bf16 %v1116, %v1115
        %v1146 = vpack.c.bf16 %v1118, %v1117
        %v1147 = vpack.c.bf16 %v1120, %v1119
        %v1148 = vpack.c.bf16 %v1122, %v1121
        %v1149 = vpack.c.bf16 %v1124, %v1123
        %v1150 = vpack.c.bf16 %v1126, %v1125
        %v1151 = vpack.c.bf16 %v1128, %v1127
        %v1152 = vpack.c.bf16 %v1130, %v1129
        %v1153 = vpack.c.bf16 %v1132, %v1131
        %v1154 = vpack.c.bf16 %v1134, %v1133
        %v1155 = vpack.c.bf16 %v1136, %v1135
        %v1156 = vpack.c.bf16 %v1138, %v1137
        %v1157 = vpack.c.bf16 %v1140, %v1139
        %v1158 = vpack.c.bf16 %v1142, %v1141
        %s1159 = scalar_lea.vmem [#allocation9], 32
        %v1160 = vld [vmem:[%s1159] sm:$0xf]
        %v1161 = vld [vmem:[%s1159 + $0x4] sm:$0xf]
        %v1162 = vld [vmem:[%s1159 + $0x8] sm:$0xf]
        %v1163 = vld [vmem:[%s1159 + $0xc] sm:$0xf]
        %v1168 = vunpack.c.l.b16 %v1160
        %v1169 = vunpack.c.l.b16 %v1161
        %v1170 = vunpack.c.l.b16 %v1162
        %v1171 = vunpack.c.l.b16 %v1163
        %v1172 = vpack.c.b16 %v1169, %v1168
        %v1173 = vpack.c.b16 %v1171, %v1170
        %v1177 = vsel %vm575, %v1143, 0
        %v1180 = vsel %vm575, %v1144, 0
        %v1183 = vsel %vm575, %v1145, 0
        %v1186 = vsel %vm575, %v1146, 0
        %v1189 = vsel %vm575, %v1147, 0
        %v1192 = vsel %vm575, %v1148, 0
        %v1195 = vsel %vm575, %v1149, 0
        %v1198 = vsel %vm575, %v1150, 0
        %v1201 = vsel %vm575, %v1151, 0
        %v1204 = vsel %vm575, %v1152, 0
        %v1207 = vsel %vm575, %v1153, 0
        %v1210 = vsel %vm575, %v1154, 0
        %v1213 = vsel %vm575, %v1155, 0
        %v1216 = vsel %vm575, %v1156, 0
        %v1219 = vsel %vm575, %v1157, 0
        %v1222 = vsel %vm575, %v1158, 0
        %1224 = vmatprep.subr.bf16.mxu0 0
        %1225 = vmatpush1.bf16.msra.mxu0 %v1172
        %1226 = vmatprep.subr.bf16.mxu0 0
        %1227 = vmatpush1.bf16.msra.mxu0 %v1173
        %1228 = vmatprep.subr.bf16.mxu0 0
        %1229 = vmatpush1.bf16.msra.mxu0 0
        %1230 = vmatprep.subr.bf16.mxu0 0
        %1231 = vmatpush1.bf16.msra.mxu0 0
        %1232 = vmatprep.subr.bf16.mxu0 0
        %1233 = vmatpush1.bf16.msra.mxu0 0
        %1234 = vmatprep.subr.bf16.mxu0 0
        %1235 = vmatpush1.bf16.msra.mxu0 0
        %1236 = vmatprep.subr.bf16.mxu0 0
        %1237 = vmatpush1.bf16.msra.mxu0 0
        %1238 = vmatprep.subr.bf16.mxu0 0
        %1239 = vmatpush1.bf16.msra.mxu0 0
        %1240 = vmatprep.subr.bf16.mxu0 0
        %1241 = vmatpush1.bf16.msra.mxu0 0
        %1242 = vmatprep.subr.bf16.mxu0 0
        %1243 = vmatpush1.bf16.msra.mxu0 0
        %1244 = vmatprep.subr.bf16.mxu0 0
        %1245 = vmatpush1.bf16.msra.mxu0 0
        %1246 = vmatprep.subr.bf16.mxu0 0
        %1247 = vmatpush1.bf16.msra.mxu0 0
        %1248 = vmatprep.subr.bf16.mxu0 0
        %1249 = vmatpush1.bf16.msra.mxu0 0
        %1250 = vmatprep.subr.bf16.mxu0 0
        %1251 = vmatpush1.bf16.msra.mxu0 0
        %1252 = vmatprep.subr.bf16.mxu0 0
        %1253 = vmatpush1.bf16.msra.mxu0 0
        %1254 = vmatprep.subr.bf16.mxu0 0
        %1255 = vmatpush1.bf16.msra.mxu0 0
        %1256 = vmatprep.mubr.bf16.mxu0 0
        %1257 = vmatmul.mubr.bf16.gmra.mrb[0].mxu0 %v1177
        %v1258 = vpop.f32.mrb[0].mxu0
        %v1259 = vadd.f32 0.0, %v1258
        %v1260 = vpop.f32.mrb[0].mxu0
        %v1261 = vpop.f32.mrb[0].mxu0
        %v1262 = vadd.f32 0.0, %v1261
        %v1263 = vpop.f32.mrb[0].mxu0
        %1264 = vmatprep.mubr.bf16.mxu0 0
        %1265 = vmatmul.mubr.bf16.gmra.mrb[0].mxu0 %v1180
        %v1266 = vpop.f32.mrb[0].mxu0
        %v1267 = vadd.f32 0.0, %v1266
        %v1268 = vpop.f32.mrb[0].mxu0
        %v1269 = vpop.f32.mrb[0].mxu0
        %v1270 = vadd.f32 0.0, %v1269
        %v1271 = vpop.f32.mrb[0].mxu0
        %1272 = vmatprep.mubr.bf16.mxu0 0
        %1273 = vmatmul.mubr.bf16.gmra.mrb[0].mxu0 %v1183
        %v1274 = vpop.f32.mrb[0].mxu0
        %v1275 = vadd.f32 0.0, %v1274
        %v1276 = vpop.f32.mrb[0].mxu0
        %v1277 = vpop.f32.mrb[0].mxu0
        %v1278 = vadd.f32 0.0, %v1277
        %v1279 = vpop.f32.mrb[0].mxu0
        %1280 = vmatprep.mubr.bf16.mxu0 0
        %1281 = vmatmul.mubr.bf16.gmra.mrb[0].mxu0 %v1186
        %v1282 = vpop.f32.mrb[0].mxu0
        %v1283 = vadd.f32 0.0, %v1282
        %v1284 = vpop.f32.mrb[0].mxu0
        %v1285 = vpop.f32.mrb[0].mxu0
        %v1286 = vadd.f32 0.0, %v1285
        %v1287 = vpop.f32.mrb[0].mxu0
        %1288 = vmatprep.mubr.bf16.mxu0 0
        %1289 = vmatmul.mubr.bf16.gmra.mrb[0].mxu0 %v1189
        %v1290 = vpop.f32.mrb[0].mxu0
        %v1291 = vadd.f32 0.0, %v1290
        %v1292 = vpop.f32.mrb[0].mxu0
        %v1293 = vpop.f32.mrb[0].mxu0
        %v1294 = vadd.f32 0.0, %v1293
        %v1295 = vpop.f32.mrb[0].mxu0
        %1296 = vmatprep.mubr.bf16.mxu0 0
        %1297 = vmatmul.mubr.bf16.gmra.mrb[0].mxu0 %v1192
        %v1298 = vpop.f32.mrb[0].mxu0
        %v1299 = vadd.f32 0.0, %v1298
        %v1300 = vpop.f32.mrb[0].mxu0
        %v1301 = vpop.f32.mrb[0].mxu0
        %v1302 = vadd.f32 0.0, %v1301
        %v1303 = vpop.f32.mrb[0].mxu0
        %1304 = vmatprep.mubr.bf16.mxu0 0
        %1305 = vmatmul.mubr.bf16.gmra.mrb[0].mxu0 %v1195
        %v1306 = vpop.f32.mrb[0].mxu0
        %v1307 = vadd.f32 0.0, %v1306
        %v1308 = vpop.f32.mrb[0].mxu0
        %v1309 = vpop.f32.mrb[0].mxu0
        %v1310 = vadd.f32 0.0, %v1309
        %v1311 = vpop.f32.mrb[0].mxu0
        %1312 = vmatprep.mubr.bf16.mxu0 0
        %1313 = vmatmul.mubr.bf16.gmra.mrb[0].mxu0 %v1198
        %v1314 = vpop.f32.mrb[0].mxu0
        %v1315 = vadd.f32 0.0, %v1314
        %v1316 = vpop.f32.mrb[0].mxu0
        %v1317 = vpop.f32.mrb[0].mxu0
        %v1318 = vadd.f32 0.0, %v1317
        %v1319 = vpop.f32.mrb[0].mxu0
        %1320 = vmatprep.mubr.bf16.mxu0 0
        %1321 = vmatmul.mubr.bf16.gmra.mrb[0].mxu0 %v1201
        %v1322 = vpop.f32.mrb[0].mxu0
        %v1323 = vadd.f32 0.0, %v1322
        %v1324 = vpop.f32.mrb[0].mxu0
        %v1325 = vpop.f32.mrb[0].mxu0
        %v1326 = vadd.f32 0.0, %v1325
        %v1327 = vpop.f32.mrb[0].mxu0
        %1328 = vmatprep.mubr.bf16.mxu0 0
        %1329 = vmatmul.mubr.bf16.gmra.mrb[0].mxu0 %v1204
        %v1330 = vpop.f32.mrb[0].mxu0
        %v1331 = vadd.f32 0.0, %v1330
        %v1332 = vpop.f32.mrb[0].mxu0
        %v1333 = vpop.f32.mrb[0].mxu0
        %v1334 = vadd.f32 0.0, %v1333
        %v1335 = vpop.f32.mrb[0].mxu0
        %1336 = vmatprep.mubr.bf16.mxu0 0
        %1337 = vmatmul.mubr.bf16.gmra.mrb[0].mxu0 %v1207
        %v1338 = vpop.f32.mrb[0].mxu0
        %v1339 = vadd.f32 0.0, %v1338
        %v1340 = vpop.f32.mrb[0].mxu0
        %v1341 = vpop.f32.mrb[0].mxu0
        %v1342 = vadd.f32 0.0, %v1341
        %v1343 = vpop.f32.mrb[0].mxu0
        %1344 = vmatprep.mubr.bf16.mxu0 0
        %1345 = vmatmul.mubr.bf16.gmra.mrb[0].mxu0 %v1210
        %v1346 = vpop.f32.mrb[0].mxu0
        %v1347 = vadd.f32 0.0, %v1346
        %v1348 = vpop.f32.mrb[0].mxu0
        %v1349 = vpop.f32.mrb[0].mxu0
        %v1350 = vadd.f32 0.0, %v1349
        %v1351 = vpop.f32.mrb[0].mxu0
        %1352 = vmatprep.mubr.bf16.mxu0 0
        %1353 = vmatmul.mubr.bf16.gmra.mrb[0].mxu0 %v1213
        %v1354 = vpop.f32.mrb[0].mxu0
        %v1355 = vadd.f32 0.0, %v1354
        %v1356 = vpop.f32.mrb[0].mxu0
        %v1357 = vpop.f32.mrb[0].mxu0
        %v1358 = vadd.f32 0.0, %v1357
        %v1359 = vpop.f32.mrb[0].mxu0
        %1360 = vmatprep.mubr.bf16.mxu0 0
        %1361 = vmatmul.mubr.bf16.gmra.mrb[0].mxu0 %v1216
        %v1362 = vpop.f32.mrb[0].mxu0
        %v1363 = vadd.f32 0.0, %v1362
        %v1364 = vpop.f32.mrb[0].mxu0
        %v1365 = vpop.f32.mrb[0].mxu0
        %v1366 = vadd.f32 0.0, %v1365
        %v1367 = vpop.f32.mrb[0].mxu0
        %1368 = vmatprep.mubr.bf16.mxu0 0
        %1369 = vmatmul.mubr.bf16.gmra.mrb[0].mxu0 %v1219
        %v1370 = vpop.f32.mrb[0].mxu0
        %v1371 = vadd.f32 0.0, %v1370
        %v1372 = vpop.f32.mrb[0].mxu0
        %v1373 = vpop.f32.mrb[0].mxu0
        %v1374 = vadd.f32 0.0, %v1373
        %v1375 = vpop.f32.mrb[0].mxu0
        %1376 = vmatprep.mubr.bf16.mxu0 0
        %1377 = vmatmul.mubr.bf16.gmra.mrb[0].mxu0 %v1222
        %v1378 = vpop.f32.mrb[0].mxu0
        %v1379 = vadd.f32 0.0, %v1378
        %v1380 = vpop.f32.mrb[0].mxu0
        %v1381 = vpop.f32.mrb[0].mxu0
        %v1382 = vadd.f32 0.0, %v1381
        %v1383 = vpop.f32.mrb[0].mxu0
        %1384 = vdwg.mxu0
        %v1385 = vadd.f32 %v985, %v1259
        %v1386 = vadd.f32 %v988, %v1262
        %v1387 = vadd.f32 %v993, %v1267
        %v1388 = vadd.f32 %v996, %v1270
        %v1389 = vadd.f32 %v1001, %v1275
        %v1390 = vadd.f32 %v1004, %v1278
        %v1391 = vadd.f32 %v1009, %v1283
        %v1392 = vadd.f32 %v1012, %v1286
        %v1393 = vadd.f32 %v1017, %v1291
        %v1394 = vadd.f32 %v1020, %v1294
        %v1395 = vadd.f32 %v1025, %v1299
        %v1396 = vadd.f32 %v1028, %v1302
        %v1397 = vadd.f32 %v1033, %v1307
        %v1398 = vadd.f32 %v1036, %v1310
        %v1399 = vadd.f32 %v1041, %v1315
        %v1400 = vadd.f32 %v1044, %v1318
        %v1401 = vadd.f32 %v1049, %v1323
        %v1402 = vadd.f32 %v1052, %v1326
        %v1403 = vadd.f32 %v1057, %v1331
        %v1404 = vadd.f32 %v1060, %v1334
        %v1405 = vadd.f32 %v1065, %v1339
        %v1406 = vadd.f32 %v1068, %v1342
        %v1407 = vadd.f32 %v1073, %v1347
        %v1408 = vadd.f32 %v1076, %v1350
        %v1409 = vadd.f32 %v1081, %v1355
        %v1410 = vadd.f32 %v1084, %v1358
        %v1411 = vadd.f32 %v1089, %v1363
        %v1412 = vadd.f32 %v1092, %v1366
        %v1413 = vadd.f32 %v1097, %v1371
        %v1414 = vadd.f32 %v1100, %v1374
        %v1415 = vadd.f32 %v1105, %v1379
        %v1416 = vadd.f32 %v1108, %v1382
        %v1417 = vld [vmem:[#allocation11] sm:$0x1]
        %v1419 = vlaneseq
        %v1420 = vshrl.u32 %v1419, 7
        %v1421 = vsub.s32 0, %v1420
        %v1422 = vrot.slane %v1417, %v1421
        %v1424 = vadd.f32 %v1385, %v1422
        %v1425 = vadd.f32 %v1386, %v1422
        %v1426 = vadd.f32 %v1387, %v1422
        %v1427 = vadd.f32 %v1388, %v1422
        %v1428 = vadd.f32 %v1389, %v1422
        %v1429 = vadd.f32 %v1390, %v1422
        %v1430 = vadd.f32 %v1391, %v1422
        %v1431 = vadd.f32 %v1392, %v1422
        %v1432 = vadd.f32 %v1393, %v1422
        %v1433 = vadd.f32 %v1394, %v1422
        %v1434 = vadd.f32 %v1395, %v1422
        %v1435 = vadd.f32 %v1396, %v1422
        %v1436 = vadd.f32 %v1397, %v1422
        %v1437 = vadd.f32 %v1398, %v1422
        %v1438 = vadd.f32 %v1399, %v1422
        %v1439 = vadd.f32 %v1400, %v1422
        %v1440 = vadd.f32 %v1401, %v1422
        %v1441 = vadd.f32 %v1402, %v1422
        %v1442 = vadd.f32 %v1403, %v1422
        %v1443 = vadd.f32 %v1404, %v1422
        %v1444 = vadd.f32 %v1405, %v1422
        %v1445 = vadd.f32 %v1406, %v1422
        %v1446 = vadd.f32 %v1407, %v1422
        %v1447 = vadd.f32 %v1408, %v1422
        %v1448 = vadd.f32 %v1409, %v1422
        %v1449 = vadd.f32 %v1410, %v1422
        %v1450 = vadd.f32 %v1411, %v1422
        %v1451 = vadd.f32 %v1412, %v1422
        %v1452 = vadd.f32 %v1413, %v1422
        %v1453 = vadd.f32 %v1414, %v1422
        %v1454 = vadd.f32 %v1415, %v1422
        %v1455 = vadd.f32 %v1416, %v1422
        %v1456 = vpack.c.bf16 %v1425, %v1424
        %v1457 = vpack.c.bf16 %v1427, %v1426
        %v1458 = vpack.c.bf16 %v1429, %v1428
        %v1459 = vpack.c.bf16 %v1431, %v1430
        %v1460 = vpack.c.bf16 %v1433, %v1432
        %v1461 = vpack.c.bf16 %v1435, %v1434
        %v1462 = vpack.c.bf16 %v1437, %v1436
        %v1463 = vpack.c.bf16 %v1439, %v1438
        %v1464 = vpack.c.bf16 %v1441, %v1440
        %v1465 = vpack.c.bf16 %v1443, %v1442
        %v1466 = vpack.c.bf16 %v1445, %v1444
        %v1467 = vpack.c.bf16 %v1447, %v1446
        %v1468 = vpack.c.bf16 %v1449, %v1448
        %v1469 = vpack.c.bf16 %v1451, %v1450
        %v1470 = vpack.c.bf16 %v1453, %v1452
        %v1471 = vpack.c.bf16 %v1455, %v1454
        %v1488 = vunpack.c.l.b16 %v1456
        %v1489 = vunpack.c.h.b16 %v1456
        %v1490 = vunpack.c.l.b16 %v1457
        %v1491 = vunpack.c.h.b16 %v1457
        %v1492 = vunpack.c.l.b16 %v1458
        %v1493 = vunpack.c.h.b16 %v1458
        %v1494 = vunpack.c.l.b16 %v1459
        %v1495 = vunpack.c.h.b16 %v1459
        %v1496 = vunpack.c.l.b16 %v1460
        %v1497 = vunpack.c.h.b16 %v1460
        %v1498 = vunpack.c.l.b16 %v1461
        %v1499 = vunpack.c.h.b16 %v1461
        %v1500 = vunpack.c.l.b16 %v1462
        %v1501 = vunpack.c.h.b16 %v1462
        %v1502 = vunpack.c.l.b16 %v1463
        %v1503 = vunpack.c.h.b16 %v1463
        %v1504 = vunpack.c.l.b16 %v1464
        %v1505 = vunpack.c.h.b16 %v1464
        %v1506 = vunpack.c.l.b16 %v1465
        %v1507 = vunpack.c.h.b16 %v1465
        %v1508 = vunpack.c.l.b16 %v1466
        %v1509 = vunpack.c.h.b16 %v1466
        %v1510 = vunpack.c.l.b16 %v1467
        %v1511 = vunpack.c.h.b16 %v1467
        %v1512 = vunpack.c.l.b16 %v1468
        %v1513 = vunpack.c.h.b16 %v1468
        %v1514 = vunpack.c.l.b16 %v1469
        %v1515 = vunpack.c.h.b16 %v1469
        %v1516 = vunpack.c.l.b16 %v1470
        %v1517 = vunpack.c.h.b16 %v1470
        %v1518 = vunpack.c.l.b16 %v1471
        %v1519 = vunpack.c.h.b16 %v1471
        %v1520 = vpack.c.b16 %v1488, %v1488
        %v1521 = vpack.c.b16 %v1489, %v1489
        %v1522 = vpack.c.b16 %v1490, %v1490
        %v1523 = vpack.c.b16 %v1491, %v1491
        %v1524 = vpack.c.b16 %v1492, %v1492
        %v1525 = vpack.c.b16 %v1493, %v1493
        %v1526 = vpack.c.b16 %v1494, %v1494
        %v1527 = vpack.c.b16 %v1495, %v1495
        %v1528 = vpack.c.b16 %v1496, %v1496
        %v1529 = vpack.c.b16 %v1497, %v1497
        %v1530 = vpack.c.b16 %v1498, %v1498
        %v1531 = vpack.c.b16 %v1499, %v1499
        %v1532 = vpack.c.b16 %v1500, %v1500
        %v1533 = vpack.c.b16 %v1501, %v1501
        %v1534 = vpack.c.b16 %v1502, %v1502
        %v1535 = vpack.c.b16 %v1503, %v1503
        %v1536 = vpack.c.b16 %v1504, %v1504
        %v1537 = vpack.c.b16 %v1505, %v1505
        %v1538 = vpack.c.b16 %v1506, %v1506
        %v1539 = vpack.c.b16 %v1507, %v1507
        %v1540 = vpack.c.b16 %v1508, %v1508
        %v1541 = vpack.c.b16 %v1509, %v1509
        %v1542 = vpack.c.b16 %v1510, %v1510
        %v1543 = vpack.c.b16 %v1511, %v1511
        %v1544 = vpack.c.b16 %v1512, %v1512
        %v1545 = vpack.c.b16 %v1513, %v1513
        %v1546 = vpack.c.b16 %v1514, %v1514
        %v1547 = vpack.c.b16 %v1515, %v1515
        %v1548 = vpack.c.b16 %v1516, %v1516
        %v1549 = vpack.c.b16 %v1517, %v1517
        %v1550 = vpack.c.b16 %v1518, %v1518
        %v1551 = vpack.c.b16 %v1519, %v1519
        %vm1584 = vcmask 257024
        %1585 = vst.msk [vmem:[%s326] sm:$0xf] %vm1584, %v1520
        %1586 = vst.msk [vmem:[%s326 + $0x4] sm:$0xf] %vm1584, %v1521
        %1587 = vst.msk [vmem:[%s326 + $0x8] sm:$0xf] %vm1584, %v1522
        %1588 = vst.msk [vmem:[%s326 + $0xc] sm:$0xf] %vm1584, %v1523
        %1589 = vst.msk [vmem:[%s326 + $0x10] sm:$0xf] %vm1584, %v1524
        %1590 = vst.msk [vmem:[%s326 + $0x14] sm:$0xf] %vm1584, %v1525
        %1591 = vst.msk [vmem:[%s326 + $0x18] sm:$0xf] %vm1584, %v1526
        %1592 = vst.msk [vmem:[%s326 + $0x1c] sm:$0xf] %vm1584, %v1527
        %1593 = vst.msk [vmem:[%s326 + $0x20] sm:$0xf] %vm1584, %v1528
        %1594 = vst.msk [vmem:[%s326 + $0x24] sm:$0xf] %vm1584, %v1529
        %1595 = vst.msk [vmem:[%s326 + $0x28] sm:$0xf] %vm1584, %v1530
        %1596 = vst.msk [vmem:[%s326 + $0x2c] sm:$0xf] %vm1584, %v1531
        %1597 = vst.msk [vmem:[%s326 + $0x30] sm:$0xf] %vm1584, %v1532
        %1598 = vst.msk [vmem:[%s326 + $0x34] sm:$0xf] %vm1584, %v1533
        %1599 = vst.msk [vmem:[%s326 + $0x38] sm:$0xf] %vm1584, %v1534
        %1600 = vst.msk [vmem:[%s326 + $0x3c] sm:$0xf] %vm1584, %v1535
        %1601 = vst.msk [vmem:[%s326 + $0x40] sm:$0xf] %vm1584, %v1536
        %1602 = vst.msk [vmem:[%s326 + $0x44] sm:$0xf] %vm1584, %v1537
        %1603 = vst.msk [vmem:[%s326 + $0x48] sm:$0xf] %vm1584, %v1538
        %1604 = vst.msk [vmem:[%s326 + $0x4c] sm:$0xf] %vm1584, %v1539
        %1605 = vst.msk [vmem:[%s326 + $0x50] sm:$0xf] %vm1584, %v1540
        %1606 = vst.msk [vmem:[%s326 + $0x54] sm:$0xf] %vm1584, %v1541
        %1607 = vst.msk [vmem:[%s326 + $0x58] sm:$0xf] %vm1584, %v1542
        %1608 = vst.msk [vmem:[%s326 + $0x5c] sm:$0xf] %vm1584, %v1543
        %1609 = vst.msk [vmem:[%s326 + $0x60] sm:$0xf] %vm1584, %v1544
        %1610 = vst.msk [vmem:[%s326 + $0x64] sm:$0xf] %vm1584, %v1545
        %1611 = vst.msk [vmem:[%s326 + $0x68] sm:$0xf] %vm1584, %v1546
        %1612 = vst.msk [vmem:[%s326 + $0x6c] sm:$0xf] %vm1584, %v1547
        %1613 = vst.msk [vmem:[%s326 + $0x70] sm:$0xf] %vm1584, %v1548
        %1614 = vst.msk [vmem:[%s326 + $0x74] sm:$0xf] %vm1584, %v1549
        %1615 = vst.msk [vmem:[%s326 + $0x78] sm:$0xf] %vm1584, %v1550
        %1616 = vst.msk [vmem:[%s326 + $0x7c] sm:$0xf] %vm1584, %v1551
        %v1617 = vsel %vm575, %v1424, 0.0
        %v1618 = vsel %vm575, %v1425, 0.0
        %v1619 = vadd.f32 %v1617, %v1618
        %v1620 = vsel %vm575, %v1426, 0.0
        %v1621 = vadd.f32 %v1619, %v1620
        %v1622 = vsel %vm575, %v1427, 0.0
        %v1623 = vadd.f32 %v1621, %v1622
        %v1624 = vsel %vm575, %v1428, 0.0
        %v1625 = vadd.f32 %v1623, %v1624
        %v1626 = vsel %vm575, %v1429, 0.0
        %v1627 = vadd.f32 %v1625, %v1626
        %v1628 = vsel %vm575, %v1430, 0.0
        %v1629 = vadd.f32 %v1627, %v1628
        %v1630 = vsel %vm575, %v1431, 0.0
        %v1631 = vadd.f32 %v1629, %v1630
        %v1632 = vsel %vm575, %v1432, 0.0
        %v1633 = vadd.f32 %v1631, %v1632
        %v1634 = vsel %vm575, %v1433, 0.0
        %v1635 = vadd.f32 %v1633, %v1634
        %v1636 = vsel %vm575, %v1434, 0.0
        %v1637 = vadd.f32 %v1635, %v1636
        %v1638 = vsel %vm575, %v1435, 0.0
        %v1639 = vadd.f32 %v1637, %v1638
        %v1640 = vsel %vm575, %v1436, 0.0
        %v1641 = vadd.f32 %v1639, %v1640
        %v1642 = vsel %vm575, %v1437, 0.0
        %v1643 = vadd.f32 %v1641, %v1642
        %v1644 = vsel %vm575, %v1438, 0.0
        %v1645 = vadd.f32 %v1643, %v1644
        %v1646 = vsel %vm575, %v1439, 0.0
        %v1647 = vadd.f32 %v1645, %v1646
        %v1648 = vsel %vm575, %v1440, 0.0
        %v1649 = vadd.f32 %v1647, %v1648
        %v1650 = vsel %vm575, %v1441, 0.0
        %v1651 = vadd.f32 %v1649, %v1650
        %v1652 = vsel %vm575, %v1442, 0.0
        %v1653 = vadd.f32 %v1651, %v1652
        %v1654 = vsel %vm575, %v1443, 0.0
        %v1655 = vadd.f32 %v1653, %v1654
        %v1656 = vsel %vm575, %v1444, 0.0
        %v1657 = vadd.f32 %v1655, %v1656
        %v1658 = vsel %vm575, %v1445, 0.0
        %v1659 = vadd.f32 %v1657, %v1658
        %v1660 = vsel %vm575, %v1446, 0.0
        %v1661 = vadd.f32 %v1659, %v1660
        %v1662 = vsel %vm575, %v1447, 0.0
        %v1663 = vadd.f32 %v1661, %v1662
        %v1664 = vsel %vm575, %v1448, 0.0
        %v1665 = vadd.f32 %v1663, %v1664
        %v1666 = vsel %vm575, %v1449, 0.0
        %v1667 = vadd.f32 %v1665, %v1666
        %v1668 = vsel %vm575, %v1450, 0.0
        %v1669 = vadd.f32 %v1667, %v1668
        %v1670 = vsel %vm575, %v1451, 0.0
        %v1671 = vadd.f32 %v1669, %v1670
        %v1672 = vsel %vm575, %v1452, 0.0
        %v1673 = vadd.f32 %v1671, %v1672
        %v1674 = vsel %vm575, %v1453, 0.0
        %v1675 = vadd.f32 %v1673, %v1674
        %v1676 = vsel %vm575, %v1454, 0.0
        %v1677 = vadd.f32 %v1675, %v1676
        %v1678 = vsel %vm575, %v1455, 0.0
        %v1679 = vadd.f32 %v1677, %v1678
        %v1680 = vrot.slane %v1679, 4
        %v1681 = vadd.f32 %v1679, %v1680
        %v1682 = vrot.slane %v1681, 2
        %v1683 = vadd.f32 %v1681, %v1682
        %v1684 = vrot.slane %v1683, 1
        %v1685 = vadd.f32 %v1683, %v1684
        %vm1686 = vcmask 253952
        %1687 = vst.msk [vmem:[%s333] sm:$0x1] %vm1686, %v1685
        %v1688 = vmul.f32 %v1424, %v1424
        %v1689 = vmul.f32 %v1425, %v1425
        %v1690 = vmul.f32 %v1426, %v1426
        %v1691 = vmul.f32 %v1427, %v1427
        %v1692 = vmul.f32 %v1428, %v1428
        %v1693 = vmul.f32 %v1429, %v1429
        %v1694 = vmul.f32 %v1430, %v1430
        %v1695 = vmul.f32 %v1431, %v1431
        %v1696 = vmul.f32 %v1432, %v1432
        %v1697 = vmul.f32 %v1433, %v1433
        %v1698 = vmul.f32 %v1434, %v1434
        %v1699 = vmul.f32 %v1435, %v1435
        %v1700 = vmul.f32 %v1436, %v1436
        %v1701 = vmul.f32 %v1437, %v1437
        %v1702 = vmul.f32 %v1438, %v1438
        %v1703 = vmul.f32 %v1439, %v1439
        %v1704 = vmul.f32 %v1440, %v1440
        %v1705 = vmul.f32 %v1441, %v1441
        %v1706 = vmul.f32 %v1442, %v1442
        %v1707 = vmul.f32 %v1443, %v1443
        %v1708 = vmul.f32 %v1444, %v1444
        %v1709 = vmul.f32 %v1445, %v1445
        %v1710 = vmul.f32 %v1446, %v1446
        %v1711 = vmul.f32 %v1447, %v1447
        %v1712 = vmul.f32 %v1448, %v1448
        %v1713 = vmul.f32 %v1449, %v1449
        %v1714 = vmul.f32 %v1450, %v1450
        %v1715 = vmul.f32 %v1451, %v1451
        %v1716 = vmul.f32 %v1452, %v1452
        %v1717 = vmul.f32 %v1453, %v1453
        %v1718 = vmul.f32 %v1454, %v1454
        %v1719 = vmul.f32 %v1455, %v1455
        %v1720 = vsel %vm575, %v1688, 0.0
        %v1721 = vsel %vm575, %v1689, 0.0
        %v1722 = vadd.f32 %v1720, %v1721
        %v1723 = vsel %vm575, %v1690, 0.0
        %v1724 = vadd.f32 %v1722, %v1723
        %v1725 = vsel %vm575, %v1691, 0.0
        %v1726 = vadd.f32 %v1724, %v1725
        %v1727 = vsel %vm575, %v1692, 0.0
        %v1728 = vadd.f32 %v1726, %v1727
        %v1729 = vsel %vm575, %v1693, 0.0
        %v1730 = vadd.f32 %v1728, %v1729
        %v1731 = vsel %vm575, %v1694, 0.0
        %v1732 = vadd.f32 %v1730, %v1731
        %v1733 = vsel %vm575, %v1695, 0.0
        %v1734 = vadd.f32 %v1732, %v1733
        %v1735 = vsel %vm575, %v1696, 0.0
        %v1736 = vadd.f32 %v1734, %v1735
        %v1737 = vsel %vm575, %v1697, 0.0
        %v1738 = vadd.f32 %v1736, %v1737
        %v1739 = vsel %vm575, %v1698, 0.0
        %v1740 = vadd.f32 %v1738, %v1739
        %v1741 = vsel %vm575, %v1699, 0.0
        %v1742 = vadd.f32 %v1740, %v1741
        %v1743 = vsel %vm575, %v1700, 0.0
        %v1744 = vadd.f32 %v1742, %v1743
        %v1745 = vsel %vm575, %v1701, 0.0
        %v1746 = vadd.f32 %v1744, %v1745
        %v1747 = vsel %vm575, %v1702, 0.0
        %v1748 = vadd.f32 %v1746, %v1747
        %v1749 = vsel %vm575, %v1703, 0.0
        %v1750 = vadd.f32 %v1748, %v1749
        %v1751 = vsel %vm575, %v1704, 0.0
        %v1752 = vadd.f32 %v1750, %v1751
        %v1753 = vsel %vm575, %v1705, 0.0
        %v1754 = vadd.f32 %v1752, %v1753
        %v1755 = vsel %vm575, %v1706, 0.0
        %v1756 = vadd.f32 %v1754, %v1755
        %v1757 = vsel %vm575, %v1707, 0.0
        %v1758 = vadd.f32 %v1756, %v1757
        %v1759 = vsel %vm575, %v1708, 0.0
        %v1760 = vadd.f32 %v1758, %v1759
        %v1761 = vsel %vm575, %v1709, 0.0
        %v1762 = vadd.f32 %v1760, %v1761
        %v1763 = vsel %vm575, %v1710, 0.0
        %v1764 = vadd.f32 %v1762, %v1763
        %v1765 = vsel %vm575, %v1711, 0.0
        %v1766 = vadd.f32 %v1764, %v1765
        %v1767 = vsel %vm575, %v1712, 0.0
        %v1768 = vadd.f32 %v1766, %v1767
        %v1769 = vsel %vm575, %v1713, 0.0
        %v1770 = vadd.f32 %v1768, %v1769
        %v1771 = vsel %vm575, %v1714, 0.0
        %v1772 = vadd.f32 %v1770, %v1771
        %v1773 = vsel %vm575, %v1715, 0.0
        %v1774 = vadd.f32 %v1772, %v1773
        %v1775 = vsel %vm575, %v1716, 0.0
        %v1776 = vadd.f32 %v1774, %v1775
        %v1777 = vsel %vm575, %v1717, 0.0
        %v1778 = vadd.f32 %v1776, %v1777
        %v1779 = vsel %vm575, %v1718, 0.0
        %v1780 = vadd.f32 %v1778, %v1779
        %v1781 = vsel %vm575, %v1719, 0.0
        %v1782 = vadd.f32 %v1780, %v1781
        %v1783 = vrot.slane %v1782, 4
        %v1784 = vadd.f32 %v1782, %v1783
        %v1785 = vrot.slane %v1784, 2
        %v1786 = vadd.f32 %v1784, %v1785
        %v1787 = vrot.slane %v1786, 1
        %v1788 = vadd.f32 %v1786, %v1787
        %1789 = vst.msk [vmem:[%s333 + $0x1] sm:$0x1] %vm1686, %v1788
        %s1790 = sand.u32 %s147, 1
        %s1791 = scalar_lea.sflag [#allocation5], %s1790
        %s1792 = sand.u32 %s147, 1
        %s1793 = smul.addr %s1792, 128
        %s1794 = scalar_lea.vmem [#allocation12], %s1793
        %s1795 = sand.u32 %s173, 1
        %s1796 = scalar_lea.sflag [#allocation14], %s1795
        %s1797 = sand.u32 %s173, 1
        %s1798 = smul.addr %s1797, 2
        %s1799 = scalar_lea.vmem [#allocation13], %s1798
        // Predicated region
        $region61: #{st_gcn_forward.5} parent=39 // pred_check
          %p1800 = pneg %p157
        $region62: #{st_gcn_forward.5} parent=39 // pred_check_branch
          %1802 = sbr.rel (%p1800) target = $region64
        $region63: #{st_gcn_forward.5} parent=39 // pred_region
          %s1803 = smul.u32 2, %s29
          %s1805 = ssub.s32 2048, 2048
          %1806 = vsyncadd %s1791, %s1805
          %s1807 = smul.addr %s1803, 16
          %s1808 = smul.addr %s1807, 64
          %s1809 = scalar_lea.hbm %s5, %s1808
          %s1810 = sshll.u32 %s1794, 4
          %s1811 = int_to_ptr.vmem [resolvable:$true] %s1810
          %1816 = dma.vmem_to_hbm [thread:$0]  %s1811, 2048, %s1809, %s1791, 64, 64, 4
        $region64: #{st_gcn_forward.5} parent=39 // pred_fallthru
          _
        // Predicated region
        $region65: #{st_gcn_forward.5} parent=39 // pred_check
          %p1817 = pneg %p183
        $region66: #{st_gcn_forward.5} parent=39 // pred_check_branch
          %1819 = sbr.rel (%p1817) target = $region68
        $region67: #{st_gcn_forward.5} parent=39 // pred_region
          %s1821 = ssub.s32 32, 32
          %1822 = vsyncadd %s1796, %s1821
          %s1823 = smul.addr %s29, 32
          %s1824 = scalar_lea.hbm %s6, %s1823
          %s1826 = sshll.u32 %s1799, 4
          %s1827 = int_to_ptr.vmem [resolvable:$true] %s1826
          %1829 = dma.vmem_to_hbm [thread:$0]  %s1827, 32, %s1824, %s1796
        $region68: #{st_gcn_forward.5} parent=39 // pred_fallthru
          _
      $region40: #{st_gcn_forward.5} parent=5 // pred_fallthru
        _
      %p1830 = scmp.le.s32.totalorder 2, %s24
      // Predicated region
      $region69: #{st_gcn_forward.5} parent=5 // pred_check
        %p1831 = pneg %p1830
      $region70: #{st_gcn_forward.5} parent=5 // pred_check_branch
        %1833 = sbr.rel (%p1831) target = $region72
      $region71: #{st_gcn_forward.5} parent=5 // pred_region
        %s1834 = ssub.s32 %s24, 2
        // Predicated region
        $region73: #{st_gcn_forward.5} parent=71 // pred_check
          %p1835 = pneg %p163
        $region74: #{st_gcn_forward.5} parent=71 // pred_check_branch
          %1837 = sbr.rel (%p1835) target = $region76
        $region75: #{st_gcn_forward.5} parent=71 // pred_region
          %s1838 = sand.u32 %s148, 1
          %s1839 = scalar_lea.sflag [#allocation5], %s1838
          %s1840 = sand.u32 %s148, 1
          %s1841 = smul.addr %s1840, 128
          %s1842 = scalar_lea.vmem [#allocation12], %s1841
          %1843 = dma.done %s1839, 2048
        $region76: #{st_gcn_forward.5} parent=71 // pred_fallthru
          _
        // Predicated region
        $region77: #{st_gcn_forward.5} parent=71 // pred_check
          %p1844 = pneg %p189
        $region78: #{st_gcn_forward.5} parent=71 // pred_check_branch
          %1846 = sbr.rel (%p1844) target = $region80
        $region79: #{st_gcn_forward.5} parent=71 // pred_region
          %s1847 = sand.u32 %s174, 1
          %s1848 = scalar_lea.sflag [#allocation14], %s1847
          %s1849 = sand.u32 %s174, 1
          %s1850 = smul.addr %s1849, 2
          %s1851 = scalar_lea.vmem [#allocation13], %s1850
          %1852 = dma.done %s1848, 32
        $region80: #{st_gcn_forward.5} parent=71 // pred_fallthru
          _
      $region72: #{st_gcn_forward.5} parent=5 // pred_fallthru
        _
    $region6: #{st_gcn_forward.5} parent=1 // loop_footer
      %s28 = sadd.s32 1, %s24
    $region7: #{st_gcn_forward.5} parent=1 // loop_footer_branch
      %23 = sbr.rel target = $region3
    $region8: #{st_gcn_forward.5} parent=1 // loop_exit
      _
    %1853 = vsyncpa [#allocation4], 1
    %s1854 = scalar_lea.sflag [#allocation4], 1
    %1855 = vsyncpa %s1854, 1
    %1856 = vsyncpa [#allocation7], 1
    %1857 = vsyncpa [#allocation10], 1
    %1858 = vsyncpa [#allocation5], 1
    %s1859 = scalar_lea.sflag [#allocation5], 1
    %1860 = vsyncpa %s1859, 1
    %1861 = vsyncpa [#allocation14], 1
    %s1862 = scalar_lea.sflag [#allocation14], 1
    %1863 = vsyncpa %s1862, 1

// kernel: st_gcn_forward.7
$region0: #{st_gcn_forward.7}
  #allocation0 [shape = 'u32[]', space=smem, size = 0x4, offset = 0x4, fixed_abs, tag = 'smem constant byte address 0x4 - core index']
  #allocation1 [shape = 'u32[144,128]{1,0:T(1,128)}', space=vmem, size = 0x12000, scoped, tag = 'internal scratch']
  %s0 = inlined_call_operand.hbm [shape: bf16[32,512], index: 0, kind: input, shape index: {}]
  %s1 = inlined_call_operand.hbm [shape: f32[1,512], index: 1, kind: input, shape index: {}]
  %s2 = inlined_call_operand.hbm [shape: f32[1,512], index: 2, kind: input, shape index: {}]
  %s3 = inlined_call_operand.hbm [shape: f32[32,512], index: 3, kind: output, shape index: {}]
  %s4 = sld [smem:[#allocation0]]
  $region57: #{st_gcn_forward.7} parent=0
    _
  %s6 = ssub.s32 1, %s4
  %s7 = scalar_select 0, %s6, %s4
  $region1: #{st_gcn_forward.7} parent=0
    #allocation2 [shape = 'u8[32768]{0}', space=vmem, size = 0x8000, scoped, tag = 'input window, operand 0']
    #allocation3 [shape = 's32[2]{0}', space=sflag, size = 0x8, scoped, tag = 'scoped memory for st_gcn_forward.7']
    #allocation4 [shape = 's32[2]{0}', space=sflag, size = 0x8, scoped, tag = 'scoped memory for st_gcn_forward.7']
    #allocation5 [shape = 'u8[2048]{0}', space=vmem, size = 0x800, scoped, tag = 'input window, operand 1, single buffered']
    #allocation6 [shape = 's32[1]{0}', space=sflag, size = 0x4, scoped, tag = 'scoped memory for st_gcn_forward.7']
    #allocation7 [shape = 'u8[2048]{0}', space=vmem, size = 0x800, scoped, tag = 'input window, operand 2, single buffered']
    #allocation8 [shape = 'u8[65536]{0}', space=vmem, size = 0x10000, scoped, tag = 'output window, operand 0']
    %8 = vsyncpa [#allocation3], 0
    %s9 = scalar_lea.sflag [#allocation3], 1
    %10 = vsyncpa %s9, 0
    %11 = vsyncpa [#allocation6], 0
    %12 = vsyncpa [#allocation4], 0
    %s13 = scalar_lea.sflag [#allocation4], 1
    %14 = vsyncpa %s13, 0
    loop: start=0, step=1, limit=4
    $region2: #{st_gcn_forward.7} parent=1 // loop_pre_header
      _
    $region3: #{st_gcn_forward.7} parent=1 // loop_header
      %s16 = sphi 0, %s20
      %p17 = scmp.ge.s32.totalorder %s16, 4
      %s26 = sphi 0, %s28
      %s29 = sphi 0, %s26
      %s30 = sphi 0, %s29
      %s46 = sphi 0, %s30
      %s50 = sphi 0, %s50
      %s52 = sphi 0, %s50
      %s53 = sphi 0, %s52
      %s67 = sphi 0, %s53
      %s71 = sphi 0, %s71
      %s73 = sphi 0, %s71
      %s74 = sphi 0, %s73
      %s88 = sphi 0, %s74
      %s94 = sphi 0, %s96
      %s97 = sphi 0, %s94
      %s98 = sphi 0, %s97
      %s114 = sphi 0, %s98
    $region4: #{st_gcn_forward.7} parent=1 // loop_header_branch
      %19 = sbr.rel (%p17) target = $region8
    $region5: #{st_gcn_forward.7} parent=1 // loop_body
      %s21 = ssub.s32 %s16, 1
      %s22 = ssub.s32 %s16, 2
      %s23 = sadd.s32 %s16, 1
      %s24 = ssub.s32 %s16, %s23
      %p25 = scmp.eq.s32.totalorder %s24, 0
      %s27 = sadd.s32 %s26, 1
      %s28 = scalar_select %p25, %s26, %s27
      %p31 = pneg %p25
      %p32 = scmp.eq.s32.totalorder %s16, 1
      %p33 = por %p31, %p32
      %p34 = scmp.ne.s32.totalorder %s26, %s29
      %p35 = scmp.eq.s32.totalorder %s16, 0
      %p36 = por %p34, %p35
      %p37 = scmp.ne.s32.totalorder %s26, %s29
      %p38 = scmp.eq.s32.totalorder %s21, 1
      %p39 = por %p37, %p38
      %p40 = scmp.ne.s32.totalorder %s29, %s30
      %p41 = scmp.eq.s32.totalorder %s21, 0
      %p42 = por %p40, %p41
      %p43 = scmp.ne.s32.totalorder %s29, %s30
      %p44 = scmp.eq.s32.totalorder %s22, 1
      %p45 = por %p43, %p44
      %p47 = scmp.ne.s32.totalorder %s30, %s46
      %p48 = scmp.eq.s32.totalorder %s22, 0
      %p49 = por %p47, %p48
      %s51 = sadd.s32 %s50, 1
      %p54 = scmp.eq.s32.totalorder %s16, 1
      %p55 = scmp.ne.s32.totalorder %s50, %s52
      %p56 = scmp.eq.s32.totalorder %s16, 0
      %p57 = por %p55, %p56
      %p58 = scmp.ne.s32.totalorder %s50, %s52
      %p59 = scmp.eq.s32.totalorder %s21, 1
      %p60 = por %p58, %p59
      %p61 = scmp.ne.s32.totalorder %s52, %s53
      %p62 = scmp.eq.s32.totalorder %s21, 0
      %p63 = por %p61, %p62
      %p64 = scmp.ne.s32.totalorder %s52, %s53
      %p65 = scmp.eq.s32.totalorder %s22, 1
      %p66 = por %p64, %p65
      %p68 = scmp.ne.s32.totalorder %s53, %s67
      %p69 = scmp.eq.s32.totalorder %s22, 0
      %p70 = por %p68, %p69
      %s72 = sadd.s32 %s71, 1
      %p75 = scmp.eq.s32.totalorder %s16, 1
      %p76 = scmp.ne.s32.totalorder %s71, %s73
      %p77 = scmp.eq.s32.totalorder %s16, 0
      %p78 = por %p76, %p77
      %p79 = scmp.ne.s32.totalorder %s71, %s73
      %p80 = scmp.eq.s32.totalorder %s21, 1
      %p81 = por %p79, %p80
      %p82 = scmp.ne.s32.totalorder %s73, %s74
      %p83 = scmp.eq.s32.totalorder %s21, 0
      %p84 = por %p82, %p83
      %p85 = scmp.ne.s32.totalorder %s73, %s74
      %p86 = scmp.eq.s32.totalorder %s22, 1
      %p87 = por %p85, %p86
      %p89 = scmp.ne.s32.totalorder %s74, %s88
      %p90 = scmp.eq.s32.totalorder %s22, 0
      %p91 = por %p89, %p90
      %s92 = ssub.s32 %s16, %s23
      %p93 = scmp.eq.s32.totalorder %s92, 0
      %s95 = sadd.s32 %s94, 1
      %s96 = scalar_select %p93, %s94, %s95
      %p99 = pneg %p93
      %p100 = scmp.eq.s32.totalorder %s16, 1
      %p101 = por %p99, %p100
      %p102 = scmp.ne.s32.totalorder %s94, %s97
      %p103 = scmp.eq.s32.totalorder %s16, 0
      %p104 = por %p102, %p103
      %p105 = scmp.ne.s32.totalorder %s94, %s97
      %p106 = scmp.eq.s32.totalorder %s21, 1
      %p107 = por %p105, %p106
      %p108 = scmp.ne.s32.totalorder %s97, %s98
      %p109 = scmp.eq.s32.totalorder %s21, 0
      %p110 = por %p108, %p109
      %p111 = scmp.ne.s32.totalorder %s97, %s98
      %p112 = scmp.eq.s32.totalorder %s22, 1
      %p113 = por %p111, %p112
      %p115 = scmp.ne.s32.totalorder %s98, %s114
      %p116 = scmp.eq.s32.totalorder %s22, 0
      %p117 = por %p115, %p116
      %p118 = scmp.le.s32.totalorder 1, %s16
      %p119 = scmp.lt.s32.totalorder %s16, 3
      %p120 = pnand %p118, %p119
      %p121 = pneg %p120
      // Predicated region
      $region9: #{st_gcn_forward.7} parent=5 // pred_check
        _
      $region10: #{st_gcn_forward.7} parent=5 // pred_check_branch
        %123 = sbr.rel (%p120) target = $region12
      $region11: #{st_gcn_forward.7} parent=5 // pred_region
        %s124 = ssub.s32 %s16, 1
        // Predicated region
        $region13: #{st_gcn_forward.7} parent=11 // pred_check
          %p125 = pneg %p63
        $region14: #{st_gcn_forward.7} parent=11 // pred_check_branch
          %127 = sbr.rel (%p125) target = $region16
        $region15: #{st_gcn_forward.7} parent=11 // pred_region
          %s129 = ssub.s32 64, 64
          %130 = vsyncadd [#allocation6], %s129
          %s132 = sshll.u32 [#allocation5], 4
          %s133 = int_to_ptr.vmem [resolvable:$true] %s132
          %135 = dma.hbm_to_vmem [thread:$0]  %s1, 64, %s133, [#allocation6]
        $region16: #{st_gcn_forward.7} parent=11 // pred_fallthru
          _
        // Predicated region
        $region17: #{st_gcn_forward.7} parent=11 // pred_check
          %p136 = pneg %p84
        $region18: #{st_gcn_forward.7} parent=11 // pred_check_branch
          %138 = sbr.rel (%p136) target = $region20
        $region19: #{st_gcn_forward.7} parent=11 // pred_region
          %s140 = ssub.s32 64, 64
          %141 = vsyncadd [#allocation6], %s140
          %s143 = sshll.u32 [#allocation7], 4
          %s144 = int_to_ptr.vmem [resolvable:$true] %s143
          %146 = dma.hbm_to_vmem [thread:$0]  %s2, 64, %s144, [#allocation6]
        $region20: #{st_gcn_forward.7} parent=11 // pred_fallthru
          _
      $region12: #{st_gcn_forward.7} parent=5 // pred_fallthru
        _
      %p147 = scmp.lt.s32.totalorder %s16, 2
      // Predicated region
      $region21: #{st_gcn_forward.7} parent=5 // pred_check
        %p148 = pneg %p147
      $region22: #{st_gcn_forward.7} parent=5 // pred_check_branch
        %150 = sbr.rel (%p148) target = $region24
      $region23: #{st_gcn_forward.7} parent=5 // pred_region
        // Predicated region
        $region25: #{st_gcn_forward.7} parent=23 // pred_check
          %p151 = pneg %p36
        $region26: #{st_gcn_forward.7} parent=23 // pred_check_branch
          %153 = sbr.rel (%p151) target = $region28
        $region27: #{st_gcn_forward.7} parent=23 // pred_region
          %s154 = sand.u32 %s26, 1
          %s155 = scalar_lea.sflag [#allocation3], %s154
          %s156 = sand.u32 %s26, 1
          %s157 = smul.addr %s156, 32
          %s158 = scalar_lea.vmem [#allocation2], %s157
          %s159 = smul.u32 2, %s16
          %s161 = ssub.s32 512, 512
          %162 = vsyncadd %s155, %s161
          %s163 = smul.addr %s159, 4
          %s164 = smul.addr %s163, 64
          %s165 = scalar_lea.hbm %s0, %s164
          %s166 = sshll.u32 %s158, 4
          %s167 = int_to_ptr.vmem [resolvable:$true] %s166
          %172 = dma.hbm_to_vmem [thread:$0]  %s165, 512, %s167, %s155, 256, 256, 16
        $region28: #{st_gcn_forward.7} parent=23 // pred_fallthru
          _
      $region24: #{st_gcn_forward.7} parent=5 // pred_fallthru
        _
      %p173 = scmp.le.s32.totalorder 1, %s16
      %p174 = scmp.lt.s32.totalorder %s16, 3
      %p175 = pnand %p173, %p174
      %p176 = pneg %p175
      // Predicated region
      $region29: #{st_gcn_forward.7} parent=5 // pred_check
        _
      $region30: #{st_gcn_forward.7} parent=5 // pred_check_branch
        %178 = sbr.rel (%p175) target = $region32
      $region31: #{st_gcn_forward.7} parent=5 // pred_region
        %s179 = ssub.s32 %s16, 1
        %s180 = sand.u32 %s29, 1
        %s181 = scalar_lea.sflag [#allocation3], %s180
        %s182 = sand.u32 %s29, 1
        %s183 = smul.addr %s182, 32
        %s184 = scalar_lea.vmem [#allocation2], %s183
        // Predicated region
        $region33: #{st_gcn_forward.7} parent=31 // pred_check
          %p185 = pneg %p42
        $region34: #{st_gcn_forward.7} parent=31 // pred_check_branch
          %187 = sbr.rel (%p185) target = $region36
        $region35: #{st_gcn_forward.7} parent=31 // pred_region
          %188 = dma.done %s181, 512
        $region36: #{st_gcn_forward.7} parent=31 // pred_fallthru
          _
        // Predicated region
        $region37: #{st_gcn_forward.7} parent=31 // pred_check
          %p189 = pneg %p63
        $region38: #{st_gcn_forward.7} parent=31 // pred_check_branch
          %191 = sbr.rel (%p189) target = $region40
        $region39: #{st_gcn_forward.7} parent=31 // pred_region
          %192 = dma.done [#allocation6], 64
        $region40: #{st_gcn_forward.7} parent=31 // pred_fallthru
          _
        // Predicated region
        $region41: #{st_gcn_forward.7} parent=31 // pred_check
          %p193 = pneg %p84
        $region42: #{st_gcn_forward.7} parent=31 // pred_check_branch
          %195 = sbr.rel (%p193) target = $region44
        $region43: #{st_gcn_forward.7} parent=31 // pred_region
          %196 = dma.done [#allocation6], 64
        $region44: #{st_gcn_forward.7} parent=31 // pred_fallthru
          _
        %s197 = sand.u32 %s29, 1
        %s198 = scalar_lea.sflag [#allocation3], %s197
        %s199 = sand.u32 %s29, 1
        %s200 = smul.addr %s199, 32
        %s201 = scalar_lea.vmem [#allocation2], %s200
        %p202 = pneg %p42
        %p203 = pneg %p39
        %p204 = pneg %p63
        %p205 = pneg %p60
        %p206 = pneg %p84
        %p207 = pneg %p81
        %p208 = pneg %p110
        %p209 = pneg %p107
        %s210 = sand.u32 %s97, 1
        %s211 = scalar_lea.sflag [#allocation4], %s210
        %s212 = sand.u32 %s97, 1
        %s213 = smul.addr %s212, 64
        %s214 = scalar_lea.vmem [#allocation8], %s213
        %s215 = smul.u32 2, %s21
        %s216 = smul.u32 2, %s21
        %v217 = vld [vmem:[%s184] sm:$0xff]
        %v218 = vld [vmem:[%s184 + $0x8] sm:$0xff]
        %v219 = vld [vmem:[%s184 + $0x10] sm:$0xff]
        %v220 = vld [vmem:[%s184 + $0x18] sm:$0xff]
        %v221 = vunpack.c.l.bf16 %v217
        %v222 = vunpack.c.h.bf16 %v217
        %v223 = vunpack.c.l.bf16 %v218
        %v224 = vunpack.c.h.bf16 %v218
        %v225 = vunpack.c.l.bf16 %v219
        %v226 = vunpack.c.h.bf16 %v219
        %v227 = vunpack.c.l.bf16 %v220
        %v228 = vunpack.c.h.bf16 %v220
        %v229 = vld [vmem:[#allocation5] sm:$0xf]
        %v231 = vlaneseq
        %v232 = vshrl.u32 %v231, 7
        %v233 = vsub.s32 0, %v232
        %v234 = vrot.slane %v229, %v233
        %v235 = vlaneseq
        %v236 = vshrl.u32 %v235, 7
        %v237 = vsub.s32 1, %v236
        %v238 = vrot.slane %v229, %v237
        %v239 = vlaneseq
        %v240 = vshrl.u32 %v239, 7
        %v241 = vsub.s32 2, %v240
        %v242 = vrot.slane %v229, %v241
        %v243 = vlaneseq
        %v244 = vshrl.u32 %v243, 7
        %v245 = vsub.s32 3, %v244
        %v246 = vrot.slane %v229, %v245
        %v251 = vmul.f32 %v221, %v234
        %v252 = vmul.f32 %v222, %v238
        %v253 = vmul.f32 %v223, %v242
        %v254 = vmul.f32 %v224, %v246
        %v255 = vmul.f32 %v225, %v234
        %v256 = vmul.f32 %v226, %v238
        %v257 = vmul.f32 %v227, %v242
        %v258 = vmul.f32 %v228, %v246
        %v259 = vld [vmem:[#allocation7] sm:$0xf]
        %v261 = vlaneseq
        %v262 = vshrl.u32 %v261, 7
        %v263 = vsub.s32 0, %v262
        %v264 = vrot.slane %v259, %v263
        %v265 = vlaneseq
        %v266 = vshrl.u32 %v265, 7
        %v267 = vsub.s32 1, %v266
        %v268 = vrot.slane %v259, %v267
        %v269 = vlaneseq
        %v270 = vshrl.u32 %v269, 7
        %v271 = vsub.s32 2, %v270
        %v272 = vrot.slane %v259, %v271
        %v273 = vlaneseq
        %v274 = vshrl.u32 %v273, 7
        %v275 = vsub.s32 3, %v274
        %v276 = vrot.slane %v259, %v275
        %v281 = vadd.f32 %v251, %v264
        %v282 = vadd.f32 %v252, %v268
        %v283 = vadd.f32 %v253, %v272
        %v284 = vadd.f32 %v254, %v276
        %v285 = vadd.f32 %v255, %v264
        %v286 = vadd.f32 %v256, %v268
        %v287 = vadd.f32 %v257, %v272
        %v288 = vadd.f32 %v258, %v276
        %vm289 = vcmp.gt.f32.partialorder %v281, 0.0
        %vm290 = vcmp.gt.f32.partialorder %v282, 0.0
        %vm291 = vcmp.gt.f32.partialorder %v283, 0.0
        %vm292 = vcmp.gt.f32.partialorder %v284, 0.0
        %vm293 = vcmp.gt.f32.partialorder %v285, 0.0
        %vm294 = vcmp.gt.f32.partialorder %v286, 0.0
        %vm295 = vcmp.gt.f32.partialorder %v287, 0.0
        %vm296 = vcmp.gt.f32.partialorder %v288, 0.0
        %v297 = vmul.f32 %v281, 0.01
        %v298 = vmul.f32 %v282, 0.01
        %v299 = vmul.f32 %v283, 0.01
        %v300 = vmul.f32 %v284, 0.01
        %v301 = vmul.f32 %v285, 0.01
        %v302 = vmul.f32 %v286, 0.01
        %v303 = vmul.f32 %v287, 0.01
        %v304 = vmul.f32 %v288, 0.01
        %v305 = vsel %vm289, %v281, %v297
        %v306 = vsel %vm290, %v282, %v298
        %v307 = vsel %vm291, %v283, %v299
        %v308 = vsel %vm292, %v284, %v300
        %v309 = vsel %vm293, %v285, %v301
        %v310 = vsel %vm294, %v286, %v302
        %v311 = vsel %vm295, %v287, %v303
        %v312 = vsel %vm296, %v288, %v304
        %313 = vst [vmem:[%s214] sm:$0xff] %v305
        %314 = vst [vmem:[%s214 + $0x8] sm:$0xff] %v306
        %315 = vst [vmem:[%s214 + $0x10] sm:$0xff] %v307
        %316 = vst [vmem:[%s214 + $0x18] sm:$0xff] %v308
        %317 = vst [vmem:[%s214 + $0x20] sm:$0xff] %v309
        %318 = vst [vmem:[%s214 + $0x28] sm:$0xff] %v310
        %319 = vst [vmem:[%s214 + $0x30] sm:$0xff] %v311
        %320 = vst [vmem:[%s214 + $0x38] sm:$0xff] %v312
        %s321 = sand.u32 %s97, 1
        %s322 = scalar_lea.sflag [#allocation4], %s321
        %s323 = sand.u32 %s97, 1
        %s324 = smul.addr %s323, 64
        %s325 = scalar_lea.vmem [#allocation8], %s324
        // Predicated region
        $region45: #{st_gcn_forward.7} parent=31 // pred_check
          %p326 = pneg %p107
        $region46: #{st_gcn_forward.7} parent=31 // pred_check_branch
          %328 = sbr.rel (%p326) target = $region48
        $region47: #{st_gcn_forward.7} parent=31 // pred_region
          %s329 = smul.u32 2, %s21
          %s331 = ssub.s32 1024, 1024
          %332 = vsyncadd %s322, %s331
          %s333 = smul.addr %s329, 4
          %s334 = smul.addr %s333, 128
          %s335 = scalar_lea.hbm %s3, %s334
          %s336 = sshll.u32 %s325, 4
          %s337 = int_to_ptr.vmem [resolvable:$true] %s336
          %342 = dma.vmem_to_hbm [thread:$0]  %s337, 1024, %s335, %s322, 512, 512, 32
        $region48: #{st_gcn_forward.7} parent=31 // pred_fallthru
          _
      $region32: #{st_gcn_forward.7} parent=5 // pred_fallthru
        _
      %p343 = scmp.le.s32.totalorder 2, %s16
      // Predicated region
      $region49: #{st_gcn_forward.7} parent=5 // pred_check
        %p344 = pneg %p343
      $region50: #{st_gcn_forward.7} parent=5 // pred_check_branch
        %346 = sbr.rel (%p344) target = $region52
      $region51: #{st_gcn_forward.7} parent=5 // pred_region
        %s347 = ssub.s32 %s16, 2
        // Predicated region
        $region53: #{st_gcn_forward.7} parent=51 // pred_check
          %p348 = pneg %p113
        $region54: #{st_gcn_forward.7} parent=51 // pred_check_branch
          %350 = sbr.rel (%p348) target = $region56
        $region55: #{st_gcn_forward.7} parent=51 // pred_region
          %s351 = sand.u32 %s98, 1
          %s352 = scalar_lea.sflag [#allocation4], %s351
          %s353 = sand.u32 %s98, 1
          %s354 = smul.addr %s353, 64
          %s355 = scalar_lea.vmem [#allocation8], %s354
          %356 = dma.done %s352, 1024
        $region56: #{st_gcn_forward.7} parent=51 // pred_fallthru
          _
      $region52: #{st_gcn_forward.7} parent=5 // pred_fallthru
        _
    $region6: #{st_gcn_forward.7} parent=1 // loop_footer
      %s20 = sadd.s32 1, %s16
    $region7: #{st_gcn_forward.7} parent=1 // loop_footer_branch
      %15 = sbr.rel target = $region3
    $region8: #{st_gcn_forward.7} parent=1 // loop_exit
      _
    %357 = vsyncpa [#allocation3], 1
    %s358 = scalar_lea.sflag [#allocation3], 1
    %359 = vsyncpa %s358, 1
    %360 = vsyncpa [#allocation6], 1
    %361 = vsyncpa [#allocation4], 1
    %s362 = scalar_lea.sflag [#allocation4], 1
    %363 = vsyncpa %s362, 1

// kernel: st_gcn_forward.6
$region0: #{st_gcn_forward.6}
  #allocation0 [shape = 'u32[]', space=smem, size = 0x4, offset = 0x4, fixed_abs, tag = 'smem constant byte address 0x4 - core index']
  #allocation1 [shape = 'u32[144,128]{1,0:T(1,128)}', space=vmem, size = 0x12000, scoped, tag = 'internal scratch']
  #allocation2 [shape = 'f32[2,160,32]{2,1,0:T(8,128)}', space=vmem, size = 0x28000, scoped, tag = 'scratch operand']
  %s0 = inlined_call_operand.hbm [shape: bf16[4,128,32], index: 0, kind: input, shape index: {}]
  %s1 = inlined_call_operand.hbm [shape: f32[1,1,32], index: 1, kind: input, shape index: {}]
  %s2 = inlined_call_operand.hbm [shape: f32[1,1,32], index: 2, kind: input, shape index: {}]
  %s3 = inlined_call_operand.hbm [shape: bf16[3,32,32], index: 3, kind: input, shape index: {}]
  %s4 = inlined_call_operand.hbm [shape: f32[1,1,32], index: 4, kind: input, shape index: {}]
  %s5 = inlined_call_operand.hbm [shape: bf16[4,128,32], index: 5, kind: input, shape index: {}]
  %s6 = inlined_call_operand.hbm [shape: bf16[4,128,32], index: 6, kind: output, shape index: {0}]
  %s7 = inlined_call_operand.hbm [shape: f32[2,2,32], index: 7, kind: output, shape index: {1}]
  %8 = xla_tuple %s6, %s7
  %s9 = sld [smem:[#allocation0]]
  $region89: #{st_gcn_forward.6} parent=0
    _
  %s11 = ssub.s32 1, %s9
  %s12 = scalar_select 0, %s11, %s9
  $region1: #{st_gcn_forward.6} parent=0
    #allocation3 [shape = 'u8[131072]{0}', space=vmem, size = 0x20000, scoped, tag = 'input window, operand 0']
    #allocation4 [shape = 's32[2]{0}', space=sflag, size = 0x8, scoped, tag = 'scoped memory for st_gcn_forward.6']
    #allocation5 [shape = 's32[2]{0}', space=sflag, size = 0x8, scoped, tag = 'scoped memory for st_gcn_forward.6']
    #allocation6 [shape = 'u8[512]{0}', space=vmem, size = 0x400, scoped, tag = 'input window, operand 1, single buffered']
    #allocation7 [shape = 's32[1]{0}', space=sflag, size = 0x4, scoped, tag = 'scoped memory for st_gcn_forward.6']
    #allocation8 [shape = 'u8[512]{0}', space=vmem, size = 0x400, scoped, tag = 'input window, operand 2, single buffered']
    #allocation9 [shape = 'u8[24576]{0}', space=vmem, size = 0x6000, scoped, tag = 'input window, operand 3, single buffered']
    #allocation10 [shape = 's32[1]{0}', space=sflag, size = 0x4, scoped, tag = 'scoped memory for st_gcn_forward.6']
    #allocation11 [shape = 'u8[512]{0}', space=vmem, size = 0x400, scoped, tag = 'input window, operand 4, single buffered']
    #allocation12 [shape = 'u8[131072]{0}', space=vmem, size = 0x20000, scoped, tag = 'input window, operand 5']
    #allocation13 [shape = 's32[2]{0}', space=sflag, size = 0x8, scoped, tag = 'scoped memory for st_gcn_forward.6']
    #allocation14 [shape = 'u8[131072]{0}', space=vmem, size = 0x20000, scoped, tag = 'output window, operand 0']
    #allocation15 [shape = 'u8[2048]{0}', space=vmem, size = 0x800, scoped, tag = 'output window, operand 1']
    #allocation16 [shape = 's32[2]{0}', space=sflag, size = 0x8, scoped, tag = 'scoped memory for st_gcn_forward.6']
    %13 = vsyncpa [#allocation4], 0
    %s14 = scalar_lea.sflag [#allocation4], 1
    %15 = vsyncpa %s14, 0
    %16 = vsyncpa [#allocation7], 0
    %17 = vsyncpa [#allocation10], 0
    %18 = vsyncpa [#allocation13], 0
    %s19 = scalar_lea.sflag [#allocation13], 1
    %20 = vsyncpa %s19, 0
    %21 = vsyncpa [#allocation5], 0
    %s22 = scalar_lea.sflag [#allocation5], 1
    %23 = vsyncpa %s22, 0
    %24 = vsyncpa [#allocation16], 0
    %s25 = scalar_lea.sflag [#allocation16], 1
    %26 = vsyncpa %s25, 0
    loop: start=0, step=1, limit=4
    $region2: #{st_gcn_forward.6} parent=1 // loop_pre_header
      _
    $region3: #{st_gcn_forward.6} parent=1 // loop_header
      %s28 = sphi 0, %s32
      %p29 = scmp.ge.s32.totalorder %s28, 4
      %s38 = sphi 0, %s40
      %s41 = sphi 0, %s38
      %s42 = sphi 0, %s41
      %s58 = sphi 0, %s42
      %s62 = sphi 0, %s62
      %s64 = sphi 0, %s62
      %s65 = sphi 0, %s64
      %s79 = sphi 0, %s65
      %s83 = sphi 0, %s83
      %s85 = sphi 0, %s83
      %s86 = sphi 0, %s85
      %s100 = sphi 0, %s86
      %s104 = sphi 0, %s104
      %s106 = sphi 0, %s104
      %s107 = sphi 0, %s106
      %s121 = sphi 0, %s107
      %s125 = sphi 0, %s125
      %s127 = sphi 0, %s125
      %s128 = sphi 0, %s127
      %s142 = sphi 0, %s128
      %s148 = sphi 0, %s150
      %s151 = sphi 0, %s148
      %s152 = sphi 0, %s151
      %s168 = sphi 0, %s152
      %s174 = sphi 0, %s176
      %s177 = sphi 0, %s174
      %s178 = sphi 0, %s177
      %s194 = sphi 0, %s178
      %s200 = sphi 0, %s202
      %s203 = sphi 0, %s200
      %s204 = sphi 0, %s203
      %s220 = sphi 0, %s204
    $region4: #{st_gcn_forward.6} parent=1 // loop_header_branch
      %31 = sbr.rel (%p29) target = $region8
    $region5: #{st_gcn_forward.6} parent=1 // loop_body
      %s33 = ssub.s32 %s28, 1
      %s34 = ssub.s32 %s28, 2
      %s35 = sadd.s32 %s28, 1
      %s36 = ssub.s32 %s28, %s35
      %p37 = scmp.eq.s32.totalorder %s36, 0
      %s39 = sadd.s32 %s38, 1
      %s40 = scalar_select %p37, %s38, %s39
      %p43 = pneg %p37
      %p44 = scmp.eq.s32.totalorder %s28, 1
      %p45 = por %p43, %p44
      %p46 = scmp.ne.s32.totalorder %s38, %s41
      %p47 = scmp.eq.s32.totalorder %s28, 0
      %p48 = por %p46, %p47
      %p49 = scmp.ne.s32.totalorder %s38, %s41
      %p50 = scmp.eq.s32.totalorder %s33, 1
      %p51 = por %p49, %p50
      %p52 = scmp.ne.s32.totalorder %s41, %s42
      %p53 = scmp.eq.s32.totalorder %s33, 0
      %p54 = por %p52, %p53
      %p55 = scmp.ne.s32.totalorder %s41, %s42
      %p56 = scmp.eq.s32.totalorder %s34, 1
      %p57 = por %p55, %p56
      %p59 = scmp.ne.s32.totalorder %s42, %s58
      %p60 = scmp.eq.s32.totalorder %s34, 0
      %p61 = por %p59, %p60
      %s63 = sadd.s32 %s62, 1
      %p66 = scmp.eq.s32.totalorder %s28, 1
      %p67 = scmp.ne.s32.totalorder %s62, %s64
      %p68 = scmp.eq.s32.totalorder %s28, 0
      %p69 = por %p67, %p68
      %p70 = scmp.ne.s32.totalorder %s62, %s64
      %p71 = scmp.eq.s32.totalorder %s33, 1
      %p72 = por %p70, %p71
      %p73 = scmp.ne.s32.totalorder %s64, %s65
      %p74 = scmp.eq.s32.totalorder %s33, 0
      %p75 = por %p73, %p74
      %p76 = scmp.ne.s32.totalorder %s64, %s65
      %p77 = scmp.eq.s32.totalorder %s34, 1
      %p78 = por %p76, %p77
      %p80 = scmp.ne.s32.totalorder %s65, %s79
      %p81 = scmp.eq.s32.totalorder %s34, 0
      %p82 = por %p80, %p81
      %s84 = sadd.s32 %s83, 1
      %p87 = scmp.eq.s32.totalorder %s28, 1
      %p88 = scmp.ne.s32.totalorder %s83, %s85
      %p89 = scmp.eq.s32.totalorder %s28, 0
      %p90 = por %p88, %p89
      %p91 = scmp.ne.s32.totalorder %s83, %s85
      %p92 = scmp.eq.s32.totalorder %s33, 1
      %p93 = por %p91, %p92
      %p94 = scmp.ne.s32.totalorder %s85, %s86
      %p95 = scmp.eq.s32.totalorder %s33, 0
      %p96 = por %p94, %p95
      %p97 = scmp.ne.s32.totalorder %s85, %s86
      %p98 = scmp.eq.s32.totalorder %s34, 1
      %p99 = por %p97, %p98
      %p101 = scmp.ne.s32.totalorder %s86, %s100
      %p102 = scmp.eq.s32.totalorder %s34, 0
      %p103 = por %p101, %p102
      %s105 = sadd.s32 %s104, 1
      %p108 = scmp.eq.s32.totalorder %s28, 1
      %p109 = scmp.ne.s32.totalorder %s104, %s106
      %p110 = scmp.eq.s32.totalorder %s28, 0
      %p111 = por %p109, %p110
      %p112 = scmp.ne.s32.totalorder %s104, %s106
      %p113 = scmp.eq.s32.totalorder %s33, 1
      %p114 = por %p112, %p113
      %p115 = scmp.ne.s32.totalorder %s106, %s107
      %p116 = scmp.eq.s32.totalorder %s33, 0
      %p117 = por %p115, %p116
      %p118 = scmp.ne.s32.totalorder %s106, %s107
      %p119 = scmp.eq.s32.totalorder %s34, 1
      %p120 = por %p118, %p119
      %p122 = scmp.ne.s32.totalorder %s107, %s121
      %p123 = scmp.eq.s32.totalorder %s34, 0
      %p124 = por %p122, %p123
      %s126 = sadd.s32 %s125, 1
      %p129 = scmp.eq.s32.totalorder %s28, 1
      %p130 = scmp.ne.s32.totalorder %s125, %s127
      %p131 = scmp.eq.s32.totalorder %s28, 0
      %p132 = por %p130, %p131
      %p133 = scmp.ne.s32.totalorder %s125, %s127
      %p134 = scmp.eq.s32.totalorder %s33, 1
      %p135 = por %p133, %p134
      %p136 = scmp.ne.s32.totalorder %s127, %s128
      %p137 = scmp.eq.s32.totalorder %s33, 0
      %p138 = por %p136, %p137
      %p139 = scmp.ne.s32.totalorder %s127, %s128
      %p140 = scmp.eq.s32.totalorder %s34, 1
      %p141 = por %p139, %p140
      %p143 = scmp.ne.s32.totalorder %s128, %s142
      %p144 = scmp.eq.s32.totalorder %s34, 0
      %p145 = por %p143, %p144
      %s146 = ssub.s32 %s28, %s35
      %p147 = scmp.eq.s32.totalorder %s146, 0
      %s149 = sadd.s32 %s148, 1
      %s150 = scalar_select %p147, %s148, %s149
      %p153 = pneg %p147
      %p154 = scmp.eq.s32.totalorder %s28, 1
      %p155 = por %p153, %p154
      %p156 = scmp.ne.s32.totalorder %s148, %s151
      %p157 = scmp.eq.s32.totalorder %s28, 0
      %p158 = por %p156, %p157
      %p159 = scmp.ne.s32.totalorder %s148, %s151
      %p160 = scmp.eq.s32.totalorder %s33, 1
      %p161 = por %p159, %p160
      %p162 = scmp.ne.s32.totalorder %s151, %s152
      %p163 = scmp.eq.s32.totalorder %s33, 0
      %p164 = por %p162, %p163
      %p165 = scmp.ne.s32.totalorder %s151, %s152
      %p166 = scmp.eq.s32.totalorder %s34, 1
      %p167 = por %p165, %p166
      %p169 = scmp.ne.s32.totalorder %s152, %s168
      %p170 = scmp.eq.s32.totalorder %s34, 0
      %p171 = por %p169, %p170
      %s172 = ssub.s32 %s28, %s35
      %p173 = scmp.eq.s32.totalorder %s172, 0
      %s175 = sadd.s32 %s174, 1
      %s176 = scalar_select %p173, %s174, %s175
      %p179 = pneg %p173
      %p180 = scmp.eq.s32.totalorder %s28, 1
      %p181 = por %p179, %p180
      %p182 = scmp.ne.s32.totalorder %s174, %s177
      %p183 = scmp.eq.s32.totalorder %s28, 0
      %p184 = por %p182, %p183
      %p185 = scmp.ne.s32.totalorder %s174, %s177
      %p186 = scmp.eq.s32.totalorder %s33, 1
      %p187 = por %p185, %p186
      %p188 = scmp.ne.s32.totalorder %s177, %s178
      %p189 = scmp.eq.s32.totalorder %s33, 0
      %p190 = por %p188, %p189
      %p191 = scmp.ne.s32.totalorder %s177, %s178
      %p192 = scmp.eq.s32.totalorder %s34, 1
      %p193 = por %p191, %p192
      %p195 = scmp.ne.s32.totalorder %s178, %s194
      %p196 = scmp.eq.s32.totalorder %s34, 0
      %p197 = por %p195, %p196
      %s198 = ssub.s32 %s28, %s35
      %p199 = scmp.eq.s32.totalorder %s198, 0
      %s201 = sadd.s32 %s200, 1
      %s202 = scalar_select %p199, %s200, %s201
      %p205 = pneg %p199
      %p206 = scmp.eq.s32.totalorder %s28, 1
      %p207 = por %p205, %p206
      %p208 = scmp.ne.s32.totalorder %s200, %s203
      %p209 = scmp.eq.s32.totalorder %s28, 0
      %p210 = por %p208, %p209
      %p211 = scmp.ne.s32.totalorder %s200, %s203
      %p212 = scmp.eq.s32.totalorder %s33, 1
      %p213 = por %p211, %p212
      %p214 = scmp.ne.s32.totalorder %s203, %s204
      %p215 = scmp.eq.s32.totalorder %s33, 0
      %p216 = por %p214, %p215
      %p217 = scmp.ne.s32.totalorder %s203, %s204
      %p218 = scmp.eq.s32.totalorder %s34, 1
      %p219 = por %p217, %p218
      %p221 = scmp.ne.s32.totalorder %s204, %s220
      %p222 = scmp.eq.s32.totalorder %s34, 0
      %p223 = por %p221, %p222
      %p224 = scmp.le.s32.totalorder 1, %s28
      %p225 = scmp.lt.s32.totalorder %s28, 3
      %p226 = pnand %p224, %p225
      %p227 = pneg %p226
      // Predicated region
      $region9: #{st_gcn_forward.6} parent=5 // pred_check
        _
      $region10: #{st_gcn_forward.6} parent=5 // pred_check_branch
        %229 = sbr.rel (%p226) target = $region12
      $region11: #{st_gcn_forward.6} parent=5 // pred_region
        %s230 = ssub.s32 %s28, 1
        // Predicated region
        $region13: #{st_gcn_forward.6} parent=11 // pred_check
          %p231 = pneg %p75
        $region14: #{st_gcn_forward.6} parent=11 // pred_check_branch
          %233 = sbr.rel (%p231) target = $region16
        $region15: #{st_gcn_forward.6} parent=11 // pred_region
          %s235 = ssub.s32 16, 16
          %236 = vsyncadd [#allocation7], %s235
          %s238 = sshll.u32 [#allocation6], 4
          %s239 = int_to_ptr.vmem [resolvable:$true] %s238
          %241 = dma.hbm_to_vmem [thread:$0]  %s1, 16, %s239, [#allocation7]
        $region16: #{st_gcn_forward.6} parent=11 // pred_fallthru
          _
        // Predicated region
        $region17: #{st_gcn_forward.6} parent=11 // pred_check
          %p242 = pneg %p96
        $region18: #{st_gcn_forward.6} parent=11 // pred_check_branch
          %244 = sbr.rel (%p242) target = $region20
        $region19: #{st_gcn_forward.6} parent=11 // pred_region
          %s246 = ssub.s32 16, 16
          %247 = vsyncadd [#allocation7], %s246
          %s249 = sshll.u32 [#allocation8], 4
          %s250 = int_to_ptr.vmem [resolvable:$true] %s249
          %252 = dma.hbm_to_vmem [thread:$0]  %s2, 16, %s250, [#allocation7]
        $region20: #{st_gcn_forward.6} parent=11 // pred_fallthru
          _
        // Predicated region
        $region21: #{st_gcn_forward.6} parent=11 // pred_check
          %p253 = pneg %p117
        $region22: #{st_gcn_forward.6} parent=11 // pred_check_branch
          %255 = sbr.rel (%p253) target = $region24
        $region23: #{st_gcn_forward.6} parent=11 // pred_region
          %s257 = ssub.s32 768, 768
          %258 = vsyncadd [#allocation10], %s257
          %s259 = sshll.u32 [#allocation9], 4
          %s260 = int_to_ptr.vmem [resolvable:$true] %s259
          %265 = dma.hbm_to_vmem [thread:$0]  %s3, 768, %s260, [#allocation10], 64, 64, 4
        $region24: #{st_gcn_forward.6} parent=11 // pred_fallthru
          _
        // Predicated region
        $region25: #{st_gcn_forward.6} parent=11 // pred_check
          %p266 = pneg %p138
        $region26: #{st_gcn_forward.6} parent=11 // pred_check_branch
          %268 = sbr.rel (%p266) target = $region28
        $region27: #{st_gcn_forward.6} parent=11 // pred_region
          %s270 = ssub.s32 16, 16
          %271 = vsyncadd [#allocation10], %s270
          %s273 = sshll.u32 [#allocation11], 4
          %s274 = int_to_ptr.vmem [resolvable:$true] %s273
          %276 = dma.hbm_to_vmem [thread:$0]  %s4, 16, %s274, [#allocation10]
        $region28: #{st_gcn_forward.6} parent=11 // pred_fallthru
          _
      $region12: #{st_gcn_forward.6} parent=5 // pred_fallthru
        _
      %p277 = scmp.lt.s32.totalorder %s28, 2
      // Predicated region
      $region29: #{st_gcn_forward.6} parent=5 // pred_check
        %p278 = pneg %p277
      $region30: #{st_gcn_forward.6} parent=5 // pred_check_branch
        %280 = sbr.rel (%p278) target = $region32
      $region31: #{st_gcn_forward.6} parent=5 // pred_region
        // Predicated region
        $region33: #{st_gcn_forward.6} parent=31 // pred_check
          %p281 = pneg %p48
        $region34: #{st_gcn_forward.6} parent=31 // pred_check_branch
          %283 = sbr.rel (%p281) target = $region36
        $region35: #{st_gcn_forward.6} parent=31 // pred_region
          %s284 = sand.u32 %s38, 1
          %s285 = scalar_lea.sflag [#allocation4], %s284
          %s286 = sand.u32 %s38, 1
          %s287 = smul.addr %s286, 128
          %s288 = scalar_lea.vmem [#allocation3], %s287
          %s289 = smul.u32 2, %s28
          %s291 = ssub.s32 2048, 2048
          %292 = vsyncadd %s285, %s291
          %s293 = smul.addr %s289, 16
          %s294 = smul.addr %s293, 64
          %s295 = scalar_lea.hbm %s0, %s294
          %s296 = sshll.u32 %s288, 4
          %s297 = int_to_ptr.vmem [resolvable:$true] %s296
          %302 = dma.hbm_to_vmem [thread:$0]  %s295, 2048, %s297, %s285, 64, 64, 4
        $region36: #{st_gcn_forward.6} parent=31 // pred_fallthru
          _
        // Predicated region
        $region37: #{st_gcn_forward.6} parent=31 // pred_check
          %p303 = pneg %p158
        $region38: #{st_gcn_forward.6} parent=31 // pred_check_branch
          %305 = sbr.rel (%p303) target = $region40
        $region39: #{st_gcn_forward.6} parent=31 // pred_region
          %s306 = sand.u32 %s148, 1
          %s307 = scalar_lea.sflag [#allocation13], %s306
          %s308 = sand.u32 %s148, 1
          %s309 = smul.addr %s308, 128
          %s310 = scalar_lea.vmem [#allocation12], %s309
          %s311 = smul.u32 2, %s28
          %s313 = ssub.s32 2048, 2048
          %314 = vsyncadd %s307, %s313
          %s315 = smul.addr %s311, 16
          %s316 = smul.addr %s315, 64
          %s317 = scalar_lea.hbm %s5, %s316
          %s318 = sshll.u32 %s310, 4
          %s319 = int_to_ptr.vmem [resolvable:$true] %s318
          %324 = dma.hbm_to_vmem [thread:$0]  %s317, 2048, %s319, %s307, 64, 64, 4
        $region40: #{st_gcn_forward.6} parent=31 // pred_fallthru
          _
      $region32: #{st_gcn_forward.6} parent=5 // pred_fallthru
        _
      %p325 = scmp.le.s32.totalorder 1, %s28
      %p326 = scmp.lt.s32.totalorder %s28, 3
      %p327 = pnand %p325, %p326
      %p328 = pneg %p327
      // Predicated region
      $region41: #{st_gcn_forward.6} parent=5 // pred_check
        _
      $region42: #{st_gcn_forward.6} parent=5 // pred_check_branch
        %330 = sbr.rel (%p327) target = $region44
      $region43: #{st_gcn_forward.6} parent=5 // pred_region
        %s331 = ssub.s32 %s28, 1
        %s332 = sand.u32 %s41, 1
        %s333 = scalar_lea.sflag [#allocation4], %s332
        %s334 = sand.u32 %s41, 1
        %s335 = smul.addr %s334, 128
        %s336 = scalar_lea.vmem [#allocation3], %s335
        // Predicated region
        $region45: #{st_gcn_forward.6} parent=43 // pred_check
          %p337 = pneg %p54
        $region46: #{st_gcn_forward.6} parent=43 // pred_check_branch
          %339 = sbr.rel (%p337) target = $region48
        $region47: #{st_gcn_forward.6} parent=43 // pred_region
          %340 = dma.done %s333, 2048
        $region48: #{st_gcn_forward.6} parent=43 // pred_fallthru
          _
        // Predicated region
        $region49: #{st_gcn_forward.6} parent=43 // pred_check
          %p341 = pneg %p75
        $region50: #{st_gcn_forward.6} parent=43 // pred_check_branch
          %343 = sbr.rel (%p341) target = $region52
        $region51: #{st_gcn_forward.6} parent=43 // pred_region
          %344 = dma.done [#allocation7], 16
        $region52: #{st_gcn_forward.6} parent=43 // pred_fallthru
          _
        // Predicated region
        $region53: #{st_gcn_forward.6} parent=43 // pred_check
          %p345 = pneg %p96
        $region54: #{st_gcn_forward.6} parent=43 // pred_check_branch
          %347 = sbr.rel (%p345) target = $region56
        $region55: #{st_gcn_forward.6} parent=43 // pred_region
          %348 = dma.done [#allocation7], 16
        $region56: #{st_gcn_forward.6} parent=43 // pred_fallthru
          _
        // Predicated region
        $region57: #{st_gcn_forward.6} parent=43 // pred_check
          %p349 = pneg %p117
        $region58: #{st_gcn_forward.6} parent=43 // pred_check_branch
          %351 = sbr.rel (%p349) target = $region60
        $region59: #{st_gcn_forward.6} parent=43 // pred_region
          %352 = dma.done [#allocation10], 768
        $region60: #{st_gcn_forward.6} parent=43 // pred_fallthru
          _
        // Predicated region
        $region61: #{st_gcn_forward.6} parent=43 // pred_check
          %p353 = pneg %p138
        $region62: #{st_gcn_forward.6} parent=43 // pred_check_branch
          %355 = sbr.rel (%p353) target = $region64
        $region63: #{st_gcn_forward.6} parent=43 // pred_region
          %356 = dma.done [#allocation10], 16
        $region64: #{st_gcn_forward.6} parent=43 // pred_fallthru
          _
        %s357 = sand.u32 %s151, 1
        %s358 = scalar_lea.sflag [#allocation13], %s357
        %s359 = sand.u32 %s151, 1
        %s360 = smul.addr %s359, 128
        %s361 = scalar_lea.vmem [#allocation12], %s360
        // Predicated region
        $region65: #{st_gcn_forward.6} parent=43 // pred_check
          %p362 = pneg %p164
        $region66: #{st_gcn_forward.6} parent=43 // pred_check_branch
          %364 = sbr.rel (%p362) target = $region68
        $region67: #{st_gcn_forward.6} parent=43 // pred_region
          %365 = dma.done %s358, 2048
        $region68: #{st_gcn_forward.6} parent=43 // pred_fallthru
          _
        %s366 = sand.u32 %s41, 1
        %s367 = scalar_lea.sflag [#allocation4], %s366
        %s368 = sand.u32 %s41, 1
        %s369 = smul.addr %s368, 128
        %s370 = scalar_lea.vmem [#allocation3], %s369
        %p371 = pneg %p54
        %p372 = pneg %p51
        %p373 = pneg %p75
        %p374 = pneg %p72
        %p375 = pneg %p96
        %p376 = pneg %p93
        %p377 = pneg %p117
        %p378 = pneg %p114
        %p379 = pneg %p138
        %p380 = pneg %p135
        %s381 = sand.u32 %s151, 1
        %s382 = scalar_lea.sflag [#allocation13], %s381
        %s383 = sand.u32 %s151, 1
        %s384 = smul.addr %s383, 128
        %s385 = scalar_lea.vmem [#allocation12], %s384
        %p386 = pneg %p164
        %p387 = pneg %p161
        %p388 = pneg %p190
        %p389 = pneg %p187
        %s390 = sand.u32 %s177, 1
        %s391 = scalar_lea.sflag [#allocation5], %s390
        %s392 = sand.u32 %s177, 1
        %s393 = smul.addr %s392, 128
        %s394 = scalar_lea.vmem [#allocation14], %s393
        %p395 = pneg %p216
        %p396 = pneg %p213
        %s397 = sand.u32 %s203, 1
        %s398 = scalar_lea.sflag [#allocation16], %s397
        %s399 = sand.u32 %s203, 1
        %s400 = smul.addr %s399, 2
        %s401 = scalar_lea.vmem [#allocation15], %s400
        %s402 = smul.u32 2, %s33
        %s403 = smul.u32 2, %s33
        %s404 = smul.u32 2, %s33
        %v406 = vld [vmem:[%s336] sm:$0xf]
        %v407 = vld [vmem:[%s336 + $0x4] sm:$0xf]
        %v408 = vld [vmem:[%s336 + $0x8] sm:$0xf]
        %v409 = vld [vmem:[%s336 + $0xc] sm:$0xf]
        %v410 = vld [vmem:[%s336 + $0x10] sm:$0xf]
        %v411 = vld [vmem:[%s336 + $0x14] sm:$0xf]
        %v412 = vld [vmem:[%s336 + $0x18] sm:$0xf]
        %v413 = vld [vmem:[%s336 + $0x1c] sm:$0xf]
        %v414 = vld [vmem:[%s336 + $0x20] sm:$0xf]
        %v415 = vld [vmem:[%s336 + $0x24] sm:$0xf]
        %v416 = vld [vmem:[%s336 + $0x28] sm:$0xf]
        %v417 = vld [vmem:[%s336 + $0x2c] sm:$0xf]
        %v418 = vld [vmem:[%s336 + $0x30] sm:$0xf]
        %v419 = vld [vmem:[%s336 + $0x34] sm:$0xf]
        %v420 = vld [vmem:[%s336 + $0x38] sm:$0xf]
        %v421 = vld [vmem:[%s336 + $0x3c] sm:$0xf]
        %v422 = vld [vmem:[%s336 + $0x40] sm:$0xf]
        %v423 = vld [vmem:[%s336 + $0x44] sm:$0xf]
        %v424 = vld [vmem:[%s336 + $0x48] sm:$0xf]
        %v425 = vld [vmem:[%s336 + $0x4c] sm:$0xf]
        %v426 = vld [vmem:[%s336 + $0x50] sm:$0xf]
        %v427 = vld [vmem:[%s336 + $0x54] sm:$0xf]
        %v428 = vld [vmem:[%s336 + $0x58] sm:$0xf]
        %v429 = vld [vmem:[%s336 + $0x5c] sm:$0xf]
        %v430 = vld [vmem:[%s336 + $0x60] sm:$0xf]
        %v431 = vld [vmem:[%s336 + $0x64] sm:$0xf]
        %v432 = vld [vmem:[%s336 + $0x68] sm:$0xf]
        %v433 = vld [vmem:[%s336 + $0x6c] sm:$0xf]
        %v434 = vld [vmem:[%s336 + $0x70] sm:$0xf]
        %v435 = vld [vmem:[%s336 + $0x74] sm:$0xf]
        %v436 = vld [vmem:[%s336 + $0x78] sm:$0xf]
        %v437 = vld [vmem:[%s336 + $0x7c] sm:$0xf]
        %v438 = vunpack.c.l.bf16 %v406
        %v439 = vunpack.c.l.bf16 %v407
        %v440 = vunpack.c.l.bf16 %v408
        %v441 = vunpack.c.l.bf16 %v409
        %v442 = vunpack.c.l.bf16 %v410
        %v443 = vunpack.c.l.bf16 %v411
        %v444 = vunpack.c.l.bf16 %v412
        %v445 = vunpack.c.l.bf16 %v413
        %v446 = vunpack.c.l.bf16 %v414
        %v447 = vunpack.c.l.bf16 %v415
        %v448 = vunpack.c.l.bf16 %v416
        %v449 = vunpack.c.l.bf16 %v417
        %v450 = vunpack.c.l.bf16 %v418
        %v451 = vunpack.c.l.bf16 %v419
        %v452 = vunpack.c.l.bf16 %v420
        %v453 = vunpack.c.l.bf16 %v421
        %v454 = vunpack.c.l.bf16 %v422
        %v455 = vunpack.c.l.bf16 %v423
        %v456 = vunpack.c.l.bf16 %v424
        %v457 = vunpack.c.l.bf16 %v425
        %v458 = vunpack.c.l.bf16 %v426
        %v459 = vunpack.c.l.bf16 %v427
        %v460 = vunpack.c.l.bf16 %v428
        %v461 = vunpack.c.l.bf16 %v429
        %v462 = vunpack.c.l.bf16 %v430
        %v463 = vunpack.c.l.bf16 %v431
        %v464 = vunpack.c.l.bf16 %v432
        %v465 = vunpack.c.l.bf16 %v433
        %v466 = vunpack.c.l.bf16 %v434
        %v467 = vunpack.c.l.bf16 %v435
        %v468 = vunpack.c.l.bf16 %v436
        %v469 = vunpack.c.l.bf16 %v437
        %v470 = vld [vmem:[#allocation6] sm:$0x1]
        %v472 = vlaneseq
        %v473 = vshrl.u32 %v472, 7
        %v474 = vsub.s32 0, %v473
        %v475 = vrot.slane %v470, %v474
        %v477 = vmul.f32 %v438, %v475
        %v478 = vmul.f32 %v439, %v475
        %v479 = vmul.f32 %v440, %v475
        %v480 = vmul.f32 %v441, %v475
        %v481 = vmul.f32 %v442, %v475
        %v482 = vmul.f32 %v443, %v475
        %v483 = vmul.f32 %v444, %v475
        %v484 = vmul.f32 %v445, %v475
        %v485 = vmul.f32 %v446, %v475
        %v486 = vmul.f32 %v447, %v475
        %v487 = vmul.f32 %v448, %v475
        %v488 = vmul.f32 %v449, %v475
        %v489 = vmul.f32 %v450, %v475
        %v490 = vmul.f32 %v451, %v475
        %v491 = vmul.f32 %v452, %v475
        %v492 = vmul.f32 %v453, %v475
        %v493 = vmul.f32 %v454, %v475
        %v494 = vmul.f32 %v455, %v475
        %v495 = vmul.f32 %v456, %v475
        %v496 = vmul.f32 %v457, %v475
        %v497 = vmul.f32 %v458, %v475
        %v498 = vmul.f32 %v459, %v475
        %v499 = vmul.f32 %v460, %v475
        %v500 = vmul.f32 %v461, %v475
        %v501 = vmul.f32 %v462, %v475
        %v502 = vmul.f32 %v463, %v475
        %v503 = vmul.f32 %v464, %v475
        %v504 = vmul.f32 %v465, %v475
        %v505 = vmul.f32 %v466, %v475
        %v506 = vmul.f32 %v467, %v475
        %v507 = vmul.f32 %v468, %v475
        %v508 = vmul.f32 %v469, %v475
        %v509 = vld [vmem:[#allocation8] sm:$0x1]
        %v511 = vlaneseq
        %v512 = vshrl.u32 %v511, 7
        %v513 = vsub.s32 0, %v512
        %v514 = vrot.slane %v509, %v513
        %v516 = vadd.f32 %v477, %v514
        %v517 = vadd.f32 %v478, %v514
        %v518 = vadd.f32 %v479, %v514
        %v519 = vadd.f32 %v480, %v514
        %v520 = vadd.f32 %v481, %v514
        %v521 = vadd.f32 %v482, %v514
        %v522 = vadd.f32 %v483, %v514
        %v523 = vadd.f32 %v484, %v514
        %v524 = vadd.f32 %v485, %v514
        %v525 = vadd.f32 %v486, %v514
        %v526 = vadd.f32 %v487, %v514
        %v527 = vadd.f32 %v488, %v514
        %v528 = vadd.f32 %v489, %v514
        %v529 = vadd.f32 %v490, %v514
        %v530 = vadd.f32 %v491, %v514
        %v531 = vadd.f32 %v492, %v514
        %v532 = vadd.f32 %v493, %v514
        %v533 = vadd.f32 %v494, %v514
        %v534 = vadd.f32 %v495, %v514
        %v535 = vadd.f32 %v496, %v514
        %v536 = vadd.f32 %v497, %v514
        %v537 = vadd.f32 %v498, %v514
        %v538 = vadd.f32 %v499, %v514
        %v539 = vadd.f32 %v500, %v514
        %v540 = vadd.f32 %v501, %v514
        %v541 = vadd.f32 %v502, %v514
        %v542 = vadd.f32 %v503, %v514
        %v543 = vadd.f32 %v504, %v514
        %v544 = vadd.f32 %v505, %v514
        %v545 = vadd.f32 %v506, %v514
        %v546 = vadd.f32 %v507, %v514
        %v547 = vadd.f32 %v508, %v514
        %vm548 = vcmp.gt.f32.partialorder %v516, 0.0
        %vm549 = vcmp.gt.f32.partialorder %v517, 0.0
        %vm550 = vcmp.gt.f32.partialorder %v518, 0.0
        %vm551 = vcmp.gt.f32.partialorder %v519, 0.0
        %vm552 = vcmp.gt.f32.partialorder %v520, 0.0
        %vm553 = vcmp.gt.f32.partialorder %v521, 0.0
        %vm554 = vcmp.gt.f32.partialorder %v522, 0.0
        %vm555 = vcmp.gt.f32.partialorder %v523, 0.0
        %vm556 = vcmp.gt.f32.partialorder %v524, 0.0
        %vm557 = vcmp.gt.f32.partialorder %v525, 0.0
        %vm558 = vcmp.gt.f32.partialorder %v526, 0.0
        %vm559 = vcmp.gt.f32.partialorder %v527, 0.0
        %vm560 = vcmp.gt.f32.partialorder %v528, 0.0
        %vm561 = vcmp.gt.f32.partialorder %v529, 0.0
        %vm562 = vcmp.gt.f32.partialorder %v530, 0.0
        %vm563 = vcmp.gt.f32.partialorder %v531, 0.0
        %vm564 = vcmp.gt.f32.partialorder %v532, 0.0
        %vm565 = vcmp.gt.f32.partialorder %v533, 0.0
        %vm566 = vcmp.gt.f32.partialorder %v534, 0.0
        %vm567 = vcmp.gt.f32.partialorder %v535, 0.0
        %vm568 = vcmp.gt.f32.partialorder %v536, 0.0
        %vm569 = vcmp.gt.f32.partialorder %v537, 0.0
        %vm570 = vcmp.gt.f32.partialorder %v538, 0.0
        %vm571 = vcmp.gt.f32.partialorder %v539, 0.0
        %vm572 = vcmp.gt.f32.partialorder %v540, 0.0
        %vm573 = vcmp.gt.f32.partialorder %v541, 0.0
        %vm574 = vcmp.gt.f32.partialorder %v542, 0.0
        %vm575 = vcmp.gt.f32.partialorder %v543, 0.0
        %vm576 = vcmp.gt.f32.partialorder %v544, 0.0
        %vm577 = vcmp.gt.f32.partialorder %v545, 0.0
        %vm578 = vcmp.gt.f32.partialorder %v546, 0.0
        %vm579 = vcmp.gt.f32.partialorder %v547, 0.0
        %v580 = vmul.f32 %v516, 0.01
        %v581 = vmul.f32 %v517, 0.01
        %v582 = vmul.f32 %v518, 0.01
        %v583 = vmul.f32 %v519, 0.01
        %v584 = vmul.f32 %v520, 0.01
        %v585 = vmul.f32 %v521, 0.01
        %v586 = vmul.f32 %v522, 0.01
        %v587 = vmul.f32 %v523, 0.01
        %v588 = vmul.f32 %v524, 0.01
        %v589 = vmul.f32 %v525, 0.01
        %v590 = vmul.f32 %v526, 0.01
        %v591 = vmul.f32 %v527, 0.01
        %v592 = vmul.f32 %v528, 0.01
        %v593 = vmul.f32 %v529, 0.01
        %v594 = vmul.f32 %v530, 0.01
        %v595 = vmul.f32 %v531, 0.01
        %v596 = vmul.f32 %v532, 0.01
        %v597 = vmul.f32 %v533, 0.01
        %v598 = vmul.f32 %v534, 0.01
        %v599 = vmul.f32 %v535, 0.01
        %v600 = vmul.f32 %v536, 0.01
        %v601 = vmul.f32 %v537, 0.01
        %v602 = vmul.f32 %v538, 0.01
        %v603 = vmul.f32 %v539, 0.01
        %v604 = vmul.f32 %v540, 0.01
        %v605 = vmul.f32 %v541, 0.01
        %v606 = vmul.f32 %v542, 0.01
        %v607 = vmul.f32 %v543, 0.01
        %v608 = vmul.f32 %v544, 0.01
        %v609 = vmul.f32 %v545, 0.01
        %v610 = vmul.f32 %v546, 0.01
        %v611 = vmul.f32 %v547, 0.01
        %v612 = vsel %vm548, %v516, %v580
        %v613 = vsel %vm549, %v517, %v581
        %v614 = vsel %vm550, %v518, %v582
        %v615 = vsel %vm551, %v519, %v583
        %v616 = vsel %vm552, %v520, %v584
        %v617 = vsel %vm553, %v521, %v585
        %v618 = vsel %vm554, %v522, %v586
        %v619 = vsel %vm555, %v523, %v587
        %v620 = vsel %vm556, %v524, %v588
        %v621 = vsel %vm557, %v525, %v589
        %v622 = vsel %vm558, %v526, %v590
        %v623 = vsel %vm559, %v527, %v591
        %v624 = vsel %vm560, %v528, %v592
        %v625 = vsel %vm561, %v529, %v593
        %v626 = vsel %vm562, %v530, %v594
        %v627 = vsel %vm563, %v531, %v595
        %v628 = vsel %vm564, %v532, %v596
        %v629 = vsel %vm565, %v533, %v597
        %v630 = vsel %vm566, %v534, %v598
        %v631 = vsel %vm567, %v535, %v599
        %v632 = vsel %vm568, %v536, %v600
        %v633 = vsel %vm569, %v537, %v601
        %v634 = vsel %vm570, %v538, %v602
        %v635 = vsel %vm571, %v539, %v603
        %v636 = vsel %vm572, %v540, %v604
        %v637 = vsel %vm573, %v541, %v605
        %v638 = vsel %vm574, %v542, %v606
        %v639 = vsel %vm575, %v543, %v607
        %v640 = vsel %vm576, %v544, %v608
        %v641 = vsel %vm577, %v545, %v609
        %v642 = vsel %vm578, %v546, %v610
        %v643 = vsel %vm579, %v547, %v611
        %vm644 = vcmask 261120
        %645 = vst.msk [vmem:[#allocation2] sm:$0xff] %vm644, 0.0
        %646 = vst.msk [vmem:[#allocation2 + $0x8] sm:$0xff] %vm644, 0.0
        %647 = vst.msk [vmem:[#allocation2 + $0x10] sm:$0xff] %vm644, 0.0
        %648 = vst.msk [vmem:[#allocation2 + $0x18] sm:$0xff] %vm644, 0.0
        %649 = vst.msk [vmem:[#allocation2 + $0x20] sm:$0xff] %vm644, 0.0
        %650 = vst.msk [vmem:[#allocation2 + $0x28] sm:$0xff] %vm644, 0.0
        %651 = vst.msk [vmem:[#allocation2 + $0x30] sm:$0xff] %vm644, 0.0
        %652 = vst.msk [vmem:[#allocation2 + $0x38] sm:$0xff] %vm644, 0.0
        %653 = vst.msk [vmem:[#allocation2 + $0x40] sm:$0xff] %vm644, 0.0
        %654 = vst.msk [vmem:[#allocation2 + $0x48] sm:$0xff] %vm644, 0.0
        %655 = vst.msk [vmem:[#allocation2 + $0x50] sm:$0xff] %vm644, 0.0
        %656 = vst.msk [vmem:[#allocation2 + $0x58] sm:$0xff] %vm644, 0.0
        %657 = vst.msk [vmem:[#allocation2 + $0x60] sm:$0xff] %vm644, 0.0
        %658 = vst.msk [vmem:[#allocation2 + $0x68] sm:$0xff] %vm644, 0.0
        %659 = vst.msk [vmem:[#allocation2 + $0x70] sm:$0xff] %vm644, 0.0
        %660 = vst.msk [vmem:[#allocation2 + $0x78] sm:$0xff] %vm644, 0.0
        %661 = vst.msk [vmem:[#allocation2 + $0x80] sm:$0xff] %vm644, 0.0
        %662 = vst.msk [vmem:[#allocation2 + $0x88] sm:$0xff] %vm644, 0.0
        %663 = vst.msk [vmem:[#allocation2 + $0x90] sm:$0xff] %vm644, 0.0
        %664 = vst.msk [vmem:[#allocation2 + $0x98] sm:$0xff] %vm644, 0.0
        %665 = vst.msk [vmem:[#allocation2 + $0xa0] sm:$0xff] %vm644, 0.0
        %666 = vst.msk [vmem:[#allocation2 + $0xa8] sm:$0xff] %vm644, 0.0
        %667 = vst.msk [vmem:[#allocation2 + $0xb0] sm:$0xff] %vm644, 0.0
        %668 = vst.msk [vmem:[#allocation2 + $0xb8] sm:$0xff] %vm644, 0.0
        %669 = vst.msk [vmem:[#allocation2 + $0xc0] sm:$0xff] %vm644, 0.0
        %670 = vst.msk [vmem:[#allocation2 + $0xc8] sm:$0xff] %vm644, 0.0
        %671 = vst.msk [vmem:[#allocation2 + $0xd0] sm:$0xff] %vm644, 0.0
        %672 = vst.msk [vmem:[#allocation2 + $0xd8] sm:$0xff] %vm644, 0.0
        %673 = vst.msk [vmem:[#allocation2 + $0xe0] sm:$0xff] %vm644, 0.0
        %674 = vst.msk [vmem:[#allocation2 + $0xe8] sm:$0xff] %vm644, 0.0
        %675 = vst.msk [vmem:[#allocation2 + $0xf0] sm:$0xff] %vm644, 0.0
        %676 = vst.msk [vmem:[#allocation2 + $0xf8] sm:$0xff] %vm644, 0.0
        %677 = vst.msk [vmem:[#allocation2 + $0x100] sm:$0xff] %vm644, 0.0
        %678 = vst.msk [vmem:[#allocation2 + $0x108] sm:$0xff] %vm644, 0.0
        %679 = vst.msk [vmem:[#allocation2 + $0x110] sm:$0xff] %vm644, 0.0
        %680 = vst.msk [vmem:[#allocation2 + $0x118] sm:$0xff] %vm644, 0.0
        %681 = vst.msk [vmem:[#allocation2 + $0x120] sm:$0xff] %vm644, 0.0
        %682 = vst.msk [vmem:[#allocation2 + $0x128] sm:$0xff] %vm644, 0.0
        %683 = vst.msk [vmem:[#allocation2 + $0x130] sm:$0xff] %vm644, 0.0
        %684 = vst.msk [vmem:[#allocation2 + $0x138] sm:$0xff] %vm644, 0.0
        %685 = vst.msk [vmem:[#allocation2 + $0x10] sm:$0xff] %vm644, %v612
        %686 = vst.msk [vmem:[#allocation2 + $0x18] sm:$0xff] %vm644, %v613
        %687 = vst.msk [vmem:[#allocation2 + $0x20] sm:$0xff] %vm644, %v614
        %688 = vst.msk [vmem:[#allocation2 + $0x28] sm:$0xff] %vm644, %v615
        %689 = vst.msk [vmem:[#allocation2 + $0x30] sm:$0xff] %vm644, %v616
        %690 = vst.msk [vmem:[#allocation2 + $0x38] sm:$0xff] %vm644, %v617
        %691 = vst.msk [vmem:[#allocation2 + $0x40] sm:$0xff] %vm644, %v618
        %692 = vst.msk [vmem:[#allocation2 + $0x48] sm:$0xff] %vm644, %v619
        %693 = vst.msk [vmem:[#allocation2 + $0x50] sm:$0xff] %vm644, %v620
        %694 = vst.msk [vmem:[#allocation2 + $0x58] sm:$0xff] %vm644, %v621
        %695 = vst.msk [vmem:[#allocation2 + $0x60] sm:$0xff] %vm644, %v622
        %696 = vst.msk [vmem:[#allocation2 + $0x68] sm:$0xff] %vm644, %v623
        %697 = vst.msk [vmem:[#allocation2 + $0x70] sm:$0xff] %vm644, %v624
        %698 = vst.msk [vmem:[#allocation2 + $0x78] sm:$0xff] %vm644, %v625
        %699 = vst.msk [vmem:[#allocation2 + $0x80] sm:$0xff] %vm644, %v626
        %700 = vst.msk [vmem:[#allocation2 + $0x88] sm:$0xff] %vm644, %v627
        %701 = vst.msk [vmem:[#allocation2 + $0xb0] sm:$0xff] %vm644, %v628
        %702 = vst.msk [vmem:[#allocation2 + $0xb8] sm:$0xff] %vm644, %v629
        %703 = vst.msk [vmem:[#allocation2 + $0xc0] sm:$0xff] %vm644, %v630
        %704 = vst.msk [vmem:[#allocation2 + $0xc8] sm:$0xff] %vm644, %v631
        %705 = vst.msk [vmem:[#allocation2 + $0xd0] sm:$0xff] %vm644, %v632
        %706 = vst.msk [vmem:[#allocation2 + $0xd8] sm:$0xff] %vm644, %v633
        %707 = vst.msk [vmem:[#allocation2 + $0xe0] sm:$0xff] %vm644, %v634
        %708 = vst.msk [vmem:[#allocation2 + $0xe8] sm:$0xff] %vm644, %v635
        %709 = vst.msk [vmem:[#allocation2 + $0xf0] sm:$0xff] %vm644, %v636
        %710 = vst.msk [vmem:[#allocation2 + $0xf8] sm:$0xff] %vm644, %v637
        %711 = vst.msk [vmem:[#allocation2 + $0x100] sm:$0xff] %vm644, %v638
        %712 = vst.msk [vmem:[#allocation2 + $0x108] sm:$0xff] %vm644, %v639
        %713 = vst.msk [vmem:[#allocation2 + $0x110] sm:$0xff] %vm644, %v640
        %714 = vst.msk [vmem:[#allocation2 + $0x118] sm:$0xff] %vm644, %v641
        %715 = vst.msk [vmem:[#allocation2 + $0x120] sm:$0xff] %vm644, %v642
        %716 = vst.msk [vmem:[#allocation2 + $0x128] sm:$0xff] %vm644, %v643
        %v717 = vld [vmem:[#allocation2] sm:$0xff]
        %v718 = vld [vmem:[#allocation2 + $0x8] sm:$0xff]
        %v719 = vld [vmem:[#allocation2 + $0x10] sm:$0xff]
        %v720 = vld [vmem:[#allocation2 + $0x18] sm:$0xff]
        %v721 = vld [vmem:[#allocation2 + $0x20] sm:$0xff]
        %v722 = vld [vmem:[#allocation2 + $0x28] sm:$0xff]
        %v723 = vld [vmem:[#allocation2 + $0x30] sm:$0xff]
        %v724 = vld [vmem:[#allocation2 + $0x38] sm:$0xff]
        %v725 = vld [vmem:[#allocation2 + $0x40] sm:$0xff]
        %v726 = vld [vmem:[#allocation2 + $0x48] sm:$0xff]
        %v727 = vld [vmem:[#allocation2 + $0x50] sm:$0xff]
        %v728 = vld [vmem:[#allocation2 + $0x58] sm:$0xff]
        %v729 = vld [vmem:[#allocation2 + $0x60] sm:$0xff]
        %v730 = vld [vmem:[#allocation2 + $0x68] sm:$0xff]
        %v731 = vld [vmem:[#allocation2 + $0x70] sm:$0xff]
        %v732 = vld [vmem:[#allocation2 + $0x78] sm:$0xff]
        %v733 = vld [vmem:[#allocation2 + $0xa0] sm:$0xff]
        %v734 = vld [vmem:[#allocation2 + $0xa8] sm:$0xff]
        %v735 = vld [vmem:[#allocation2 + $0xb0] sm:$0xff]
        %v736 = vld [vmem:[#allocation2 + $0xb8] sm:$0xff]
        %v737 = vld [vmem:[#allocation2 + $0xc0] sm:$0xff]
        %v738 = vld [vmem:[#allocation2 + $0xc8] sm:$0xff]
        %v739 = vld [vmem:[#allocation2 + $0xd0] sm:$0xff]
        %v740 = vld [vmem:[#allocation2 + $0xd8] sm:$0xff]
        %v741 = vld [vmem:[#allocation2 + $0xe0] sm:$0xff]
        %v742 = vld [vmem:[#allocation2 + $0xe8] sm:$0xff]
        %v743 = vld [vmem:[#allocation2 + $0xf0] sm:$0xff]
        %v744 = vld [vmem:[#allocation2 + $0xf8] sm:$0xff]
        %v745 = vld [vmem:[#allocation2 + $0x100] sm:$0xff]
        %v746 = vld [vmem:[#allocation2 + $0x108] sm:$0xff]
        %v747 = vld [vmem:[#allocation2 + $0x110] sm:$0xff]
        %v748 = vld [vmem:[#allocation2 + $0x118] sm:$0xff]
        %v749 = vpack.c.bf16 %v718, %v717
        %v750 = vpack.c.bf16 %v720, %v719
        %v751 = vpack.c.bf16 %v722, %v721
        %v752 = vpack.c.bf16 %v724, %v723
        %v753 = vpack.c.bf16 %v726, %v725
        %v754 = vpack.c.bf16 %v728, %v727
        %v755 = vpack.c.bf16 %v730, %v729
        %v756 = vpack.c.bf16 %v732, %v731
        %v757 = vpack.c.bf16 %v734, %v733
        %v758 = vpack.c.bf16 %v736, %v735
        %v759 = vpack.c.bf16 %v738, %v737
        %v760 = vpack.c.bf16 %v740, %v739
        %v761 = vpack.c.bf16 %v742, %v741
        %v762 = vpack.c.bf16 %v744, %v743
        %v763 = vpack.c.bf16 %v746, %v745
        %v764 = vpack.c.bf16 %v748, %v747
        %v765 = vld [vmem:[#allocation9] sm:$0xf]
        %v766 = vld [vmem:[#allocation9 + $0x4] sm:$0xf]
        %v767 = vld [vmem:[#allocation9 + $0x8] sm:$0xf]
        %v768 = vld [vmem:[#allocation9 + $0xc] sm:$0xf]
        %v769 = vld [vmem:[#allocation2 + $0x80] sm:$0xff]
        %v770 = vld [vmem:[#allocation2 + $0x88] sm:$0xff]
        %v771 = vld [vmem:[#allocation2 + $0x120] sm:$0xff]
        %v772 = vld [vmem:[#allocation2 + $0x128] sm:$0xff]
        %v773 = vpack.c.bf16 %v770, %v769
        %v774 = vpack.c.bf16 %v772, %v771
        %s775 = scalar_lea.vmem [#allocation9], 16
        %v776 = vld [vmem:[%s775] sm:$0xf]
        %v777 = vld [vmem:[%s775 + $0x4] sm:$0xf]
        %v778 = vld [vmem:[%s775 + $0x8] sm:$0xf]
        %v779 = vld [vmem:[%s775 + $0xc] sm:$0xf]
        %v784 = vunpack.c.l.b16 %v776
        %v785 = vunpack.c.l.b16 %v777
        %v786 = vunpack.c.l.b16 %v778
        %v787 = vunpack.c.l.b16 %v779
        %v788 = vpack.c.b16 %v785, %v784
        %v789 = vpack.c.b16 %v787, %v786
        %v793 = vsel %vm644, %v750, 0
        %v796 = vsel %vm644, %v751, 0
        %v799 = vsel %vm644, %v752, 0
        %v802 = vsel %vm644, %v753, 0
        %v805 = vsel %vm644, %v754, 0
        %v808 = vsel %vm644, %v755, 0
        %v811 = vsel %vm644, %v756, 0
        %v814 = vsel %vm644, %v773, 0
        %v817 = vsel %vm644, %v758, 0
        %v820 = vsel %vm644, %v759, 0
        %v823 = vsel %vm644, %v760, 0
        %v826 = vsel %vm644, %v761, 0
        %v829 = vsel %vm644, %v762, 0
        %v832 = vsel %vm644, %v763, 0
        %v835 = vsel %vm644, %v764, 0
        %v838 = vsel %vm644, %v774, 0
        %840 = vmatprep.subr.bf16.mxu0 0
        %841 = vmatpush1.bf16.msra.mxu0 %v788
        %842 = vmatprep.subr.bf16.mxu0 0
        %843 = vmatpush1.bf16.msra.mxu0 %v789
        %844 = vmatprep.subr.bf16.mxu0 0
        %845 = vmatpush1.bf16.msra.mxu0 0
        %846 = vmatprep.subr.bf16.mxu0 0
        %847 = vmatpush1.bf16.msra.mxu0 0
        %848 = vmatprep.subr.bf16.mxu0 0
        %849 = vmatpush1.bf16.msra.mxu0 0
        %850 = vmatprep.subr.bf16.mxu0 0
        %851 = vmatpush1.bf16.msra.mxu0 0
        %852 = vmatprep.subr.bf16.mxu0 0
        %853 = vmatpush1.bf16.msra.mxu0 0
        %854 = vmatprep.subr.bf16.mxu0 0
        %855 = vmatpush1.bf16.msra.mxu0 0
        %856 = vmatprep.subr.bf16.mxu0 0
        %857 = vmatpush1.bf16.msra.mxu0 0
        %858 = vmatprep.subr.bf16.mxu0 0
        %859 = vmatpush1.bf16.msra.mxu0 0
        %860 = vmatprep.subr.bf16.mxu0 0
        %861 = vmatpush1.bf16.msra.mxu0 0
        %862 = vmatprep.subr.bf16.mxu0 0
        %863 = vmatpush1.bf16.msra.mxu0 0
        %864 = vmatprep.subr.bf16.mxu0 0
        %865 = vmatpush1.bf16.msra.mxu0 0
        %866 = vmatprep.subr.bf16.mxu0 0
        %867 = vmatpush1.bf16.msra.mxu0 0
        %868 = vmatprep.subr.bf16.mxu0 0
        %869 = vmatpush1.bf16.msra.mxu0 0
        %870 = vmatprep.subr.bf16.mxu0 0
        %871 = vmatpush1.bf16.msra.mxu0 0
        %872 = vmatprep.mubr.bf16.mxu0 0
        %873 = vmatmul.mubr.bf16.gmra.mrb[0].mxu0 %v793
        %v874 = vpop.f32.mrb[0].mxu0
        %v875 = vadd.f32 0.0, %v874
        %v876 = vpop.f32.mrb[0].mxu0
        %v877 = vpop.f32.mrb[0].mxu0
        %v878 = vadd.f32 0.0, %v877
        %v879 = vpop.f32.mrb[0].mxu0
        %880 = vmatprep.mubr.bf16.mxu0 0
        %881 = vmatmul.mubr.bf16.gmra.mrb[0].mxu0 %v796
        %v882 = vpop.f32.mrb[0].mxu0
        %v883 = vadd.f32 0.0, %v882
        %v884 = vpop.f32.mrb[0].mxu0
        %v885 = vpop.f32.mrb[0].mxu0
        %v886 = vadd.f32 0.0, %v885
        %v887 = vpop.f32.mrb[0].mxu0
        %888 = vmatprep.mubr.bf16.mxu0 0
        %889 = vmatmul.mubr.bf16.gmra.mrb[0].mxu0 %v799
        %v890 = vpop.f32.mrb[0].mxu0
        %v891 = vadd.f32 0.0, %v890
        %v892 = vpop.f32.mrb[0].mxu0
        %v893 = vpop.f32.mrb[0].mxu0
        %v894 = vadd.f32 0.0, %v893
        %v895 = vpop.f32.mrb[0].mxu0
        %896 = vmatprep.mubr.bf16.mxu0 0
        %897 = vmatmul.mubr.bf16.gmra.mrb[0].mxu0 %v802
        %v898 = vpop.f32.mrb[0].mxu0
        %v899 = vadd.f32 0.0, %v898
        %v900 = vpop.f32.mrb[0].mxu0
        %v901 = vpop.f32.mrb[0].mxu0
        %v902 = vadd.f32 0.0, %v901
        %v903 = vpop.f32.mrb[0].mxu0
        %904 = vmatprep.mubr.bf16.mxu0 0
        %905 = vmatmul.mubr.bf16.gmra.mrb[0].mxu0 %v805
        %v906 = vpop.f32.mrb[0].mxu0
        %v907 = vadd.f32 0.0, %v906
        %v908 = vpop.f32.mrb[0].mxu0
        %v909 = vpop.f32.mrb[0].mxu0
        %v910 = vadd.f32 0.0, %v909
        %v911 = vpop.f32.mrb[0].mxu0
        %912 = vmatprep.mubr.bf16.mxu0 0
        %913 = vmatmul.mubr.bf16.gmra.mrb[0].mxu0 %v808
        %v914 = vpop.f32.mrb[0].mxu0
        %v915 = vadd.f32 0.0, %v914
        %v916 = vpop.f32.mrb[0].mxu0
        %v917 = vpop.f32.mrb[0].mxu0
        %v918 = vadd.f32 0.0, %v917
        %v919 = vpop.f32.mrb[0].mxu0
        %920 = vmatprep.mubr.bf16.mxu0 0
        %921 = vmatmul.mubr.bf16.gmra.mrb[0].mxu0 %v811
        %v922 = vpop.f32.mrb[0].mxu0
        %v923 = vadd.f32 0.0, %v922
        %v924 = vpop.f32.mrb[0].mxu0
        %v925 = vpop.f32.mrb[0].mxu0
        %v926 = vadd.f32 0.0, %v925
        %v927 = vpop.f32.mrb[0].mxu0
        %928 = vmatprep.mubr.bf16.mxu0 0
        %929 = vmatmul.mubr.bf16.gmra.mrb[0].mxu0 %v814
        %v930 = vpop.f32.mrb[0].mxu0
        %v931 = vadd.f32 0.0, %v930
        %v932 = vpop.f32.mrb[0].mxu0
        %v933 = vpop.f32.mrb[0].mxu0
        %v934 = vadd.f32 0.0, %v933
        %v935 = vpop.f32.mrb[0].mxu0
        %936 = vmatprep.mubr.bf16.mxu0 0
        %937 = vmatmul.mubr.bf16.gmra.mrb[0].mxu0 %v817
        %v938 = vpop.f32.mrb[0].mxu0
        %v939 = vadd.f32 0.0, %v938
        %v940 = vpop.f32.mrb[0].mxu0
        %v941 = vpop.f32.mrb[0].mxu0
        %v942 = vadd.f32 0.0, %v941
        %v943 = vpop.f32.mrb[0].mxu0
        %944 = vmatprep.mubr.bf16.mxu0 0
        %945 = vmatmul.mubr.bf16.gmra.mrb[0].mxu0 %v820
        %v946 = vpop.f32.mrb[0].mxu0
        %v947 = vadd.f32 0.0, %v946
        %v948 = vpop.f32.mrb[0].mxu0
        %v949 = vpop.f32.mrb[0].mxu0
        %v950 = vadd.f32 0.0, %v949
        %v951 = vpop.f32.mrb[0].mxu0
        %952 = vmatprep.mubr.bf16.mxu0 0
        %953 = vmatmul.mubr.bf16.gmra.mrb[0].mxu0 %v823
        %v954 = vpop.f32.mrb[0].mxu0
        %v955 = vadd.f32 0.0, %v954
        %v956 = vpop.f32.mrb[0].mxu0
        %v957 = vpop.f32.mrb[0].mxu0
        %v958 = vadd.f32 0.0, %v957
        %v959 = vpop.f32.mrb[0].mxu0
        %960 = vmatprep.mubr.bf16.mxu0 0
        %961 = vmatmul.mubr.bf16.gmra.mrb[0].mxu0 %v826
        %v962 = vpop.f32.mrb[0].mxu0
        %v963 = vadd.f32 0.0, %v962
        %v964 = vpop.f32.mrb[0].mxu0
        %v965 = vpop.f32.mrb[0].mxu0
        %v966 = vadd.f32 0.0, %v965
        %v967 = vpop.f32.mrb[0].mxu0
        %968 = vmatprep.mubr.bf16.mxu0 0
        %969 = vmatmul.mubr.bf16.gmra.mrb[0].mxu0 %v829
        %v970 = vpop.f32.mrb[0].mxu0
        %v971 = vadd.f32 0.0, %v970
        %v972 = vpop.f32.mrb[0].mxu0
        %v973 = vpop.f32.mrb[0].mxu0
        %v974 = vadd.f32 0.0, %v973
        %v975 = vpop.f32.mrb[0].mxu0
        %976 = vmatprep.mubr.bf16.mxu0 0
        %977 = vmatmul.mubr.bf16.gmra.mrb[0].mxu0 %v832
        %v978 = vpop.f32.mrb[0].mxu0
        %v979 = vadd.f32 0.0, %v978
        %v980 = vpop.f32.mrb[0].mxu0
        %v981 = vpop.f32.mrb[0].mxu0
        %v982 = vadd.f32 0.0, %v981
        %v983 = vpop.f32.mrb[0].mxu0
        %984 = vmatprep.mubr.bf16.mxu0 0
        %985 = vmatmul.mubr.bf16.gmra.mrb[0].mxu0 %v835
        %v986 = vpop.f32.mrb[0].mxu0
        %v987 = vadd.f32 0.0, %v986
        %v988 = vpop.f32.mrb[0].mxu0
        %v989 = vpop.f32.mrb[0].mxu0
        %v990 = vadd.f32 0.0, %v989
        %v991 = vpop.f32.mrb[0].mxu0
        %992 = vmatprep.mubr.bf16.mxu0 0
        %993 = vmatmul.mubr.bf16.gmra.mrb[0].mxu0 %v838
        %v994 = vpop.f32.mrb[0].mxu0
        %v995 = vadd.f32 0.0, %v994
        %v996 = vpop.f32.mrb[0].mxu0
        %v997 = vpop.f32.mrb[0].mxu0
        %v998 = vadd.f32 0.0, %v997
        %v999 = vpop.f32.mrb[0].mxu0
        %1000 = vdwg.mxu0
        %v1005 = vunpack.c.l.b16 %v765
        %v1006 = vunpack.c.l.b16 %v766
        %v1007 = vunpack.c.l.b16 %v767
        %v1008 = vunpack.c.l.b16 %v768
        %v1009 = vpack.c.b16 %v1006, %v1005
        %v1010 = vpack.c.b16 %v1008, %v1007
        %v1014 = vsel %vm644, %v749, 0
        %v1017 = vsel %vm644, %v757, 0
        %1019 = vmatprep.subr.bf16.mxu0 0
        %1020 = vmatpush1.bf16.msra.mxu0 %v1009
        %1021 = vmatprep.subr.bf16.mxu0 0
        %1022 = vmatpush1.bf16.msra.mxu0 %v1010
        %1023 = vmatprep.subr.bf16.mxu0 0
        %1024 = vmatpush1.bf16.msra.mxu0 0
        %1025 = vmatprep.subr.bf16.mxu0 0
        %1026 = vmatpush1.bf16.msra.mxu0 0
        %1027 = vmatprep.subr.bf16.mxu0 0
        %1028 = vmatpush1.bf16.msra.mxu0 0
        %1029 = vmatprep.subr.bf16.mxu0 0
        %1030 = vmatpush1.bf16.msra.mxu0 0
        %1031 = vmatprep.subr.bf16.mxu0 0
        %1032 = vmatpush1.bf16.msra.mxu0 0
        %1033 = vmatprep.subr.bf16.mxu0 0
        %1034 = vmatpush1.bf16.msra.mxu0 0
        %1035 = vmatprep.subr.bf16.mxu0 0
        %1036 = vmatpush1.bf16.msra.mxu0 0
        %1037 = vmatprep.subr.bf16.mxu0 0
        %1038 = vmatpush1.bf16.msra.mxu0 0
        %1039 = vmatprep.subr.bf16.mxu0 0
        %1040 = vmatpush1.bf16.msra.mxu0 0
        %1041 = vmatprep.subr.bf16.mxu0 0
        %1042 = vmatpush1.bf16.msra.mxu0 0
        %1043 = vmatprep.subr.bf16.mxu0 0
        %1044 = vmatpush1.bf16.msra.mxu0 0
        %1045 = vmatprep.subr.bf16.mxu0 0
        %1046 = vmatpush1.bf16.msra.mxu0 0
        %1047 = vmatprep.subr.bf16.mxu0 0
        %1048 = vmatpush1.bf16.msra.mxu0 0
        %1049 = vmatprep.subr.bf16.mxu0 0
        %1050 = vmatpush1.bf16.msra.mxu0 0
        %1051 = vmatprep.mubr.bf16.mxu0 0
        %1052 = vmatmul.mubr.bf16.gmra.mrb[0].mxu0 %v1014
        %v1053 = vpop.f32.mrb[0].mxu0
        %v1054 = vadd.f32 %v875, %v1053
        %v1055 = vpop.f32.mrb[0].mxu0
        %v1056 = vpop.f32.mrb[0].mxu0
        %v1057 = vadd.f32 %v878, %v1056
        %v1058 = vpop.f32.mrb[0].mxu0
        %1059 = vmatprep.mubr.bf16.mxu0 0
        %1060 = vmatmul.mubr.bf16.gmra.mrb[0].mxu0 %v793
        %v1061 = vpop.f32.mrb[0].mxu0
        %v1062 = vadd.f32 %v883, %v1061
        %v1063 = vpop.f32.mrb[0].mxu0
        %v1064 = vpop.f32.mrb[0].mxu0
        %v1065 = vadd.f32 %v886, %v1064
        %v1066 = vpop.f32.mrb[0].mxu0
        %1067 = vmatprep.mubr.bf16.mxu0 0
        %1068 = vmatmul.mubr.bf16.gmra.mrb[0].mxu0 %v796
        %v1069 = vpop.f32.mrb[0].mxu0
        %v1070 = vadd.f32 %v891, %v1069
        %v1071 = vpop.f32.mrb[0].mxu0
        %v1072 = vpop.f32.mrb[0].mxu0
        %v1073 = vadd.f32 %v894, %v1072
        %v1074 = vpop.f32.mrb[0].mxu0
        %1075 = vmatprep.mubr.bf16.mxu0 0
        %1076 = vmatmul.mubr.bf16.gmra.mrb[0].mxu0 %v799
        %v1077 = vpop.f32.mrb[0].mxu0
        %v1078 = vadd.f32 %v899, %v1077
        %v1079 = vpop.f32.mrb[0].mxu0
        %v1080 = vpop.f32.mrb[0].mxu0
        %v1081 = vadd.f32 %v902, %v1080
        %v1082 = vpop.f32.mrb[0].mxu0
        %1083 = vmatprep.mubr.bf16.mxu0 0
        %1084 = vmatmul.mubr.bf16.gmra.mrb[0].mxu0 %v802
        %v1085 = vpop.f32.mrb[0].mxu0
        %v1086 = vadd.f32 %v907, %v1085
        %v1087 = vpop.f32.mrb[0].mxu0
        %v1088 = vpop.f32.mrb[0].mxu0
        %v1089 = vadd.f32 %v910, %v1088
        %v1090 = vpop.f32.mrb[0].mxu0
        %1091 = vmatprep.mubr.bf16.mxu0 0
        %1092 = vmatmul.mubr.bf16.gmra.mrb[0].mxu0 %v805
        %v1093 = vpop.f32.mrb[0].mxu0
        %v1094 = vadd.f32 %v915, %v1093
        %v1095 = vpop.f32.mrb[0].mxu0
        %v1096 = vpop.f32.mrb[0].mxu0
        %v1097 = vadd.f32 %v918, %v1096
        %v1098 = vpop.f32.mrb[0].mxu0
        %1099 = vmatprep.mubr.bf16.mxu0 0
        %1100 = vmatmul.mubr.bf16.gmra.mrb[0].mxu0 %v808
        %v1101 = vpop.f32.mrb[0].mxu0
        %v1102 = vadd.f32 %v923, %v1101
        %v1103 = vpop.f32.mrb[0].mxu0
        %v1104 = vpop.f32.mrb[0].mxu0
        %v1105 = vadd.f32 %v926, %v1104
        %v1106 = vpop.f32.mrb[0].mxu0
        %1107 = vmatprep.mubr.bf16.mxu0 0
        %1108 = vmatmul.mubr.bf16.gmra.mrb[0].mxu0 %v811
        %v1109 = vpop.f32.mrb[0].mxu0
        %v1110 = vadd.f32 %v931, %v1109
        %v1111 = vpop.f32.mrb[0].mxu0
        %v1112 = vpop.f32.mrb[0].mxu0
        %v1113 = vadd.f32 %v934, %v1112
        %v1114 = vpop.f32.mrb[0].mxu0
        %1115 = vmatprep.mubr.bf16.mxu0 0
        %1116 = vmatmul.mubr.bf16.gmra.mrb[0].mxu0 %v1017
        %v1117 = vpop.f32.mrb[0].mxu0
        %v1118 = vadd.f32 %v939, %v1117
        %v1119 = vpop.f32.mrb[0].mxu0
        %v1120 = vpop.f32.mrb[0].mxu0
        %v1121 = vadd.f32 %v942, %v1120
        %v1122 = vpop.f32.mrb[0].mxu0
        %1123 = vmatprep.mubr.bf16.mxu0 0
        %1124 = vmatmul.mubr.bf16.gmra.mrb[0].mxu0 %v817
        %v1125 = vpop.f32.mrb[0].mxu0
        %v1126 = vadd.f32 %v947, %v1125
        %v1127 = vpop.f32.mrb[0].mxu0
        %v1128 = vpop.f32.mrb[0].mxu0
        %v1129 = vadd.f32 %v950, %v1128
        %v1130 = vpop.f32.mrb[0].mxu0
        %1131 = vmatprep.mubr.bf16.mxu0 0
        %1132 = vmatmul.mubr.bf16.gmra.mrb[0].mxu0 %v820
        %v1133 = vpop.f32.mrb[0].mxu0
        %v1134 = vadd.f32 %v955, %v1133
        %v1135 = vpop.f32.mrb[0].mxu0
        %v1136 = vpop.f32.mrb[0].mxu0
        %v1137 = vadd.f32 %v958, %v1136
        %v1138 = vpop.f32.mrb[0].mxu0
        %1139 = vmatprep.mubr.bf16.mxu0 0
        %1140 = vmatmul.mubr.bf16.gmra.mrb[0].mxu0 %v823
        %v1141 = vpop.f32.mrb[0].mxu0
        %v1142 = vadd.f32 %v963, %v1141
        %v1143 = vpop.f32.mrb[0].mxu0
        %v1144 = vpop.f32.mrb[0].mxu0
        %v1145 = vadd.f32 %v966, %v1144
        %v1146 = vpop.f32.mrb[0].mxu0
        %1147 = vmatprep.mubr.bf16.mxu0 0
        %1148 = vmatmul.mubr.bf16.gmra.mrb[0].mxu0 %v826
        %v1149 = vpop.f32.mrb[0].mxu0
        %v1150 = vadd.f32 %v971, %v1149
        %v1151 = vpop.f32.mrb[0].mxu0
        %v1152 = vpop.f32.mrb[0].mxu0
        %v1153 = vadd.f32 %v974, %v1152
        %v1154 = vpop.f32.mrb[0].mxu0
        %1155 = vmatprep.mubr.bf16.mxu0 0
        %1156 = vmatmul.mubr.bf16.gmra.mrb[0].mxu0 %v829
        %v1157 = vpop.f32.mrb[0].mxu0
        %v1158 = vadd.f32 %v979, %v1157
        %v1159 = vpop.f32.mrb[0].mxu0
        %v1160 = vpop.f32.mrb[0].mxu0
        %v1161 = vadd.f32 %v982, %v1160
        %v1162 = vpop.f32.mrb[0].mxu0
        %1163 = vmatprep.mubr.bf16.mxu0 0
        %1164 = vmatmul.mubr.bf16.gmra.mrb[0].mxu0 %v832
        %v1165 = vpop.f32.mrb[0].mxu0
        %v1166 = vadd.f32 %v987, %v1165
        %v1167 = vpop.f32.mrb[0].mxu0
        %v1168 = vpop.f32.mrb[0].mxu0
        %v1169 = vadd.f32 %v990, %v1168
        %v1170 = vpop.f32.mrb[0].mxu0
        %1171 = vmatprep.mubr.bf16.mxu0 0
        %1172 = vmatmul.mubr.bf16.gmra.mrb[0].mxu0 %v835
        %v1173 = vpop.f32.mrb[0].mxu0
        %v1174 = vadd.f32 %v995, %v1173
        %v1175 = vpop.f32.mrb[0].mxu0
        %v1176 = vpop.f32.mrb[0].mxu0
        %v1177 = vadd.f32 %v998, %v1176
        %v1178 = vpop.f32.mrb[0].mxu0
        %1179 = vdwg.mxu0
        %v1180 = vld [vmem:[#allocation2 + $0x20] sm:$0xff]
        %v1181 = vld [vmem:[#allocation2 + $0x28] sm:$0xff]
        %v1182 = vld [vmem:[#allocation2 + $0x30] sm:$0xff]
        %v1183 = vld [vmem:[#allocation2 + $0x38] sm:$0xff]
        %v1184 = vld [vmem:[#allocation2 + $0x40] sm:$0xff]
        %v1185 = vld [vmem:[#allocation2 + $0x48] sm:$0xff]
        %v1186 = vld [vmem:[#allocation2 + $0x50] sm:$0xff]
        %v1187 = vld [vmem:[#allocation2 + $0x58] sm:$0xff]
        %v1188 = vld [vmem:[#allocation2 + $0x60] sm:$0xff]
        %v1189 = vld [vmem:[#allocation2 + $0x68] sm:$0xff]
        %v1190 = vld [vmem:[#allocation2 + $0x70] sm:$0xff]
        %v1191 = vld [vmem:[#allocation2 + $0x78] sm:$0xff]
        %v1192 = vld [vmem:[#allocation2 + $0x80] sm:$0xff]
        %v1193 = vld [vmem:[#allocation2 + $0x88] sm:$0xff]
        %v1194 = vld [vmem:[#allocation2 + $0x90] sm:$0xff]
        %v1195 = vld [vmem:[#allocation2 + $0x98] sm:$0xff]
        %v1196 = vld [vmem:[#allocation2 + $0xc0] sm:$0xff]
        %v1197 = vld [vmem:[#allocation2 + $0xc8] sm:$0xff]
        %v1198 = vld [vmem:[#allocation2 + $0xd0] sm:$0xff]
        %v1199 = vld [vmem:[#allocation2 + $0xd8] sm:$0xff]
        %v1200 = vld [vmem:[#allocation2 + $0xe0] sm:$0xff]
        %v1201 = vld [vmem:[#allocation2 + $0xe8] sm:$0xff]
        %v1202 = vld [vmem:[#allocation2 + $0xf0] sm:$0xff]
        %v1203 = vld [vmem:[#allocation2 + $0xf8] sm:$0xff]
        %v1204 = vld [vmem:[#allocation2 + $0x100] sm:$0xff]
        %v1205 = vld [vmem:[#allocation2 + $0x108] sm:$0xff]
        %v1206 = vld [vmem:[#allocation2 + $0x110] sm:$0xff]
        %v1207 = vld [vmem:[#allocation2 + $0x118] sm:$0xff]
        %v1208 = vld [vmem:[#allocation2 + $0x120] sm:$0xff]
        %v1209 = vld [vmem:[#allocation2 + $0x128] sm:$0xff]
        %v1210 = vld [vmem:[#allocation2 + $0x130] sm:$0xff]
        %v1211 = vld [vmem:[#allocation2 + $0x138] sm:$0xff]
        %v1212 = vpack.c.bf16 %v1181, %v1180
        %v1213 = vpack.c.bf16 %v1183, %v1182
        %v1214 = vpack.c.bf16 %v1185, %v1184
        %v1215 = vpack.c.bf16 %v1187, %v1186
        %v1216 = vpack.c.bf16 %v1189, %v1188
        %v1217 = vpack.c.bf16 %v1191, %v1190
        %v1218 = vpack.c.bf16 %v1193, %v1192
        %v1219 = vpack.c.bf16 %v1195, %v1194
        %v1220 = vpack.c.bf16 %v1197, %v1196
        %v1221 = vpack.c.bf16 %v1199, %v1198
        %v1222 = vpack.c.bf16 %v1201, %v1200
        %v1223 = vpack.c.bf16 %v1203, %v1202
        %v1224 = vpack.c.bf16 %v1205, %v1204
        %v1225 = vpack.c.bf16 %v1207, %v1206
        %v1226 = vpack.c.bf16 %v1209, %v1208
        %v1227 = vpack.c.bf16 %v1211, %v1210
        %s1228 = scalar_lea.vmem [#allocation9], 32
        %v1229 = vld [vmem:[%s1228] sm:$0xf]
        %v1230 = vld [vmem:[%s1228 + $0x4] sm:$0xf]
        %v1231 = vld [vmem:[%s1228 + $0x8] sm:$0xf]
        %v1232 = vld [vmem:[%s1228 + $0xc] sm:$0xf]
        %v1237 = vunpack.c.l.b16 %v1229
        %v1238 = vunpack.c.l.b16 %v1230
        %v1239 = vunpack.c.l.b16 %v1231
        %v1240 = vunpack.c.l.b16 %v1232
        %v1241 = vpack.c.b16 %v1238, %v1237
        %v1242 = vpack.c.b16 %v1240, %v1239
        %v1246 = vsel %vm644, %v1212, 0
        %v1249 = vsel %vm644, %v1213, 0
        %v1252 = vsel %vm644, %v1214, 0
        %v1255 = vsel %vm644, %v1215, 0
        %v1258 = vsel %vm644, %v1216, 0
        %v1261 = vsel %vm644, %v1217, 0
        %v1264 = vsel %vm644, %v1218, 0
        %v1267 = vsel %vm644, %v1219, 0
        %v1270 = vsel %vm644, %v1220, 0
        %v1273 = vsel %vm644, %v1221, 0
        %v1276 = vsel %vm644, %v1222, 0
        %v1279 = vsel %vm644, %v1223, 0
        %v1282 = vsel %vm644, %v1224, 0
        %v1285 = vsel %vm644, %v1225, 0
        %v1288 = vsel %vm644, %v1226, 0
        %v1291 = vsel %vm644, %v1227, 0
        %1293 = vmatprep.subr.bf16.mxu0 0
        %1294 = vmatpush1.bf16.msra.mxu0 %v1241
        %1295 = vmatprep.subr.bf16.mxu0 0
        %1296 = vmatpush1.bf16.msra.mxu0 %v1242
        %1297 = vmatprep.subr.bf16.mxu0 0
        %1298 = vmatpush1.bf16.msra.mxu0 0
        %1299 = vmatprep.subr.bf16.mxu0 0
        %1300 = vmatpush1.bf16.msra.mxu0 0
        %1301 = vmatprep.subr.bf16.mxu0 0
        %1302 = vmatpush1.bf16.msra.mxu0 0
        %1303 = vmatprep.subr.bf16.mxu0 0
        %1304 = vmatpush1.bf16.msra.mxu0 0
        %1305 = vmatprep.subr.bf16.mxu0 0
        %1306 = vmatpush1.bf16.msra.mxu0 0
        %1307 = vmatprep.subr.bf16.mxu0 0
        %1308 = vmatpush1.bf16.msra.mxu0 0
        %1309 = vmatprep.subr.bf16.mxu0 0
        %1310 = vmatpush1.bf16.msra.mxu0 0
        %1311 = vmatprep.subr.bf16.mxu0 0
        %1312 = vmatpush1.bf16.msra.mxu0 0
        %1313 = vmatprep.subr.bf16.mxu0 0
        %1314 = vmatpush1.bf16.msra.mxu0 0
        %1315 = vmatprep.subr.bf16.mxu0 0
        %1316 = vmatpush1.bf16.msra.mxu0 0
        %1317 = vmatprep.subr.bf16.mxu0 0
        %1318 = vmatpush1.bf16.msra.mxu0 0
        %1319 = vmatprep.subr.bf16.mxu0 0
        %1320 = vmatpush1.bf16.msra.mxu0 0
        %1321 = vmatprep.subr.bf16.mxu0 0
        %1322 = vmatpush1.bf16.msra.mxu0 0
        %1323 = vmatprep.subr.bf16.mxu0 0
        %1324 = vmatpush1.bf16.msra.mxu0 0
        %1325 = vmatprep.mubr.bf16.mxu0 0
        %1326 = vmatmul.mubr.bf16.gmra.mrb[0].mxu0 %v1246
        %v1327 = vpop.f32.mrb[0].mxu0
        %v1328 = vadd.f32 0.0, %v1327
        %v1329 = vpop.f32.mrb[0].mxu0
        %v1330 = vpop.f32.mrb[0].mxu0
        %v1331 = vadd.f32 0.0, %v1330
        %v1332 = vpop.f32.mrb[0].mxu0
        %1333 = vmatprep.mubr.bf16.mxu0 0
        %1334 = vmatmul.mubr.bf16.gmra.mrb[0].mxu0 %v1249
        %v1335 = vpop.f32.mrb[0].mxu0
        %v1336 = vadd.f32 0.0, %v1335
        %v1337 = vpop.f32.mrb[0].mxu0
        %v1338 = vpop.f32.mrb[0].mxu0
        %v1339 = vadd.f32 0.0, %v1338
        %v1340 = vpop.f32.mrb[0].mxu0
        %1341 = vmatprep.mubr.bf16.mxu0 0
        %1342 = vmatmul.mubr.bf16.gmra.mrb[0].mxu0 %v1252
        %v1343 = vpop.f32.mrb[0].mxu0
        %v1344 = vadd.f32 0.0, %v1343
        %v1345 = vpop.f32.mrb[0].mxu0
        %v1346 = vpop.f32.mrb[0].mxu0
        %v1347 = vadd.f32 0.0, %v1346
        %v1348 = vpop.f32.mrb[0].mxu0
        %1349 = vmatprep.mubr.bf16.mxu0 0
        %1350 = vmatmul.mubr.bf16.gmra.mrb[0].mxu0 %v1255
        %v1351 = vpop.f32.mrb[0].mxu0
        %v1352 = vadd.f32 0.0, %v1351
        %v1353 = vpop.f32.mrb[0].mxu0
        %v1354 = vpop.f32.mrb[0].mxu0
        %v1355 = vadd.f32 0.0, %v1354
        %v1356 = vpop.f32.mrb[0].mxu0
        %1357 = vmatprep.mubr.bf16.mxu0 0
        %1358 = vmatmul.mubr.bf16.gmra.mrb[0].mxu0 %v1258
        %v1359 = vpop.f32.mrb[0].mxu0
        %v1360 = vadd.f32 0.0, %v1359
        %v1361 = vpop.f32.mrb[0].mxu0
        %v1362 = vpop.f32.mrb[0].mxu0
        %v1363 = vadd.f32 0.0, %v1362
        %v1364 = vpop.f32.mrb[0].mxu0
        %1365 = vmatprep.mubr.bf16.mxu0 0
        %1366 = vmatmul.mubr.bf16.gmra.mrb[0].mxu0 %v1261
        %v1367 = vpop.f32.mrb[0].mxu0
        %v1368 = vadd.f32 0.0, %v1367
        %v1369 = vpop.f32.mrb[0].mxu0
        %v1370 = vpop.f32.mrb[0].mxu0
        %v1371 = vadd.f32 0.0, %v1370
        %v1372 = vpop.f32.mrb[0].mxu0
        %1373 = vmatprep.mubr.bf16.mxu0 0
        %1374 = vmatmul.mubr.bf16.gmra.mrb[0].mxu0 %v1264
        %v1375 = vpop.f32.mrb[0].mxu0
        %v1376 = vadd.f32 0.0, %v1375
        %v1377 = vpop.f32.mrb[0].mxu0
        %v1378 = vpop.f32.mrb[0].mxu0
        %v1379 = vadd.f32 0.0, %v1378
        %v1380 = vpop.f32.mrb[0].mxu0
        %1381 = vmatprep.mubr.bf16.mxu0 0
        %1382 = vmatmul.mubr.bf16.gmra.mrb[0].mxu0 %v1267
        %v1383 = vpop.f32.mrb[0].mxu0
        %v1384 = vadd.f32 0.0, %v1383
        %v1385 = vpop.f32.mrb[0].mxu0
        %v1386 = vpop.f32.mrb[0].mxu0
        %v1387 = vadd.f32 0.0, %v1386
        %v1388 = vpop.f32.mrb[0].mxu0
        %1389 = vmatprep.mubr.bf16.mxu0 0
        %1390 = vmatmul.mubr.bf16.gmra.mrb[0].mxu0 %v1270
        %v1391 = vpop.f32.mrb[0].mxu0
        %v1392 = vadd.f32 0.0, %v1391
        %v1393 = vpop.f32.mrb[0].mxu0
        %v1394 = vpop.f32.mrb[0].mxu0
        %v1395 = vadd.f32 0.0, %v1394
        %v1396 = vpop.f32.mrb[0].mxu0
        %1397 = vmatprep.mubr.bf16.mxu0 0
        %1398 = vmatmul.mubr.bf16.gmra.mrb[0].mxu0 %v1273
        %v1399 = vpop.f32.mrb[0].mxu0
        %v1400 = vadd.f32 0.0, %v1399
        %v1401 = vpop.f32.mrb[0].mxu0
        %v1402 = vpop.f32.mrb[0].mxu0
        %v1403 = vadd.f32 0.0, %v1402
        %v1404 = vpop.f32.mrb[0].mxu0
        %1405 = vmatprep.mubr.bf16.mxu0 0
        %1406 = vmatmul.mubr.bf16.gmra.mrb[0].mxu0 %v1276
        %v1407 = vpop.f32.mrb[0].mxu0
        %v1408 = vadd.f32 0.0, %v1407
        %v1409 = vpop.f32.mrb[0].mxu0
        %v1410 = vpop.f32.mrb[0].mxu0
        %v1411 = vadd.f32 0.0, %v1410
        %v1412 = vpop.f32.mrb[0].mxu0
        %1413 = vmatprep.mubr.bf16.mxu0 0
        %1414 = vmatmul.mubr.bf16.gmra.mrb[0].mxu0 %v1279
        %v1415 = vpop.f32.mrb[0].mxu0
        %v1416 = vadd.f32 0.0, %v1415
        %v1417 = vpop.f32.mrb[0].mxu0
        %v1418 = vpop.f32.mrb[0].mxu0
        %v1419 = vadd.f32 0.0, %v1418
        %v1420 = vpop.f32.mrb[0].mxu0
        %1421 = vmatprep.mubr.bf16.mxu0 0
        %1422 = vmatmul.mubr.bf16.gmra.mrb[0].mxu0 %v1282
        %v1423 = vpop.f32.mrb[0].mxu0
        %v1424 = vadd.f32 0.0, %v1423
        %v1425 = vpop.f32.mrb[0].mxu0
        %v1426 = vpop.f32.mrb[0].mxu0
        %v1427 = vadd.f32 0.0, %v1426
        %v1428 = vpop.f32.mrb[0].mxu0
        %1429 = vmatprep.mubr.bf16.mxu0 0
        %1430 = vmatmul.mubr.bf16.gmra.mrb[0].mxu0 %v1285
        %v1431 = vpop.f32.mrb[0].mxu0
        %v1432 = vadd.f32 0.0, %v1431
        %v1433 = vpop.f32.mrb[0].mxu0
        %v1434 = vpop.f32.mrb[0].mxu0
        %v1435 = vadd.f32 0.0, %v1434
        %v1436 = vpop.f32.mrb[0].mxu0
        %1437 = vmatprep.mubr.bf16.mxu0 0
        %1438 = vmatmul.mubr.bf16.gmra.mrb[0].mxu0 %v1288
        %v1439 = vpop.f32.mrb[0].mxu0
        %v1440 = vadd.f32 0.0, %v1439
        %v1441 = vpop.f32.mrb[0].mxu0
        %v1442 = vpop.f32.mrb[0].mxu0
        %v1443 = vadd.f32 0.0, %v1442
        %v1444 = vpop.f32.mrb[0].mxu0
        %1445 = vmatprep.mubr.bf16.mxu0 0
        %1446 = vmatmul.mubr.bf16.gmra.mrb[0].mxu0 %v1291
        %v1447 = vpop.f32.mrb[0].mxu0
        %v1448 = vadd.f32 0.0, %v1447
        %v1449 = vpop.f32.mrb[0].mxu0
        %v1450 = vpop.f32.mrb[0].mxu0
        %v1451 = vadd.f32 0.0, %v1450
        %v1452 = vpop.f32.mrb[0].mxu0
        %1453 = vdwg.mxu0
        %v1454 = vadd.f32 %v1054, %v1328
        %v1455 = vadd.f32 %v1057, %v1331
        %v1456 = vadd.f32 %v1062, %v1336
        %v1457 = vadd.f32 %v1065, %v1339
        %v1458 = vadd.f32 %v1070, %v1344
        %v1459 = vadd.f32 %v1073, %v1347
        %v1460 = vadd.f32 %v1078, %v1352
        %v1461 = vadd.f32 %v1081, %v1355
        %v1462 = vadd.f32 %v1086, %v1360
        %v1463 = vadd.f32 %v1089, %v1363
        %v1464 = vadd.f32 %v1094, %v1368
        %v1465 = vadd.f32 %v1097, %v1371
        %v1466 = vadd.f32 %v1102, %v1376
        %v1467 = vadd.f32 %v1105, %v1379
        %v1468 = vadd.f32 %v1110, %v1384
        %v1469 = vadd.f32 %v1113, %v1387
        %v1470 = vadd.f32 %v1118, %v1392
        %v1471 = vadd.f32 %v1121, %v1395
        %v1472 = vadd.f32 %v1126, %v1400
        %v1473 = vadd.f32 %v1129, %v1403
        %v1474 = vadd.f32 %v1134, %v1408
        %v1475 = vadd.f32 %v1137, %v1411
        %v1476 = vadd.f32 %v1142, %v1416
        %v1477 = vadd.f32 %v1145, %v1419
        %v1478 = vadd.f32 %v1150, %v1424
        %v1479 = vadd.f32 %v1153, %v1427
        %v1480 = vadd.f32 %v1158, %v1432
        %v1481 = vadd.f32 %v1161, %v1435
        %v1482 = vadd.f32 %v1166, %v1440
        %v1483 = vadd.f32 %v1169, %v1443
        %v1484 = vadd.f32 %v1174, %v1448
        %v1485 = vadd.f32 %v1177, %v1451
        %v1486 = vld [vmem:[#allocation11] sm:$0x1]
        %v1488 = vlaneseq
        %v1489 = vshrl.u32 %v1488, 7
        %v1490 = vsub.s32 0, %v1489
        %v1491 = vrot.slane %v1486, %v1490
        %v1493 = vadd.f32 %v1454, %v1491
        %v1494 = vadd.f32 %v1455, %v1491
        %v1495 = vadd.f32 %v1456, %v1491
        %v1496 = vadd.f32 %v1457, %v1491
        %v1497 = vadd.f32 %v1458, %v1491
        %v1498 = vadd.f32 %v1459, %v1491
        %v1499 = vadd.f32 %v1460, %v1491
        %v1500 = vadd.f32 %v1461, %v1491
        %v1501 = vadd.f32 %v1462, %v1491
        %v1502 = vadd.f32 %v1463, %v1491
        %v1503 = vadd.f32 %v1464, %v1491
        %v1504 = vadd.f32 %v1465, %v1491
        %v1505 = vadd.f32 %v1466, %v1491
        %v1506 = vadd.f32 %v1467, %v1491
        %v1507 = vadd.f32 %v1468, %v1491
        %v1508 = vadd.f32 %v1469, %v1491
        %v1509 = vadd.f32 %v1470, %v1491
        %v1510 = vadd.f32 %v1471, %v1491
        %v1511 = vadd.f32 %v1472, %v1491
        %v1512 = vadd.f32 %v1473, %v1491
        %v1513 = vadd.f32 %v1474, %v1491
        %v1514 = vadd.f32 %v1475, %v1491
        %v1515 = vadd.f32 %v1476, %v1491
        %v1516 = vadd.f32 %v1477, %v1491
        %v1517 = vadd.f32 %v1478, %v1491
        %v1518 = vadd.f32 %v1479, %v1491
        %v1519 = vadd.f32 %v1480, %v1491
        %v1520 = vadd.f32 %v1481, %v1491
        %v1521 = vadd.f32 %v1482, %v1491
        %v1522 = vadd.f32 %v1483, %v1491
        %v1523 = vadd.f32 %v1484, %v1491
        %v1524 = vadd.f32 %v1485, %v1491
        %v1525 = vld [vmem:[%s361] sm:$0xf]
        %v1526 = vld [vmem:[%s361 + $0x4] sm:$0xf]
        %v1527 = vld [vmem:[%s361 + $0x8] sm:$0xf]
        %v1528 = vld [vmem:[%s361 + $0xc] sm:$0xf]
        %v1529 = vld [vmem:[%s361 + $0x10] sm:$0xf]
        %v1530 = vld [vmem:[%s361 + $0x14] sm:$0xf]
        %v1531 = vld [vmem:[%s361 + $0x18] sm:$0xf]
        %v1532 = vld [vmem:[%s361 + $0x1c] sm:$0xf]
        %v1533 = vld [vmem:[%s361 + $0x20] sm:$0xf]
        %v1534 = vld [vmem:[%s361 + $0x24] sm:$0xf]
        %v1535 = vld [vmem:[%s361 + $0x28] sm:$0xf]
        %v1536 = vld [vmem:[%s361 + $0x2c] sm:$0xf]
        %v1537 = vld [vmem:[%s361 + $0x30] sm:$0xf]
        %v1538 = vld [vmem:[%s361 + $0x34] sm:$0xf]
        %v1539 = vld [vmem:[%s361 + $0x38] sm:$0xf]
        %v1540 = vld [vmem:[%s361 + $0x3c] sm:$0xf]
        %v1541 = vld [vmem:[%s361 + $0x40] sm:$0xf]
        %v1542 = vld [vmem:[%s361 + $0x44] sm:$0xf]
        %v1543 = vld [vmem:[%s361 + $0x48] sm:$0xf]
        %v1544 = vld [vmem:[%s361 + $0x4c] sm:$0xf]
        %v1545 = vld [vmem:[%s361 + $0x50] sm:$0xf]
        %v1546 = vld [vmem:[%s361 + $0x54] sm:$0xf]
        %v1547 = vld [vmem:[%s361 + $0x58] sm:$0xf]
        %v1548 = vld [vmem:[%s361 + $0x5c] sm:$0xf]
        %v1549 = vld [vmem:[%s361 + $0x60] sm:$0xf]
        %v1550 = vld [vmem:[%s361 + $0x64] sm:$0xf]
        %v1551 = vld [vmem:[%s361 + $0x68] sm:$0xf]
        %v1552 = vld [vmem:[%s361 + $0x6c] sm:$0xf]
        %v1553 = vld [vmem:[%s361 + $0x70] sm:$0xf]
        %v1554 = vld [vmem:[%s361 + $0x74] sm:$0xf]
        %v1555 = vld [vmem:[%s361 + $0x78] sm:$0xf]
        %v1556 = vld [vmem:[%s361 + $0x7c] sm:$0xf]
        %v1557 = vunpack.c.l.bf16 %v1525
        %v1558 = vunpack.c.l.bf16 %v1526
        %v1559 = vunpack.c.l.bf16 %v1527
        %v1560 = vunpack.c.l.bf16 %v1528
        %v1561 = vunpack.c.l.bf16 %v1529
        %v1562 = vunpack.c.l.bf16 %v1530
        %v1563 = vunpack.c.l.bf16 %v1531
        %v1564 = vunpack.c.l.bf16 %v1532
        %v1565 = vunpack.c.l.bf16 %v1533
        %v1566 = vunpack.c.l.bf16 %v1534
        %v1567 = vunpack.c.l.bf16 %v1535
        %v1568 = vunpack.c.l.bf16 %v1536
        %v1569 = vunpack.c.l.bf16 %v1537
        %v1570 = vunpack.c.l.bf16 %v1538
        %v1571 = vunpack.c.l.bf16 %v1539
        %v1572 = vunpack.c.l.bf16 %v1540
        %v1573 = vunpack.c.l.bf16 %v1541
        %v1574 = vunpack.c.l.bf16 %v1542
        %v1575 = vunpack.c.l.bf16 %v1543
        %v1576 = vunpack.c.l.bf16 %v1544
        %v1577 = vunpack.c.l.bf16 %v1545
        %v1578 = vunpack.c.l.bf16 %v1546
        %v1579 = vunpack.c.l.bf16 %v1547
        %v1580 = vunpack.c.l.bf16 %v1548
        %v1581 = vunpack.c.l.bf16 %v1549
        %v1582 = vunpack.c.l.bf16 %v1550
        %v1583 = vunpack.c.l.bf16 %v1551
        %v1584 = vunpack.c.l.bf16 %v1552
        %v1585 = vunpack.c.l.bf16 %v1553
        %v1586 = vunpack.c.l.bf16 %v1554
        %v1587 = vunpack.c.l.bf16 %v1555
        %v1588 = vunpack.c.l.bf16 %v1556
        %v1589 = vadd.f32 %v1493, %v1557
        %v1590 = vadd.f32 %v1494, %v1558
        %v1591 = vadd.f32 %v1495, %v1559
        %v1592 = vadd.f32 %v1496, %v1560
        %v1593 = vadd.f32 %v1497, %v1561
        %v1594 = vadd.f32 %v1498, %v1562
        %v1595 = vadd.f32 %v1499, %v1563
        %v1596 = vadd.f32 %v1500, %v1564
        %v1597 = vadd.f32 %v1501, %v1565
        %v1598 = vadd.f32 %v1502, %v1566
        %v1599 = vadd.f32 %v1503, %v1567
        %v1600 = vadd.f32 %v1504, %v1568
        %v1601 = vadd.f32 %v1505, %v1569
        %v1602 = vadd.f32 %v1506, %v1570
        %v1603 = vadd.f32 %v1507, %v1571
        %v1604 = vadd.f32 %v1508, %v1572
        %v1605 = vadd.f32 %v1509, %v1573
        %v1606 = vadd.f32 %v1510, %v1574
        %v1607 = vadd.f32 %v1511, %v1575
        %v1608 = vadd.f32 %v1512, %v1576
        %v1609 = vadd.f32 %v1513, %v1577
        %v1610 = vadd.f32 %v1514, %v1578
        %v1611 = vadd.f32 %v1515, %v1579
        %v1612 = vadd.f32 %v1516, %v1580
        %v1613 = vadd.f32 %v1517, %v1581
        %v1614 = vadd.f32 %v1518, %v1582
        %v1615 = vadd.f32 %v1519, %v1583
        %v1616 = vadd.f32 %v1520, %v1584
        %v1617 = vadd.f32 %v1521, %v1585
        %v1618 = vadd.f32 %v1522, %v1586
        %v1619 = vadd.f32 %v1523, %v1587
        %v1620 = vadd.f32 %v1524, %v1588
        %v1621 = vpack.c.bf16 %v1590, %v1589
        %v1622 = vpack.c.bf16 %v1592, %v1591
        %v1623 = vpack.c.bf16 %v1594, %v1593
        %v1624 = vpack.c.bf16 %v1596, %v1595
        %v1625 = vpack.c.bf16 %v1598, %v1597
        %v1626 = vpack.c.bf16 %v1600, %v1599
        %v1627 = vpack.c.bf16 %v1602, %v1601
        %v1628 = vpack.c.bf16 %v1604, %v1603
        %v1629 = vpack.c.bf16 %v1606, %v1605
        %v1630 = vpack.c.bf16 %v1608, %v1607
        %v1631 = vpack.c.bf16 %v1610, %v1609
        %v1632 = vpack.c.bf16 %v1612, %v1611
        %v1633 = vpack.c.bf16 %v1614, %v1613
        %v1634 = vpack.c.bf16 %v1616, %v1615
        %v1635 = vpack.c.bf16 %v1618, %v1617
        %v1636 = vpack.c.bf16 %v1620, %v1619
        %v1653 = vunpack.c.l.b16 %v1621
        %v1654 = vunpack.c.h.b16 %v1621
        %v1655 = vunpack.c.l.b16 %v1622
        %v1656 = vunpack.c.h.b16 %v1622
        %v1657 = vunpack.c.l.b16 %v1623
        %v1658 = vunpack.c.h.b16 %v1623
        %v1659 = vunpack.c.l.b16 %v1624
        %v1660 = vunpack.c.h.b16 %v1624
        %v1661 = vunpack.c.l.b16 %v1625
        %v1662 = vunpack.c.h.b16 %v1625
        %v1663 = vunpack.c.l.b16 %v1626
        %v1664 = vunpack.c.h.b16 %v1626
        %v1665 = vunpack.c.l.b16 %v1627
        %v1666 = vunpack.c.h.b16 %v1627
        %v1667 = vunpack.c.l.b16 %v1628
        %v1668 = vunpack.c.h.b16 %v1628
        %v1669 = vunpack.c.l.b16 %v1629
        %v1670 = vunpack.c.h.b16 %v1629
        %v1671 = vunpack.c.l.b16 %v1630
        %v1672 = vunpack.c.h.b16 %v1630
        %v1673 = vunpack.c.l.b16 %v1631
        %v1674 = vunpack.c.h.b16 %v1631
        %v1675 = vunpack.c.l.b16 %v1632
        %v1676 = vunpack.c.h.b16 %v1632
        %v1677 = vunpack.c.l.b16 %v1633
        %v1678 = vunpack.c.h.b16 %v1633
        %v1679 = vunpack.c.l.b16 %v1634
        %v1680 = vunpack.c.h.b16 %v1634
        %v1681 = vunpack.c.l.b16 %v1635
        %v1682 = vunpack.c.h.b16 %v1635
        %v1683 = vunpack.c.l.b16 %v1636
        %v1684 = vunpack.c.h.b16 %v1636
        %v1685 = vpack.c.b16 %v1653, %v1653
        %v1686 = vpack.c.b16 %v1654, %v1654
        %v1687 = vpack.c.b16 %v1655, %v1655
        %v1688 = vpack.c.b16 %v1656, %v1656
        %v1689 = vpack.c.b16 %v1657, %v1657
        %v1690 = vpack.c.b16 %v1658, %v1658
        %v1691 = vpack.c.b16 %v1659, %v1659
        %v1692 = vpack.c.b16 %v1660, %v1660
        %v1693 = vpack.c.b16 %v1661, %v1661
        %v1694 = vpack.c.b16 %v1662, %v1662
        %v1695 = vpack.c.b16 %v1663, %v1663
        %v1696 = vpack.c.b16 %v1664, %v1664
        %v1697 = vpack.c.b16 %v1665, %v1665
        %v1698 = vpack.c.b16 %v1666, %v1666
        %v1699 = vpack.c.b16 %v1667, %v1667
        %v1700 = vpack.c.b16 %v1668, %v1668
        %v1701 = vpack.c.b16 %v1669, %v1669
        %v1702 = vpack.c.b16 %v1670, %v1670
        %v1703 = vpack.c.b16 %v1671, %v1671
        %v1704 = vpack.c.b16 %v1672, %v1672
        %v1705 = vpack.c.b16 %v1673, %v1673
        %v1706 = vpack.c.b16 %v1674, %v1674
        %v1707 = vpack.c.b16 %v1675, %v1675
        %v1708 = vpack.c.b16 %v1676, %v1676
        %v1709 = vpack.c.b16 %v1677, %v1677
        %v1710 = vpack.c.b16 %v1678, %v1678
        %v1711 = vpack.c.b16 %v1679, %v1679
        %v1712 = vpack.c.b16 %v1680, %v1680
        %v1713 = vpack.c.b16 %v1681, %v1681
        %v1714 = vpack.c.b16 %v1682, %v1682
        %v1715 = vpack.c.b16 %v1683, %v1683
        %v1716 = vpack.c.b16 %v1684, %v1684
        %vm1749 = vcmask 257024
        %1750 = vst.msk [vmem:[%s394] sm:$0xf] %vm1749, %v1685
        %1751 = vst.msk [vmem:[%s394 + $0x4] sm:$0xf] %vm1749, %v1686
        %1752 = vst.msk [vmem:[%s394 + $0x8] sm:$0xf] %vm1749, %v1687
        %1753 = vst.msk [vmem:[%s394 + $0xc] sm:$0xf] %vm1749, %v1688
        %1754 = vst.msk [vmem:[%s394 + $0x10] sm:$0xf] %vm1749, %v1689
        %1755 = vst.msk [vmem:[%s394 + $0x14] sm:$0xf] %vm1749, %v1690
        %1756 = vst.msk [vmem:[%s394 + $0x18] sm:$0xf] %vm1749, %v1691
        %1757 = vst.msk [vmem:[%s394 + $0x1c] sm:$0xf] %vm1749, %v1692
        %1758 = vst.msk [vmem:[%s394 + $0x20] sm:$0xf] %vm1749, %v1693
        %1759 = vst.msk [vmem:[%s394 + $0x24] sm:$0xf] %vm1749, %v1694
        %1760 = vst.msk [vmem:[%s394 + $0x28] sm:$0xf] %vm1749, %v1695
        %1761 = vst.msk [vmem:[%s394 + $0x2c] sm:$0xf] %vm1749, %v1696
        %1762 = vst.msk [vmem:[%s394 + $0x30] sm:$0xf] %vm1749, %v1697
        %1763 = vst.msk [vmem:[%s394 + $0x34] sm:$0xf] %vm1749, %v1698
        %1764 = vst.msk [vmem:[%s394 + $0x38] sm:$0xf] %vm1749, %v1699
        %1765 = vst.msk [vmem:[%s394 + $0x3c] sm:$0xf] %vm1749, %v1700
        %1766 = vst.msk [vmem:[%s394 + $0x40] sm:$0xf] %vm1749, %v1701
        %1767 = vst.msk [vmem:[%s394 + $0x44] sm:$0xf] %vm1749, %v1702
        %1768 = vst.msk [vmem:[%s394 + $0x48] sm:$0xf] %vm1749, %v1703
        %1769 = vst.msk [vmem:[%s394 + $0x4c] sm:$0xf] %vm1749, %v1704
        %1770 = vst.msk [vmem:[%s394 + $0x50] sm:$0xf] %vm1749, %v1705
        %1771 = vst.msk [vmem:[%s394 + $0x54] sm:$0xf] %vm1749, %v1706
        %1772 = vst.msk [vmem:[%s394 + $0x58] sm:$0xf] %vm1749, %v1707
        %1773 = vst.msk [vmem:[%s394 + $0x5c] sm:$0xf] %vm1749, %v1708
        %1774 = vst.msk [vmem:[%s394 + $0x60] sm:$0xf] %vm1749, %v1709
        %1775 = vst.msk [vmem:[%s394 + $0x64] sm:$0xf] %vm1749, %v1710
        %1776 = vst.msk [vmem:[%s394 + $0x68] sm:$0xf] %vm1749, %v1711
        %1777 = vst.msk [vmem:[%s394 + $0x6c] sm:$0xf] %vm1749, %v1712
        %1778 = vst.msk [vmem:[%s394 + $0x70] sm:$0xf] %vm1749, %v1713
        %1779 = vst.msk [vmem:[%s394 + $0x74] sm:$0xf] %vm1749, %v1714
        %1780 = vst.msk [vmem:[%s394 + $0x78] sm:$0xf] %vm1749, %v1715
        %1781 = vst.msk [vmem:[%s394 + $0x7c] sm:$0xf] %vm1749, %v1716
        %v1782 = vsel %vm644, %v1589, 0.0
        %v1783 = vsel %vm644, %v1590, 0.0
        %v1784 = vadd.f32 %v1782, %v1783
        %v1785 = vsel %vm644, %v1591, 0.0
        %v1786 = vadd.f32 %v1784, %v1785
        %v1787 = vsel %vm644, %v1592, 0.0
        %v1788 = vadd.f32 %v1786, %v1787
        %v1789 = vsel %vm644, %v1593, 0.0
        %v1790 = vadd.f32 %v1788, %v1789
        %v1791 = vsel %vm644, %v1594, 0.0
        %v1792 = vadd.f32 %v1790, %v1791
        %v1793 = vsel %vm644, %v1595, 0.0
        %v1794 = vadd.f32 %v1792, %v1793
        %v1795 = vsel %vm644, %v1596, 0.0
        %v1796 = vadd.f32 %v1794, %v1795
        %v1797 = vsel %vm644, %v1597, 0.0
        %v1798 = vadd.f32 %v1796, %v1797
        %v1799 = vsel %vm644, %v1598, 0.0
        %v1800 = vadd.f32 %v1798, %v1799
        %v1801 = vsel %vm644, %v1599, 0.0
        %v1802 = vadd.f32 %v1800, %v1801
        %v1803 = vsel %vm644, %v1600, 0.0
        %v1804 = vadd.f32 %v1802, %v1803
        %v1805 = vsel %vm644, %v1601, 0.0
        %v1806 = vadd.f32 %v1804, %v1805
        %v1807 = vsel %vm644, %v1602, 0.0
        %v1808 = vadd.f32 %v1806, %v1807
        %v1809 = vsel %vm644, %v1603, 0.0
        %v1810 = vadd.f32 %v1808, %v1809
        %v1811 = vsel %vm644, %v1604, 0.0
        %v1812 = vadd.f32 %v1810, %v1811
        %v1813 = vsel %vm644, %v1605, 0.0
        %v1814 = vadd.f32 %v1812, %v1813
        %v1815 = vsel %vm644, %v1606, 0.0
        %v1816 = vadd.f32 %v1814, %v1815
        %v1817 = vsel %vm644, %v1607, 0.0
        %v1818 = vadd.f32 %v1816, %v1817
        %v1819 = vsel %vm644, %v1608, 0.0
        %v1820 = vadd.f32 %v1818, %v1819
        %v1821 = vsel %vm644, %v1609, 0.0
        %v1822 = vadd.f32 %v1820, %v1821
        %v1823 = vsel %vm644, %v1610, 0.0
        %v1824 = vadd.f32 %v1822, %v1823
        %v1825 = vsel %vm644, %v1611, 0.0
        %v1826 = vadd.f32 %v1824, %v1825
        %v1827 = vsel %vm644, %v1612, 0.0
        %v1828 = vadd.f32 %v1826, %v1827
        %v1829 = vsel %vm644, %v1613, 0.0
        %v1830 = vadd.f32 %v1828, %v1829
        %v1831 = vsel %vm644, %v1614, 0.0
        %v1832 = vadd.f32 %v1830, %v1831
        %v1833 = vsel %vm644, %v1615, 0.0
        %v1834 = vadd.f32 %v1832, %v1833
        %v1835 = vsel %vm644, %v1616, 0.0
        %v1836 = vadd.f32 %v1834, %v1835
        %v1837 = vsel %vm644, %v1617, 0.0
        %v1838 = vadd.f32 %v1836, %v1837
        %v1839 = vsel %vm644, %v1618, 0.0
        %v1840 = vadd.f32 %v1838, %v1839
        %v1841 = vsel %vm644, %v1619, 0.0
        %v1842 = vadd.f32 %v1840, %v1841
        %v1843 = vsel %vm644, %v1620, 0.0
        %v1844 = vadd.f32 %v1842, %v1843
        %v1845 = vrot.slane %v1844, 4
        %v1846 = vadd.f32 %v1844, %v1845
        %v1847 = vrot.slane %v1846, 2
        %v1848 = vadd.f32 %v1846, %v1847
        %v1849 = vrot.slane %v1848, 1
        %v1850 = vadd.f32 %v1848, %v1849
        %vm1851 = vcmask 253952
        %1852 = vst.msk [vmem:[%s401] sm:$0x1] %vm1851, %v1850
        %v1853 = vmul.f32 %v1589, %v1589
        %v1854 = vmul.f32 %v1590, %v1590
        %v1855 = vmul.f32 %v1591, %v1591
        %v1856 = vmul.f32 %v1592, %v1592
        %v1857 = vmul.f32 %v1593, %v1593
        %v1858 = vmul.f32 %v1594, %v1594
        %v1859 = vmul.f32 %v1595, %v1595
        %v1860 = vmul.f32 %v1596, %v1596
        %v1861 = vmul.f32 %v1597, %v1597
        %v1862 = vmul.f32 %v1598, %v1598
        %v1863 = vmul.f32 %v1599, %v1599
        %v1864 = vmul.f32 %v1600, %v1600
        %v1865 = vmul.f32 %v1601, %v1601
        %v1866 = vmul.f32 %v1602, %v1602
        %v1867 = vmul.f32 %v1603, %v1603
        %v1868 = vmul.f32 %v1604, %v1604
        %v1869 = vmul.f32 %v1605, %v1605
        %v1870 = vmul.f32 %v1606, %v1606
        %v1871 = vmul.f32 %v1607, %v1607
        %v1872 = vmul.f32 %v1608, %v1608
        %v1873 = vmul.f32 %v1609, %v1609
        %v1874 = vmul.f32 %v1610, %v1610
        %v1875 = vmul.f32 %v1611, %v1611
        %v1876 = vmul.f32 %v1612, %v1612
        %v1877 = vmul.f32 %v1613, %v1613
        %v1878 = vmul.f32 %v1614, %v1614
        %v1879 = vmul.f32 %v1615, %v1615
        %v1880 = vmul.f32 %v1616, %v1616
        %v1881 = vmul.f32 %v1617, %v1617
        %v1882 = vmul.f32 %v1618, %v1618
        %v1883 = vmul.f32 %v1619, %v1619
        %v1884 = vmul.f32 %v1620, %v1620
        %v1885 = vsel %vm644, %v1853, 0.0
        %v1886 = vsel %vm644, %v1854, 0.0
        %v1887 = vadd.f32 %v1885, %v1886
        %v1888 = vsel %vm644, %v1855, 0.0
        %v1889 = vadd.f32 %v1887, %v1888
        %v1890 = vsel %vm644, %v1856, 0.0
        %v1891 = vadd.f32 %v1889, %v1890
        %v1892 = vsel %vm644, %v1857, 0.0
        %v1893 = vadd.f32 %v1891, %v1892
        %v1894 = vsel %vm644, %v1858, 0.0
        %v1895 = vadd.f32 %v1893, %v1894
        %v1896 = vsel %vm644, %v1859, 0.0
        %v1897 = vadd.f32 %v1895, %v1896
        %v1898 = vsel %vm644, %v1860, 0.0
        %v1899 = vadd.f32 %v1897, %v1898
        %v1900 = vsel %vm644, %v1861, 0.0
        %v1901 = vadd.f32 %v1899, %v1900
        %v1902 = vsel %vm644, %v1862, 0.0
        %v1903 = vadd.f32 %v1901, %v1902
        %v1904 = vsel %vm644, %v1863, 0.0
        %v1905 = vadd.f32 %v1903, %v1904
        %v1906 = vsel %vm644, %v1864, 0.0
        %v1907 = vadd.f32 %v1905, %v1906
        %v1908 = vsel %vm644, %v1865, 0.0
        %v1909 = vadd.f32 %v1907, %v1908
        %v1910 = vsel %vm644, %v1866, 0.0
        %v1911 = vadd.f32 %v1909, %v1910
        %v1912 = vsel %vm644, %v1867, 0.0
        %v1913 = vadd.f32 %v1911, %v1912
        %v1914 = vsel %vm644, %v1868, 0.0
        %v1915 = vadd.f32 %v1913, %v1914
        %v1916 = vsel %vm644, %v1869, 0.0
        %v1917 = vadd.f32 %v1915, %v1916
        %v1918 = vsel %vm644, %v1870, 0.0
        %v1919 = vadd.f32 %v1917, %v1918
        %v1920 = vsel %vm644, %v1871, 0.0
        %v1921 = vadd.f32 %v1919, %v1920
        %v1922 = vsel %vm644, %v1872, 0.0
        %v1923 = vadd.f32 %v1921, %v1922
        %v1924 = vsel %vm644, %v1873, 0.0
        %v1925 = vadd.f32 %v1923, %v1924
        %v1926 = vsel %vm644, %v1874, 0.0
        %v1927 = vadd.f32 %v1925, %v1926
        %v1928 = vsel %vm644, %v1875, 0.0
        %v1929 = vadd.f32 %v1927, %v1928
        %v1930 = vsel %vm644, %v1876, 0.0
        %v1931 = vadd.f32 %v1929, %v1930
        %v1932 = vsel %vm644, %v1877, 0.0
        %v1933 = vadd.f32 %v1931, %v1932
        %v1934 = vsel %vm644, %v1878, 0.0
        %v1935 = vadd.f32 %v1933, %v1934
        %v1936 = vsel %vm644, %v1879, 0.0
        %v1937 = vadd.f32 %v1935, %v1936
        %v1938 = vsel %vm644, %v1880, 0.0
        %v1939 = vadd.f32 %v1937, %v1938
        %v1940 = vsel %vm644, %v1881, 0.0
        %v1941 = vadd.f32 %v1939, %v1940
        %v1942 = vsel %vm644, %v1882, 0.0
        %v1943 = vadd.f32 %v1941, %v1942
        %v1944 = vsel %vm644, %v1883, 0.0
        %v1945 = vadd.f32 %v1943, %v1944
        %v1946 = vsel %vm644, %v1884, 0.0
        %v1947 = vadd.f32 %v1945, %v1946
        %v1948 = vrot.slane %v1947, 4
        %v1949 = vadd.f32 %v1947, %v1948
        %v1950 = vrot.slane %v1949, 2
        %v1951 = vadd.f32 %v1949, %v1950
        %v1952 = vrot.slane %v1951, 1
        %v1953 = vadd.f32 %v1951, %v1952
        %1954 = vst.msk [vmem:[%s401 + $0x1] sm:$0x1] %vm1851, %v1953
        %s1955 = sand.u32 %s177, 1
        %s1956 = scalar_lea.sflag [#allocation5], %s1955
        %s1957 = sand.u32 %s177, 1
        %s1958 = smul.addr %s1957, 128
        %s1959 = scalar_lea.vmem [#allocation14], %s1958
        %s1960 = sand.u32 %s203, 1
        %s1961 = scalar_lea.sflag [#allocation16], %s1960
        %s1962 = sand.u32 %s203, 1
        %s1963 = smul.addr %s1962, 2
        %s1964 = scalar_lea.vmem [#allocation15], %s1963
        // Predicated region
        $region69: #{st_gcn_forward.6} parent=43 // pred_check
          %p1965 = pneg %p187
        $region70: #{st_gcn_forward.6} parent=43 // pred_check_branch
          %1967 = sbr.rel (%p1965) target = $region72
        $region71: #{st_gcn_forward.6} parent=43 // pred_region
          %s1968 = smul.u32 2, %s33
          %s1970 = ssub.s32 2048, 2048
          %1971 = vsyncadd %s1956, %s1970
          %s1972 = smul.addr %s1968, 16
          %s1973 = smul.addr %s1972, 64
          %s1974 = scalar_lea.hbm %s6, %s1973
          %s1975 = sshll.u32 %s1959, 4
          %s1976 = int_to_ptr.vmem [resolvable:$true] %s1975
          %1981 = dma.vmem_to_hbm [thread:$0]  %s1976, 2048, %s1974, %s1956, 64, 64, 4
        $region72: #{st_gcn_forward.6} parent=43 // pred_fallthru
          _
        // Predicated region
        $region73: #{st_gcn_forward.6} parent=43 // pred_check
          %p1982 = pneg %p213
        $region74: #{st_gcn_forward.6} parent=43 // pred_check_branch
          %1984 = sbr.rel (%p1982) target = $region76
        $region75: #{st_gcn_forward.6} parent=43 // pred_region
          %s1986 = ssub.s32 32, 32
          %1987 = vsyncadd %s1961, %s1986
          %s1988 = smul.addr %s33, 32
          %s1989 = scalar_lea.hbm %s7, %s1988
          %s1991 = sshll.u32 %s1964, 4
          %s1992 = int_to_ptr.vmem [resolvable:$true] %s1991
          %1994 = dma.vmem_to_hbm [thread:$0]  %s1992, 32, %s1989, %s1961
        $region76: #{st_gcn_forward.6} parent=43 // pred_fallthru
          _
      $region44: #{st_gcn_forward.6} parent=5 // pred_fallthru
        _
      %p1995 = scmp.le.s32.totalorder 2, %s28
      // Predicated region
      $region77: #{st_gcn_forward.6} parent=5 // pred_check
        %p1996 = pneg %p1995
      $region78: #{st_gcn_forward.6} parent=5 // pred_check_branch
        %1998 = sbr.rel (%p1996) target = $region80
      $region79: #{st_gcn_forward.6} parent=5 // pred_region
        %s1999 = ssub.s32 %s28, 2
        // Predicated region
        $region81: #{st_gcn_forward.6} parent=79 // pred_check
          %p2000 = pneg %p193
        $region82: #{st_gcn_forward.6} parent=79 // pred_check_branch
          %2002 = sbr.rel (%p2000) target = $region84
        $region83: #{st_gcn_forward.6} parent=79 // pred_region
          %s2003 = sand.u32 %s178, 1
          %s2004 = scalar_lea.sflag [#allocation5], %s2003
          %s2005 = sand.u32 %s178, 1
          %s2006 = smul.addr %s2005, 128
          %s2007 = scalar_lea.vmem [#allocation14], %s2006
          %2008 = dma.done %s2004, 2048
        $region84: #{st_gcn_forward.6} parent=79 // pred_fallthru
          _
        // Predicated region
        $region85: #{st_gcn_forward.6} parent=79 // pred_check
          %p2009 = pneg %p219
        $region86: #{st_gcn_forward.6} parent=79 // pred_check_branch
          %2011 = sbr.rel (%p2009) target = $region88
        $region87: #{st_gcn_forward.6} parent=79 // pred_region
          %s2012 = sand.u32 %s204, 1
          %s2013 = scalar_lea.sflag [#allocation16], %s2012
          %s2014 = sand.u32 %s204, 1
          %s2015 = smul.addr %s2014, 2
          %s2016 = scalar_lea.vmem [#allocation15], %s2015
          %2017 = dma.done %s2013, 32
        $region88: #{st_gcn_forward.6} parent=79 // pred_fallthru
          _
      $region80: #{st_gcn_forward.6} parent=5 // pred_fallthru
        _
    $region6: #{st_gcn_forward.6} parent=1 // loop_footer
      %s32 = sadd.s32 1, %s28
    $region7: #{st_gcn_forward.6} parent=1 // loop_footer_branch
      %27 = sbr.rel target = $region3
    $region8: #{st_gcn_forward.6} parent=1 // loop_exit
      _
    %2018 = vsyncpa [#allocation4], 1
    %s2019 = scalar_lea.sflag [#allocation4], 1
    %2020 = vsyncpa %s2019, 1
    %2021 = vsyncpa [#allocation7], 1
    %2022 = vsyncpa [#allocation10], 1
    %2023 = vsyncpa [#allocation13], 1
    %s2024 = scalar_lea.sflag [#allocation13], 1
    %2025 = vsyncpa %s2024, 1
    %2026 = vsyncpa [#allocation5], 1
    %s2027 = scalar_lea.sflag [#allocation5], 1
    %2028 = vsyncpa %s2027, 1
    %2029 = vsyncpa [#allocation16], 1
    %s2030 = scalar_lea.sflag [#allocation16], 1
    %2031 = vsyncpa %s2030, 1

</llo_original>
